<compile_context>
chip_gen: v6e
topology: v6e:2x2x1
jax: 0.10.0
libtpu: 0.0.40
codegen_flags: <defaults>
</compile_context>

<pallas_src>
import functools

import jax
import jax.numpy as jnp
from jax.experimental import pallas as pl
from jax.experimental.pallas import tpu as pltpu


def mhsa_kernel(x_ref, w_ref, b_ref, pos_ref, out_ref, *,
                heads, head_dim, batch_block, compute_dtype):
    # x_ref  : (bB, C, N)           channel-major pixels (free reshape of NCHW)
    # w_ref  : (3C, C)              fused [Wq*scale ; Wk ; Wv] 1x1-conv weights
    # b_ref  : (2, C)  f32          row 0 = bq*scale, row 1 = bv   (bk dropped)
    # pos_ref: (hd, N) f32          flattened relative_h + relative_w
    # out_ref: (bB, heads, N, hd)   row-major == torch attention.view layout
    C = heads * head_dim
    cd = compute_dtype

    w = w_ref[...]                      # (3C, C), already in compute dtype
    pos = pos_ref[...]                  # (hd, N) f32
    b = b_ref[...]                      # (2, C) f32
    bq_row = b[0:1, :]                  # (1, C)
    bv_row = b[1:2, :]                  # (1, C)

    for bb in range(batch_block):       # static unroll; bB is small (<=4)
        x_cn = x_ref[bb].astype(cd)                                   # (C, N)
        # Fused QKV projection: one wide MXU matmul, f32 accumulation.
        qkv = jnp.dot(w, x_cn, preferred_element_type=jnp.float32)    # (3C, N)

        # Pixel-major Q for the whole block: a single hoisted XLU transpose
        # instead of per-head transposes; lane-major bq row added afterwards.
        q_t = (qkv[:C, :].T + bq_row).astype(cd)                      # (N, C)

        for h in range(heads):          # static unroll; heads is small
            r0 = h * head_dim
            k_h = qkv[C + r0:C + r0 + head_dim, :] + pos              # (hd, N) pos folded into K
            v_h = qkv[2 * C + r0:2 * C + r0 + head_dim, :]            # (hd, N)

            # energy[i, j] = sum_d q_t[i, d] * k_h[d, j]   — standard MXU matmul
            energy = jnp.dot(q_t[:, r0:r0 + head_dim], k_h.astype(cd),
                             preferred_element_type=jnp.float32)      # (N, N)
            m = jnp.max(energy, axis=-1, keepdims=True)
            e = jnp.exp(energy - m)                                   # unnormalised
            s = jnp.sum(e, axis=-1, keepdims=True)                    # (N, 1)

            # o[i, d] = sum_j e[i, j] * v_h[d, j]  — native "q @ k.T"-style trans-B
            o_h = jnp.einsum('ij,dj->id', e.astype(cd), v_h.astype(cd),
                             preferred_element_type=jnp.float32)      # (N, hd)
            # Exact normalisation; bv added post-normalisation (rows sum to 1).
            o_h = o_h * pl.reciprocal(s, approx=False) + bv_row[:, r0:r0 + head_dim]

            out_ref[bb, h, :, :] = o_h.astype(out_ref.dtype)


def prepare_mhsa_params(params, heads, compute_dtype=jnp.bfloat16):
    """Build fused kernel operands once (cache/jit this for inference)."""
    C = params['wq'].shape[0]
    hd = C // heads
    scale = hd ** (-0.5)

    # q-scale folded into Wq / bq (exact); bk dropped (cancels in softmax).
    wq = params['wq'].reshape(C, C) * scale
    wk = params['wk'].reshape(C, C)
    wv = params['wv'].reshape(C, C)
    w_cat = jnp.concatenate([wq, wk, wv], axis=0).astype(compute_dtype)     # (3C, C)
    b2 = jnp.stack([params['bq'] * scale, params['bv']], axis=0)
    b2 = b2.astype(jnp.float32)                                             # (2, C)
    pos = (params['rel_h'] + params['rel_w']).reshape(hd, -1).astype(jnp.float32)  # (hd, N)
    return w_cat, b2, pos


def _pick_batch_block(batch, target=4):
    """Largest divisor of `batch` not exceeding `target`.

    target=4 keeps v7x (64 MiB VMEM) comfortable; on v5e/v6e (128 MiB) this can
    be raised to 8 for bf16 inputs.
    """
    bb = max(1, min(batch, target))
    while batch % bb:
        bb -= 1
    return bb


def mhsa_forward(x, params, heads, compute_dtype=jnp.bfloat16,
                 batch_block=None, prepared=None):
    """Pallas MHSA forward. x: (B, C, H, W) (NCHW, like PyTorch)."""
    B, C, H, W = x.shape
    N = H * W
    hd = C // heads

    if prepared is None:
        prepared = prepare_mhsa_params(params, heads, compute_dtype)
    w_cat, b2, pos = prepared

    # Channel-major pixels: a pure row-major reshape of NCHW (no HBM transpose).
    # x is cast to the compute dtype inside the kernel (no extra HBM pass here;
    # if the surrounding network already runs bf16, pass bf16 x directly).
    x_cn = x.reshape(B, C, N)

    if batch_block is None:
        batch_block = _pick_batch_block(B)
    bB = batch_block
    assert B % bB == 0, "batch_block must divide the batch size"

    kernel = functools.partial(mhsa_kernel, heads=heads, head_dim=hd,
                               batch_block=bB, compute_dtype=compute_dtype)

    out = pl.pallas_call(
        kernel,
        out_shape=jax.ShapeDtypeStruct((B, heads, N, hd), x.dtype),
        grid_spec=pltpu.PrefetchScalarGridSpec(
            num_scalar_prefetch=0,
            grid=(B // bB,),
            in_specs=[
                pl.BlockSpec((bB, C, N), lambda b: (b, 0, 0)),    # x (channel-major)
                pl.BlockSpec((3 * C, C), lambda b: (0, 0)),       # fused QKV weights
                pl.BlockSpec((2, C), lambda b: (0, 0)),           # [bq*scale ; bv]
                pl.BlockSpec((hd, N), lambda b: (0, 0)),          # relative position
            ],
            out_specs=pl.BlockSpec((bB, heads, N, hd), lambda b: (b, 0, 0, 0)),
        ),
        compiler_params=pltpu.CompilerParams(
            dimension_semantics=("parallel",),
            vmem_limit_bytes=48 * 1024 * 1024,   # above default scoped limit, <= v7x physical
        ),
    )(x_cn, w_cat, b2, pos)

    # torch's attention.view(B, C, H, W) is a row-major reinterpretation of the
    # contiguous (B, heads, N, hd) tensor -> a FREE reshape here (no transpose).
    return out.reshape(B, C, H, W)


def mhsa_reference(x, params, heads):
    """Pure-JAX reference mirroring the PyTorch forward."""
    B, C, H, W = x.shape
    hd = C // heads
    N = H * W
    scale = hd ** (-0.5)

    def conv1x1(inp, w, b):
        y = jnp.einsum('bchw,oc->bohw', inp, w.reshape(C, C))
        return y + b[None, :, None, None]

    q = conv1x1(x, params['wq'], params['bq']).reshape(B, heads, hd, N) * scale
    k = conv1x1(x, params['wk'], params['bk']).reshape(B, heads, hd, N)
    v = conv1x1(x, params['wv'], params['bv']).reshape(B, heads, hd, N)

    cc = jnp.einsum('bhdi,bhdj->bhij', q, k)
    pos = (params['rel_h'] + params['rel_w']).reshape(hd, N)
    cp = jnp.einsum('bhdi,dj->bhij', q, pos)
    beta = jax.nn.softmax(cc + cp, axis=-1)
    att = jnp.einsum('bhij,bhdj->bhid', beta, v)
    return att.reshape(B, C, H, W)


if __name__ == "__main__":
    B, C, H, W = 2, 32, 8, 8
    heads = 4
    hd = C // heads
    scale = hd ** (-0.5)

    key = jax.random.PRNGKey(0)
    ks = jax.random.split(key, 9)
    params = {
        'wq': jax.random.normal(ks[0], (C, C, 1, 1), jnp.float32) * 0.1,
        'bq': jax.random.normal(ks[1], (C,), jnp.float32) * 0.1,
        'wk': jax.random.normal(ks[2], (C, C, 1, 1), jnp.float32) * 0.1,
        'bk': jax.random.normal(ks[3], (C,), jnp.float32) * 0.1,
        'wv': jax.random.normal(ks[4], (C, C, 1, 1), jnp.float32) * 0.1,
        'bv': jax.random.normal(ks[5], (C,), jnp.float32) * 0.1,
        'rel_h': jax.random.normal(ks[6], (hd, H, 1), jnp.float32) * scale,
        'rel_w': jax.random.normal(ks[7], (hd, 1, W), jnp.float32) * scale,
    }
    x = jax.random.normal(ks[8], (B, C, H, W), jnp.float32)

    ref = mhsa_reference(x, params, heads)

    # f32 MXU-operand path (parity check).
    out_f32 = mhsa_forward(x, params, heads, compute_dtype=jnp.float32)
    out_f32 = jax.block_until_ready(out_f32)
    assert out_f32.shape == x.shape
    assert jnp.allclose(out_f32, ref, atol=2e-2, rtol=2e-2), "f32 kernel mismatch vs reference"

    # Default bf16 MXU-operand path (f32 accumulation kept); loose sanity bound.
    out_bf16 = mhsa_forward(x, params, heads)
    out_bf16 = jax.block_until_ready(out_bf16)
    assert out_bf16.shape == x.shape
    assert float(jnp.max(jnp.abs(out_bf16 - ref))) < 0.25, "bf16 kernel sanity check failed"

    print("KERNEL_OK")
</pallas_src>

<mosaic_0001>
module attributes {stable_mosaic.version = 11 : i64} {
  func.func @mhsa_kernel(%arg0: i32, %arg1: memref<2x32x64xf32, #tpu.memory_space<vmem>>, %arg2: memref<96x32xf32, #tpu.memory_space<vmem>>, %arg3: memref<2x32xf32, #tpu.memory_space<vmem>>, %arg4: memref<8x64xf32, #tpu.memory_space<vmem>>, %arg5: memref<2x4x64x8xf32, #tpu.memory_space<vmem>>) attributes {dimension_semantics = [#tpu.dimension_semantics<parallel>], iteration_bounds = array<i64: 1>, scalar_prefetch = 0 : i64, scratch_operands = 0 : i64, tpu.core_type = #tpu.core_type<tc>, window_params = [{transform_indices = @transform_0, window_bounds = array<i64: 2, 32, 64>}, {pipeline_mode = #tpu.pipeline_mode<synchronous>, transform_indices = @transform_1, window_bounds = array<i64: 96, 32>}, {pipeline_mode = #tpu.pipeline_mode<synchronous>, transform_indices = @transform_2, window_bounds = array<i64: 2, 32>}, {pipeline_mode = #tpu.pipeline_mode<synchronous>, transform_indices = @transform_3, window_bounds = array<i64: 8, 64>}, {transform_indices = @transform_4, window_bounds = array<i64: 2, 4, 64, 8>}]} {
    %c0 = arith.constant 0 : index
    %c0_0 = arith.constant 0 : index
    %0 = vector.load %arg2[%c0, %c0_0] : memref<96x32xf32, #tpu.memory_space<vmem>>, vector<96x32xf32>
    %c0_1 = arith.constant 0 : index
    %c0_2 = arith.constant 0 : index
    %1 = vector.load %arg4[%c0_1, %c0_2] : memref<8x64xf32, #tpu.memory_space<vmem>>, vector<8x64xf32>
    %c0_3 = arith.constant 0 : index
    %c0_4 = arith.constant 0 : index
    %2 = vector.load %arg3[%c0_3, %c0_4] : memref<2x32xf32, #tpu.memory_space<vmem>>, vector<2x32xf32>
    %3 = vector.extract_strided_slice %2 {offsets = [0, 0], sizes = [1, 32], strides = [1, 1]} : vector<2x32xf32> to vector<1x32xf32>
    %4 = vector.extract_strided_slice %2 {offsets = [1, 0], sizes = [1, 32], strides = [1, 1]} : vector<2x32xf32> to vector<1x32xf32>
    %c0_5 = arith.constant 0 : index
    %c0_6 = arith.constant 0 : index
    %c0_7 = arith.constant 0 : index
    %5 = vector.load %arg1[%c0_5, %c0_6, %c0_7] : memref<2x32x64xf32, #tpu.memory_space<vmem>>, vector<1x32x64xf32>
    %6 = vector.shape_cast %5 : vector<1x32x64xf32> to vector<32x64xf32>
    %cst = arith.constant dense<0.000000e+00> : vector<96x64xf32>
    %7 = tpu.matmul %0, %6, %cst {dimension_numbers = #tpu.dot_dimension_numbers<[1], [0], [0], [1], [0, 0, 1, 1], [], []>} : vector<96x32xf32>, vector<32x64xf32>, vector<96x64xf32> -> vector<96x64xf32>
    %8 = vector.extract_strided_slice %7 {offsets = [0, 0], sizes = [32, 64], strides = [1, 1]} : vector<96x64xf32> to vector<32x64xf32>
    %9 = tpu.transpose %8, [1, 0] : vector<32x64xf32> -> vector<64x32xf32>
    %10 = vector.broadcast %3 : vector<1x32xf32> to vector<64x32xf32>
    %11 = arith.addf %9, %10 : vector<64x32xf32>
    %12 = vector.extract_strided_slice %7 {offsets = [32, 0], sizes = [8, 64], strides = [1, 1]} : vector<96x64xf32> to vector<8x64xf32>
    %13 = arith.addf %12, %1 : vector<8x64xf32>
    %14 = vector.extract_strided_slice %7 {offsets = [64, 0], sizes = [8, 64], strides = [1, 1]} : vector<96x64xf32> to vector<8x64xf32>
    %15 = vector.extract_strided_slice %11 {offsets = [0, 0], sizes = [64, 8], strides = [1, 1]} : vector<64x32xf32> to vector<64x8xf32>
    %cst_8 = arith.constant dense<0.000000e+00> : vector<64x64xf32>
    %16 = tpu.matmul %15, %13, %cst_8 {dimension_numbers = #tpu.dot_dimension_numbers<[1], [0], [0], [1], [0, 0, 1, 1], [], []>} : vector<64x8xf32>, vector<8x64xf32>, vector<64x64xf32> -> vector<64x64xf32>
    %cst_9 = arith.constant dense<0xFF800000> : vector<64xf32>
    %17 = vector.multi_reduction <maximumf>, %16, %cst_9 [1] : vector<64x64xf32> to vector<64xf32>
    %18 = vector.shape_cast %17 : vector<64xf32> to vector<64x1xf32>
    %19 = vector.broadcast %18 : vector<64x1xf32> to vector<64x64xf32>
    %20 = arith.subf %16, %19 : vector<64x64xf32>
    %21 = math.exp %20 : vector<64x64xf32>
    %cst_10 = arith.constant dense<0.000000e+00> : vector<64xf32>
    %22 = vector.multi_reduction <add>, %21, %cst_10 [1] : vector<64x64xf32> to vector<64xf32>
    %23 = vector.shape_cast %22 : vector<64xf32> to vector<64x1xf32>
    "tpu.trace_start"() <{level = 10 : i32, message = "ij,dj->id"}> : () -> ()
    %cst_11 = arith.constant dense<0.000000e+00> : vector<64x8xf32>
    %24 = tpu.matmul %21, %14, %cst_11 {dimension_numbers = #tpu.dot_dimension_numbers<[1], [1], [0], [0], [0, 0, 1, 0], [], []>} : vector<64x64xf32>, vector<8x64xf32>, vector<64x8xf32> -> vector<64x8xf32>
    "tpu.trace_stop"() : () -> ()
    %25 = tpu.reciprocal %23 : vector<64x1xf32> -> vector<64x1xf32>
    %26 = vector.broadcast %25 : vector<64x1xf32> to vector<64x8xf32>
    %27 = arith.mulf %24, %26 : vector<64x8xf32>
    %28 = vector.extract_strided_slice %4 {offsets = [0, 0], sizes = [1, 8], strides = [1, 1]} : vector<1x32xf32> to vector<1x8xf32>
    %29 = vector.broadcast %28 : vector<1x8xf32> to vector<64x8xf32>
    %30 = arith.addf %27, %29 : vector<64x8xf32>
    %c0_12 = arith.constant 0 : index
    %c0_13 = arith.constant 0 : index
    %c0_14 = arith.constant 0 : index
    %c0_15 = arith.constant 0 : index
    %31 = vector.load %arg5[%c0_12, %c0_13, %c0_14, %c0_15] : memref<2x4x64x8xf32, #tpu.memory_space<vmem>>, vector<1x1x64x8xf32>
    %32 = vector.shape_cast %31 : vector<1x1x64x8xf32> to vector<64x8xf32>
    %33 = vector.shape_cast %30 : vector<64x8xf32> to vector<1x1x64x8xf32>
    tpu.vector_store %arg5[%c0_12, %c0_13, %c0_14, %c0_15], %33 {strides = array<i32>} : memref<2x4x64x8xf32, #tpu.memory_space<vmem>>, vector<1x1x64x8xf32>,
    %34 = vector.extract_strided_slice %7 {offsets = [40, 0], sizes = [8, 64], strides = [1, 1]} : vector<96x64xf32> to vector<8x64xf32>
    %35 = arith.addf %34, %1 : vector<8x64xf32>
    %36 = vector.extract_strided_slice %7 {offsets = [72, 0], sizes = [8, 64], strides = [1, 1]} : vector<96x64xf32> to vector<8x64xf32>
    %37 = vector.extract_strided_slice %11 {offsets = [0, 8], sizes = [64, 8], strides = [1, 1]} : vector<64x32xf32> to vector<64x8xf32>
    %cst_16 = arith.constant dense<0.000000e+00> : vector<64x64xf32>
    %38 = tpu.matmul %37, %35, %cst_16 {dimension_numbers = #tpu.dot_dimension_numbers<[1], [0], [0], [1], [0, 0, 1, 1], [], []>} : vector<64x8xf32>, vector<8x64xf32>, vector<64x64xf32> -> vector<64x64xf32>
    %cst_17 = arith.constant dense<0xFF800000> : vector<64xf32>
    %39 = vector.multi_reduction <maximumf>, %38, %cst_17 [1] : vector<64x64xf32> to vector<64xf32>
    %40 = vector.shape_cast %39 : vector<64xf32> to vector<64x1xf32>
    %41 = vector.broadcast %40 : vector<64x1xf32> to vector<64x64xf32>
    %42 = arith.subf %38, %41 : vector<64x64xf32>
    %43 = math.exp %42 : vector<64x64xf32>
    %cst_18 = arith.constant dense<0.000000e+00> : vector<64xf32>
    %44 = vector.multi_reduction <add>, %43, %cst_18 [1] : vector<64x64xf32> to vector<64xf32>
    %45 = vector.shape_cast %44 : vector<64xf32> to vector<64x1xf32>
    "tpu.trace_start"() <{level = 10 : i32, message = "ij,dj->id"}> : () -> ()
    %cst_19 = arith.constant dense<0.000000e+00> : vector<64x8xf32>
    %46 = tpu.matmul %43, %36, %cst_19 {dimension_numbers = #tpu.dot_dimension_numbers<[1], [1], [0], [0], [0, 0, 1, 0], [], []>} : vector<64x64xf32>, vector<8x64xf32>, vector<64x8xf32> -> vector<64x8xf32>
    "tpu.trace_stop"() : () -> ()
    %47 = tpu.reciprocal %45 : vector<64x1xf32> -> vector<64x1xf32>
    %48 = vector.broadcast %47 : vector<64x1xf32> to vector<64x8xf32>
    %49 = arith.mulf %46, %48 : vector<64x8xf32>
    %50 = vector.extract_strided_slice %4 {offsets = [0, 8], sizes = [1, 8], strides = [1, 1]} : vector<1x32xf32> to vector<1x8xf32>
    %51 = vector.broadcast %50 : vector<1x8xf32> to vector<64x8xf32>
    %52 = arith.addf %49, %51 : vector<64x8xf32>
    %c0_20 = arith.constant 0 : index
    %c1 = arith.constant 1 : index
    %c0_21 = arith.constant 0 : index
    %c0_22 = arith.constant 0 : index
    %53 = vector.load %arg5[%c0_20, %c1, %c0_21, %c0_22] : memref<2x4x64x8xf32, #tpu.memory_space<vmem>>, vector<1x1x64x8xf32>
    %54 = vector.shape_cast %53 : vector<1x1x64x8xf32> to vector<64x8xf32>
    %55 = vector.shape_cast %52 : vector<64x8xf32> to vector<1x1x64x8xf32>
    tpu.vector_store %arg5[%c0_20, %c1, %c0_21, %c0_22], %55 {strides = array<i32>} : memref<2x4x64x8xf32, #tpu.memory_space<vmem>>, vector<1x1x64x8xf32>,
    %56 = vector.extract_strided_slice %7 {offsets = [48, 0], sizes = [8, 64], strides = [1, 1]} : vector<96x64xf32> to vector<8x64xf32>
    %57 = arith.addf %56, %1 : vector<8x64xf32>
    %58 = vector.extract_strided_slice %7 {offsets = [80, 0], sizes = [8, 64], strides = [1, 1]} : vector<96x64xf32> to vector<8x64xf32>
    %59 = vector.extract_strided_slice %11 {offsets = [0, 16], sizes = [64, 8], strides = [1, 1]} : vector<64x32xf32> to vector<64x8xf32>
    %cst_23 = arith.constant dense<0.000000e+00> : vector<64x64xf32>
    %60 = tpu.matmul %59, %57, %cst_23 {dimension_numbers = #tpu.dot_dimension_numbers<[1], [0], [0], [1], [0, 0, 1, 1], [], []>} : vector<64x8xf32>, vector<8x64xf32>, vector<64x64xf32> -> vector<64x64xf32>
    %cst_24 = arith.constant dense<0xFF800000> : vector<64xf32>
    %61 = vector.multi_reduction <maximumf>, %60, %cst_24 [1] : vector<64x64xf32> to vector<64xf32>
    %62 = vector.shape_cast %61 : vector<64xf32> to vector<64x1xf32>
    %63 = vector.broadcast %62 : vector<64x1xf32> to vector<64x64xf32>
    %64 = arith.subf %60, %63 : vector<64x64xf32>
    %65 = math.exp %64 : vector<64x64xf32>
    %cst_25 = arith.constant dense<0.000000e+00> : vector<64xf32>
    %66 = vector.multi_reduction <add>, %65, %cst_25 [1] : vector<64x64xf32> to vector<64xf32>
    %67 = vector.shape_cast %66 : vector<64xf32> to vector<64x1xf32>
    "tpu.trace_start"() <{level = 10 : i32, message = "ij,dj->id"}> : () -> ()
    %cst_26 = arith.constant dense<0.000000e+00> : vector<64x8xf32>
    %68 = tpu.matmul %65, %58, %cst_26 {dimension_numbers = #tpu.dot_dimension_numbers<[1], [1], [0], [0], [0, 0, 1, 0], [], []>} : vector<64x64xf32>, vector<8x64xf32>, vector<64x8xf32> -> vector<64x8xf32>
    "tpu.trace_stop"() : () -> ()
    %69 = tpu.reciprocal %67 : vector<64x1xf32> -> vector<64x1xf32>
    %70 = vector.broadcast %69 : vector<64x1xf32> to vector<64x8xf32>
    %71 = arith.mulf %68, %70 : vector<64x8xf32>
    %72 = vector.extract_strided_slice %4 {offsets = [0, 16], sizes = [1, 8], strides = [1, 1]} : vector<1x32xf32> to vector<1x8xf32>
    %73 = vector.broadcast %72 : vector<1x8xf32> to vector<64x8xf32>
    %74 = arith.addf %71, %73 : vector<64x8xf32>
    %c0_27 = arith.constant 0 : index
    %c2 = arith.constant 2 : index
    %c0_28 = arith.constant 0 : index
    %c0_29 = arith.constant 0 : index
    %75 = vector.load %arg5[%c0_27, %c2, %c0_28, %c0_29] : memref<2x4x64x8xf32, #tpu.memory_space<vmem>>, vector<1x1x64x8xf32>
    %76 = vector.shape_cast %75 : vector<1x1x64x8xf32> to vector<64x8xf32>
    %77 = vector.shape_cast %74 : vector<64x8xf32> to vector<1x1x64x8xf32>
    tpu.vector_store %arg5[%c0_27, %c2, %c0_28, %c0_29], %77 {strides = array<i32>} : memref<2x4x64x8xf32, #tpu.memory_space<vmem>>, vector<1x1x64x8xf32>,
    %78 = vector.extract_strided_slice %7 {offsets = [56, 0], sizes = [8, 64], strides = [1, 1]} : vector<96x64xf32> to vector<8x64xf32>
    %79 = arith.addf %78, %1 : vector<8x64xf32>
    %80 = vector.extract_strided_slice %7 {offsets = [88, 0], sizes = [8, 64], strides = [1, 1]} : vector<96x64xf32> to vector<8x64xf32>
    %81 = vector.extract_strided_slice %11 {offsets = [0, 24], sizes = [64, 8], strides = [1, 1]} : vector<64x32xf32> to vector<64x8xf32>
    %cst_30 = arith.constant dense<0.000000e+00> : vector<64x64xf32>
    %82 = tpu.matmul %81, %79, %cst_30 {dimension_numbers = #tpu.dot_dimension_numbers<[1], [0], [0], [1], [0, 0, 1, 1], [], []>} : vector<64x8xf32>, vector<8x64xf32>, vector<64x64xf32> -> vector<64x64xf32>
    %cst_31 = arith.constant dense<0xFF800000> : vector<64xf32>
    %83 = vector.multi_reduction <maximumf>, %82, %cst_31 [1] : vector<64x64xf32> to vector<64xf32>
    %84 = vector.shape_cast %83 : vector<64xf32> to vector<64x1xf32>
    %85 = vector.broadcast %84 : vector<64x1xf32> to vector<64x64xf32>
    %86 = arith.subf %82, %85 : vector<64x64xf32>
    %87 = math.exp %86 : vector<64x64xf32>
    %cst_32 = arith.constant dense<0.000000e+00> : vector<64xf32>
    %88 = vector.multi_reduction <add>, %87, %cst_32 [1] : vector<64x64xf32> to vector<64xf32>
    %89 = vector.shape_cast %88 : vector<64xf32> to vector<64x1xf32>
    "tpu.trace_start"() <{level = 10 : i32, message = "ij,dj->id"}> : () -> ()
    %cst_33 = arith.constant dense<0.000000e+00> : vector<64x8xf32>
    %90 = tpu.matmul %87, %80, %cst_33 {dimension_numbers = #tpu.dot_dimension_numbers<[1], [1], [0], [0], [0, 0, 1, 0], [], []>} : vector<64x64xf32>, vector<8x64xf32>, vector<64x8xf32> -> vector<64x8xf32>
    "tpu.trace_stop"() : () -> ()
    %91 = tpu.reciprocal %89 : vector<64x1xf32> -> vector<64x1xf32>
    %92 = vector.broadcast %91 : vector<64x1xf32> to vector<64x8xf32>
    %93 = arith.mulf %90, %92 : vector<64x8xf32>
    %94 = vector.extract_strided_slice %4 {offsets = [0, 24], sizes = [1, 8], strides = [1, 1]} : vector<1x32xf32> to vector<1x8xf32>
    %95 = vector.broadcast %94 : vector<1x8xf32> to vector<64x8xf32>
    %96 = arith.addf %93, %95 : vector<64x8xf32>
    %c0_34 = arith.constant 0 : index
    %c3 = arith.constant 3 : index
    %c0_35 = arith.constant 0 : index
    %c0_36 = arith.constant 0 : index
    %97 = vector.load %arg5[%c0_34, %c3, %c0_35, %c0_36] : memref<2x4x64x8xf32, #tpu.memory_space<vmem>>, vector<1x1x64x8xf32>
    %98 = vector.shape_cast %97 : vector<1x1x64x8xf32> to vector<64x8xf32>
    %99 = vector.shape_cast %96 : vector<64x8xf32> to vector<1x1x64x8xf32>
    tpu.vector_store %arg5[%c0_34, %c3, %c0_35, %c0_36], %99 {strides = array<i32>} : memref<2x4x64x8xf32, #tpu.memory_space<vmem>>, vector<1x1x64x8xf32>,
    %c1_37 = arith.constant 1 : index
    %c0_38 = arith.constant 0 : index
    %c0_39 = arith.constant 0 : index
    %100 = vector.load %arg1[%c1_37, %c0_38, %c0_39] : memref<2x32x64xf32, #tpu.memory_space<vmem>>, vector<1x32x64xf32>
    %101 = vector.shape_cast %100 : vector<1x32x64xf32> to vector<32x64xf32>
    %cst_40 = arith.constant dense<0.000000e+00> : vector<96x64xf32>
    %102 = tpu.matmul %0, %101, %cst_40 {dimension_numbers = #tpu.dot_dimension_numbers<[1], [0], [0], [1], [0, 0, 1, 1], [], []>} : vector<96x32xf32>, vector<32x64xf32>, vector<96x64xf32> -> vector<96x64xf32>
    %103 = vector.extract_strided_slice %102 {offsets = [0, 0], sizes = [32, 64], strides = [1, 1]} : vector<96x64xf32> to vector<32x64xf32>
    %104 = tpu.transpose %103, [1, 0] : vector<32x64xf32> -> vector<64x32xf32>
    %105 = vector.broadcast %3 : vector<1x32xf32> to vector<64x32xf32>
    %106 = arith.addf %104, %105 : vector<64x32xf32>
    %107 = vector.extract_strided_slice %102 {offsets = [32, 0], sizes = [8, 64], strides = [1, 1]} : vector<96x64xf32> to vector<8x64xf32>
    %108 = arith.addf %107, %1 : vector<8x64xf32>
    %109 = vector.extract_strided_slice %102 {offsets = [64, 0], sizes = [8, 64], strides = [1, 1]} : vector<96x64xf32> to vector<8x64xf32>
    %110 = vector.extract_strided_slice %106 {offsets = [0, 0], sizes = [64, 8], strides = [1, 1]} : vector<64x32xf32> to vector<64x8xf32>
    %cst_41 = arith.constant dense<0.000000e+00> : vector<64x64xf32>
    %111 = tpu.matmul %110, %108, %cst_41 {dimension_numbers = #tpu.dot_dimension_numbers<[1], [0], [0], [1], [0, 0, 1, 1], [], []>} : vector<64x8xf32>, vector<8x64xf32>, vector<64x64xf32> -> vector<64x64xf32>
    %cst_42 = arith.constant dense<0xFF800000> : vector<64xf32>
    %112 = vector.multi_reduction <maximumf>, %111, %cst_42 [1] : vector<64x64xf32> to vector<64xf32>
    %113 = vector.shape_cast %112 : vector<64xf32> to vector<64x1xf32>
    %114 = vector.broadcast %113 : vector<64x1xf32> to vector<64x64xf32>
    %115 = arith.subf %111, %114 : vector<64x64xf32>
    %116 = math.exp %115 : vector<64x64xf32>
    %cst_43 = arith.constant dense<0.000000e+00> : vector<64xf32>
    %117 = vector.multi_reduction <add>, %116, %cst_43 [1] : vector<64x64xf32> to vector<64xf32>
    %118 = vector.shape_cast %117 : vector<64xf32> to vector<64x1xf32>
    "tpu.trace_start"() <{level = 10 : i32, message = "ij,dj->id"}> : () -> ()
    %cst_44 = arith.constant dense<0.000000e+00> : vector<64x8xf32>
    %119 = tpu.matmul %116, %109, %cst_44 {dimension_numbers = #tpu.dot_dimension_numbers<[1], [1], [0], [0], [0, 0, 1, 0], [], []>} : vector<64x64xf32>, vector<8x64xf32>, vector<64x8xf32> -> vector<64x8xf32>
    "tpu.trace_stop"() : () -> ()
    %120 = tpu.reciprocal %118 : vector<64x1xf32> -> vector<64x1xf32>
    %121 = vector.broadcast %120 : vector<64x1xf32> to vector<64x8xf32>
    %122 = arith.mulf %119, %121 : vector<64x8xf32>
    %123 = vector.extract_strided_slice %4 {offsets = [0, 0], sizes = [1, 8], strides = [1, 1]} : vector<1x32xf32> to vector<1x8xf32>
    %124 = vector.broadcast %123 : vector<1x8xf32> to vector<64x8xf32>
    %125 = arith.addf %122, %124 : vector<64x8xf32>
    %c1_45 = arith.constant 1 : index
    %c0_46 = arith.constant 0 : index
    %c0_47 = arith.constant 0 : index
    %c0_48 = arith.constant 0 : index
    %126 = vector.load %arg5[%c1_45, %c0_46, %c0_47, %c0_48] : memref<2x4x64x8xf32, #tpu.memory_space<vmem>>, vector<1x1x64x8xf32>
    %127 = vector.shape_cast %126 : vector<1x1x64x8xf32> to vector<64x8xf32>
    %128 = vector.shape_cast %125 : vector<64x8xf32> to vector<1x1x64x8xf32>
    tpu.vector_store %arg5[%c1_45, %c0_46, %c0_47, %c0_48], %128 {strides = array<i32>} : memref<2x4x64x8xf32, #tpu.memory_space<vmem>>, vector<1x1x64x8xf32>,
    %129 = vector.extract_strided_slice %102 {offsets = [40, 0], sizes = [8, 64], strides = [1, 1]} : vector<96x64xf32> to vector<8x64xf32>
    %130 = arith.addf %129, %1 : vector<8x64xf32>
    %131 = vector.extract_strided_slice %102 {offsets = [72, 0], sizes = [8, 64], strides = [1, 1]} : vector<96x64xf32> to vector<8x64xf32>
    %132 = vector.extract_strided_slice %106 {offsets = [0, 8], sizes = [64, 8], strides = [1, 1]} : vector<64x32xf32> to vector<64x8xf32>
    %cst_49 = arith.constant dense<0.000000e+00> : vector<64x64xf32>
    %133 = tpu.matmul %132, %130, %cst_49 {dimension_numbers = #tpu.dot_dimension_numbers<[1], [0], [0], [1], [0, 0, 1, 1], [], []>} : vector<64x8xf32>, vector<8x64xf32>, vector<64x64xf32> -> vector<64x64xf32>
    %cst_50 = arith.constant dense<0xFF800000> : vector<64xf32>
    %134 = vector.multi_reduction <maximumf>, %133, %cst_50 [1] : vector<64x64xf32> to vector<64xf32>
    %135 = vector.shape_cast %134 : vector<64xf32> to vector<64x1xf32>
    %136 = vector.broadcast %135 : vector<64x1xf32> to vector<64x64xf32>
    %137 = arith.subf %133, %136 : vector<64x64xf32>
    %138 = math.exp %137 : vector<64x64xf32>
    %cst_51 = arith.constant dense<0.000000e+00> : vector<64xf32>
    %139 = vector.multi_reduction <add>, %138, %cst_51 [1] : vector<64x64xf32> to vector<64xf32>
    %140 = vector.shape_cast %139 : vector<64xf32> to vector<64x1xf32>
    "tpu.trace_start"() <{level = 10 : i32, message = "ij,dj->id"}> : () -> ()
    %cst_52 = arith.constant dense<0.000000e+00> : vector<64x8xf32>
    %141 = tpu.matmul %138, %131, %cst_52 {dimension_numbers = #tpu.dot_dimension_numbers<[1], [1], [0], [0], [0, 0, 1, 0], [], []>} : vector<64x64xf32>, vector<8x64xf32>, vector<64x8xf32> -> vector<64x8xf32>
    "tpu.trace_stop"() : () -> ()
    %142 = tpu.reciprocal %140 : vector<64x1xf32> -> vector<64x1xf32>
    %143 = vector.broadcast %142 : vector<64x1xf32> to vector<64x8xf32>
    %144 = arith.mulf %141, %143 : vector<64x8xf32>
    %145 = vector.extract_strided_slice %4 {offsets = [0, 8], sizes = [1, 8], strides = [1, 1]} : vector<1x32xf32> to vector<1x8xf32>
    %146 = vector.broadcast %145 : vector<1x8xf32> to vector<64x8xf32>
    %147 = arith.addf %144, %146 : vector<64x8xf32>
    %c1_53 = arith.constant 1 : index
    %c1_54 = arith.constant 1 : index
    %c0_55 = arith.constant 0 : index
    %c0_56 = arith.constant 0 : index
    %148 = vector.load %arg5[%c1_53, %c1_54, %c0_55, %c0_56] : memref<2x4x64x8xf32, #tpu.memory_space<vmem>>, vector<1x1x64x8xf32>
    %149 = vector.shape_cast %148 : vector<1x1x64x8xf32> to vector<64x8xf32>
    %150 = vector.shape_cast %147 : vector<64x8xf32> to vector<1x1x64x8xf32>
    tpu.vector_store %arg5[%c1_53, %c1_54, %c0_55, %c0_56], %150 {strides = array<i32>} : memref<2x4x64x8xf32, #tpu.memory_space<vmem>>, vector<1x1x64x8xf32>,
    %151 = vector.extract_strided_slice %102 {offsets = [48, 0], sizes = [8, 64], strides = [1, 1]} : vector<96x64xf32> to vector<8x64xf32>
    %152 = arith.addf %151, %1 : vector<8x64xf32>
    %153 = vector.extract_strided_slice %102 {offsets = [80, 0], sizes = [8, 64], strides = [1, 1]} : vector<96x64xf32> to vector<8x64xf32>
    %154 = vector.extract_strided_slice %106 {offsets = [0, 16], sizes = [64, 8], strides = [1, 1]} : vector<64x32xf32> to vector<64x8xf32>
    %cst_57 = arith.constant dense<0.000000e+00> : vector<64x64xf32>
    %155 = tpu.matmul %154, %152, %cst_57 {dimension_numbers = #tpu.dot_dimension_numbers<[1], [0], [0], [1], [0, 0, 1, 1], [], []>} : vector<64x8xf32>, vector<8x64xf32>, vector<64x64xf32> -> vector<64x64xf32>
    %cst_58 = arith.constant dense<0xFF800000> : vector<64xf32>
    %156 = vector.multi_reduction <maximumf>, %155, %cst_58 [1] : vector<64x64xf32> to vector<64xf32>
    %157 = vector.shape_cast %156 : vector<64xf32> to vector<64x1xf32>
    %158 = vector.broadcast %157 : vector<64x1xf32> to vector<64x64xf32>
    %159 = arith.subf %155, %158 : vector<64x64xf32>
    %160 = math.exp %159 : vector<64x64xf32>
    %cst_59 = arith.constant dense<0.000000e+00> : vector<64xf32>
    %161 = vector.multi_reduction <add>, %160, %cst_59 [1] : vector<64x64xf32> to vector<64xf32>
    %162 = vector.shape_cast %161 : vector<64xf32> to vector<64x1xf32>
    "tpu.trace_start"() <{level = 10 : i32, message = "ij,dj->id"}> : () -> ()
    %cst_60 = arith.constant dense<0.000000e+00> : vector<64x8xf32>
    %163 = tpu.matmul %160, %153, %cst_60 {dimension_numbers = #tpu.dot_dimension_numbers<[1], [1], [0], [0], [0, 0, 1, 0], [], []>} : vector<64x64xf32>, vector<8x64xf32>, vector<64x8xf32> -> vector<64x8xf32>
    "tpu.trace_stop"() : () -> ()
    %164 = tpu.reciprocal %162 : vector<64x1xf32> -> vector<64x1xf32>
    %165 = vector.broadcast %164 : vector<64x1xf32> to vector<64x8xf32>
    %166 = arith.mulf %163, %165 : vector<64x8xf32>
    %167 = vector.extract_strided_slice %4 {offsets = [0, 16], sizes = [1, 8], strides = [1, 1]} : vector<1x32xf32> to vector<1x8xf32>
    %168 = vector.broadcast %167 : vector<1x8xf32> to vector<64x8xf32>
    %169 = arith.addf %166, %168 : vector<64x8xf32>
    %c1_61 = arith.constant 1 : index
    %c2_62 = arith.constant 2 : index
    %c0_63 = arith.constant 0 : index
    %c0_64 = arith.constant 0 : index
    %170 = vector.load %arg5[%c1_61, %c2_62, %c0_63, %c0_64] : memref<2x4x64x8xf32, #tpu.memory_space<vmem>>, vector<1x1x64x8xf32>
    %171 = vector.shape_cast %170 : vector<1x1x64x8xf32> to vector<64x8xf32>
    %172 = vector.shape_cast %169 : vector<64x8xf32> to vector<1x1x64x8xf32>
    tpu.vector_store %arg5[%c1_61, %c2_62, %c0_63, %c0_64], %172 {strides = array<i32>} : memref<2x4x64x8xf32, #tpu.memory_space<vmem>>, vector<1x1x64x8xf32>,
    %173 = vector.extract_strided_slice %102 {offsets = [56, 0], sizes = [8, 64], strides = [1, 1]} : vector<96x64xf32> to vector<8x64xf32>
    %174 = arith.addf %173, %1 : vector<8x64xf32>
    %175 = vector.extract_strided_slice %102 {offsets = [88, 0], sizes = [8, 64], strides = [1, 1]} : vector<96x64xf32> to vector<8x64xf32>
    %176 = vector.extract_strided_slice %106 {offsets = [0, 24], sizes = [64, 8], strides = [1, 1]} : vector<64x32xf32> to vector<64x8xf32>
    %cst_65 = arith.constant dense<0.000000e+00> : vector<64x64xf32>
    %177 = tpu.matmul %176, %174, %cst_65 {dimension_numbers = #tpu.dot_dimension_numbers<[1], [0], [0], [1], [0, 0, 1, 1], [], []>} : vector<64x8xf32>, vector<8x64xf32>, vector<64x64xf32> -> vector<64x64xf32>
    %cst_66 = arith.constant dense<0xFF800000> : vector<64xf32>
    %178 = vector.multi_reduction <maximumf>, %177, %cst_66 [1] : vector<64x64xf32> to vector<64xf32>
    %179 = vector.shape_cast %178 : vector<64xf32> to vector<64x1xf32>
    %180 = vector.broadcast %179 : vector<64x1xf32> to vector<64x64xf32>
    %181 = arith.subf %177, %180 : vector<64x64xf32>
    %182 = math.exp %181 : vector<64x64xf32>
    %cst_67 = arith.constant dense<0.000000e+00> : vector<64xf32>
    %183 = vector.multi_reduction <add>, %182, %cst_67 [1] : vector<64x64xf32> to vector<64xf32>
    %184 = vector.shape_cast %183 : vector<64xf32> to vector<64x1xf32>
    "tpu.trace_start"() <{level = 10 : i32, message = "ij,dj->id"}> : () -> ()
    %cst_68 = arith.constant dense<0.000000e+00> : vector<64x8xf32>
    %185 = tpu.matmul %182, %175, %cst_68 {dimension_numbers = #tpu.dot_dimension_numbers<[1], [1], [0], [0], [0, 0, 1, 0], [], []>} : vector<64x64xf32>, vector<8x64xf32>, vector<64x8xf32> -> vector<64x8xf32>
    "tpu.trace_stop"() : () -> ()
    %186 = tpu.reciprocal %184 : vector<64x1xf32> -> vector<64x1xf32>
    %187 = vector.broadcast %186 : vector<64x1xf32> to vector<64x8xf32>
    %188 = arith.mulf %185, %187 : vector<64x8xf32>
    %189 = vector.extract_strided_slice %4 {offsets = [0, 24], sizes = [1, 8], strides = [1, 1]} : vector<1x32xf32> to vector<1x8xf32>
    %190 = vector.broadcast %189 : vector<1x8xf32> to vector<64x8xf32>
    %191 = arith.addf %188, %190 : vector<64x8xf32>
    %c1_69 = arith.constant 1 : index
    %c3_70 = arith.constant 3 : index
    %c0_71 = arith.constant 0 : index
    %c0_72 = arith.constant 0 : index
    %192 = vector.load %arg5[%c1_69, %c3_70, %c0_71, %c0_72] : memref<2x4x64x8xf32, #tpu.memory_space<vmem>>, vector<1x1x64x8xf32>
    %193 = vector.shape_cast %192 : vector<1x1x64x8xf32> to vector<64x8xf32>
    %194 = vector.shape_cast %191 : vector<64x8xf32> to vector<1x1x64x8xf32>
    tpu.vector_store %arg5[%c1_69, %c3_70, %c0_71, %c0_72], %194 {strides = array<i32>} : memref<2x4x64x8xf32, #tpu.memory_space<vmem>>, vector<1x1x64x8xf32>,
    return
  }
  func.func @transform_0(%arg0: i32) -> (i32, i32, i32) {
    %c0_i32 = arith.constant 0 : i32
    %c0_i32_0 = arith.constant 0 : i32
    %c0_i32_1 = arith.constant 0 : i32
    return %arg0, %c0_i32, %c0_i32_0 : i32, i32, i32
  }
  func.func @transform_1(%arg0: i32) -> (i32, i32) {
    %c0_i32 = arith.constant 0 : i32
    %c0_i32_0 = arith.constant 0 : i32
    %c0_i32_1 = arith.constant 0 : i32
    return %c0_i32, %c0_i32_0 : i32, i32
  }
  func.func @transform_2(%arg0: i32) -> (i32, i32) {
    %c0_i32 = arith.constant 0 : i32
    %c0_i32_0 = arith.constant 0 : i32
    %c0_i32_1 = arith.constant 0 : i32
    return %c0_i32, %c0_i32_0 : i32, i32
  }
  func.func @transform_3(%arg0: i32) -> (i32, i32) {
    %c0_i32 = arith.constant 0 : i32
    %c0_i32_0 = arith.constant 0 : i32
    %c0_i32_1 = arith.constant 0 : i32
    return %c0_i32, %c0_i32_0 : i32, i32
  }
  func.func @transform_4(%arg0: i32) -> (i32, i32, i32, i32) {
    %c0_i32 = arith.constant 0 : i32
    %c0_i32_0 = arith.constant 0 : i32
    %c0_i32_1 = arith.constant 0 : i32
    %c0_i32_2 = arith.constant 0 : i32
    return %arg0, %c0_i32, %c0_i32_0, %c0_i32_1 : i32, i32, i32, i32
  }
}

</mosaic_0001>

<llo_original>
// kernel: tpu_custom_call.1
$region0: #{tpu_custom_call.1}
  #allocation0 [shape = 'u32[]', space=smem, size = 0x4, offset = 0x4, fixed_abs, tag = 'smem constant byte address 0x4 - core index']
  #allocation1 [shape = 'u32[144,128]{1,0:T(1,128)}', space=vmem, size = 0x12000, scoped, tag = 'internal scratch']
  %s0 = inlined_call_operand.vmem [shape: f32[2,32,64], index: 0, kind: input, shape index: {}]
  %s1 = inlined_call_operand.vmem [shape: f32[96,32], index: 1, kind: input, shape index: {}]
  %s2 = inlined_call_operand.vmem [shape: f32[2,32], index: 2, kind: input, shape index: {}]
  %s3 = inlined_call_operand.vmem [shape: f32[8,64], index: 3, kind: input, shape index: {}]
  %s4 = inlined_call_operand.vmem [shape: f32[2,4,64,8], index: 4, kind: output, shape index: {}]
  %s5 = sld [smem:[#allocation0]]
  $region26: #{tpu_custom_call.1} parent=0
    _
  %s7 = ssub.s32 1, %s5
  %s8 = scalar_select 0, %s7, %s5
  // Predicated region
  $region2: #{tpu_custom_call.1} parent=0 // pred_check
    _
  $region3: #{tpu_custom_call.1} parent=0 // pred_check_branch
    %10 = sbr.rel (0) target = $region5
  $region4: #{tpu_custom_call.1} parent=0 // pred_region
    _
  $region5: #{tpu_custom_call.1} parent=0 // pred_fallthru
    _
  // Predicated region
  $region6: #{tpu_custom_call.1} parent=0 // pred_check
    _
  $region7: #{tpu_custom_call.1} parent=0 // pred_check_branch
    %12 = sbr.rel (0) target = $region9
  $region8: #{tpu_custom_call.1} parent=0 // pred_region
    _
  $region9: #{tpu_custom_call.1} parent=0 // pred_fallthru
    _
  // Predicated region
  $region10: #{tpu_custom_call.1} parent=0 // pred_check
    _
  $region11: #{tpu_custom_call.1} parent=0 // pred_check_branch
    %14 = sbr.rel (0) target = $region13
  $region12: #{tpu_custom_call.1} parent=0 // pred_region
    _
  $region13: #{tpu_custom_call.1} parent=0 // pred_fallthru
    _
  // Predicated region
  $region14: #{tpu_custom_call.1} parent=0 // pred_check
    _
  $region15: #{tpu_custom_call.1} parent=0 // pred_check_branch
    %16 = sbr.rel (0) target = $region17
  $region16: #{tpu_custom_call.1} parent=0 // pred_region
    _
  $region17: #{tpu_custom_call.1} parent=0 // pred_fallthru
    _
  %v17 = vld [vmem:[%s1] sm:$0xff]
  %v18 = vld [vmem:[%s1 + $0x8] sm:$0xff]
  %v19 = vld [vmem:[%s1 + $0x10] sm:$0xff]
  %v20 = vld [vmem:[%s1 + $0x18] sm:$0xff]
  %v21 = vld [vmem:[%s1 + $0x20] sm:$0xff]
  %v22 = vld [vmem:[%s1 + $0x28] sm:$0xff]
  %v23 = vld [vmem:[%s1 + $0x30] sm:$0xff]
  %v24 = vld [vmem:[%s1 + $0x38] sm:$0xff]
  %v25 = vld [vmem:[%s1 + $0x40] sm:$0xff]
  %v26 = vld [vmem:[%s1 + $0x48] sm:$0xff]
  %v27 = vld [vmem:[%s1 + $0x50] sm:$0xff]
  %v28 = vld [vmem:[%s1 + $0x58] sm:$0xff]
  %v29 = vld [vmem:[%s3] sm:$0xff]
  %v30 = vld [vmem:[%s2] sm:$0x3]
  %v31 = vld [vmem:[%s0] sm:$0xff]
  %v32 = vld [vmem:[%s0 + $0x8] sm:$0xff]
  %v33 = vld [vmem:[%s0 + $0x10] sm:$0xff]
  %v34 = vld [vmem:[%s0 + $0x18] sm:$0xff]
  %vm35 = vcmask 261120
  %v37 = vsel %vm35, %v17, 0
  %v40 = vsel %vm35, %v18, 0
  %v43 = vsel %vm35, %v19, 0
  %v46 = vsel %vm35, %v20, 0
  %v49 = vsel %vm35, %v21, 0
  %v52 = vsel %vm35, %v22, 0
  %v55 = vsel %vm35, %v23, 0
  %v58 = vsel %vm35, %v24, 0
  %v61 = vsel %vm35, %v25, 0
  %v64 = vsel %vm35, %v26, 0
  %v67 = vsel %vm35, %v27, 0
  %v70 = vsel %vm35, %v28, 0
  %72 = vmatprep.subr.mxu0 0.0
  %73 = vmatpush1.msra.mxu0 0.0
  %74 = vmatprep.subr.mxu0 0.0
  %75 = vmatpush1.msra.mxu0 0.0
  %76 = vmatprep.subr.mxu0 0.0
  %77 = vmatpush1.msra.mxu0 0.0
  %78 = vmatprep.subr.mxu0 0.0
  %79 = vmatpush1.msra.mxu0 0.0
  %80 = vmatprep.subr.mxu0 0.0
  %81 = vmatpush1.msra.mxu0 0.0
  %82 = vmatprep.subr.mxu0 0.0
  %83 = vmatpush1.msra.mxu0 0.0
  %84 = vmatprep.subr.mxu0 0.0
  %85 = vmatpush1.msra.mxu0 0.0
  %86 = vmatprep.subr.mxu0 0.0
  %87 = vmatpush1.msra.mxu0 0.0
  %88 = vmatprep.subr.mxu0 0.0
  %89 = vmatpush1.msra.mxu0 0.0
  %90 = vmatprep.subr.mxu0 0.0
  %91 = vmatpush1.msra.mxu0 0.0
  %92 = vmatprep.subr.mxu0 0.0
  %93 = vmatpush1.msra.mxu0 0.0
  %94 = vmatprep.subr.mxu0 0.0
  %95 = vmatpush1.msra.mxu0 0.0
  %96 = vmatprep.subr.mxu0 0.0
  %97 = vmatpush1.msra.mxu0 %v34
  %98 = vmatprep.subr.mxu0 0.0
  %99 = vmatpush1.msra.mxu0 %v33
  %100 = vmatprep.subr.mxu0 0.0
  %101 = vmatpush1.msra.mxu0 %v32
  %102 = vmatprep.subr.mxu0 0.0
  %103 = vmatpush1.msra.mxu0 %v31
  %104 = vmatprep.subr.mxu0 0.0
  %105 = vmatpush2.msra.mxu0 0.0
  %106 = vmatprep.subr.mxu0 0.0
  %107 = vmatpush2.msra.mxu0 0.0
  %108 = vmatprep.subr.mxu0 0.0
  %109 = vmatpush2.msra.mxu0 0.0
  %110 = vmatprep.subr.mxu0 0.0
  %111 = vmatpush2.msra.mxu0 0.0
  %112 = vmatprep.subr.mxu0 0.0
  %113 = vmatpush2.msra.mxu0 0.0
  %114 = vmatprep.subr.mxu0 0.0
  %115 = vmatpush2.msra.mxu0 0.0
  %116 = vmatprep.subr.mxu0 0.0
  %117 = vmatpush2.msra.mxu0 0.0
  %118 = vmatprep.subr.mxu0 0.0
  %119 = vmatpush2.msra.mxu0 0.0
  %120 = vmatprep.subr.mxu0 0.0
  %121 = vmatpush2.msra.mxu0 0.0
  %122 = vmatprep.subr.mxu0 0.0
  %123 = vmatpush2.msra.mxu0 0.0
  %124 = vmatprep.subr.mxu0 0.0
  %125 = vmatpush2.msra.mxu0 0.0
  %126 = vmatprep.subr.mxu0 0.0
  %127 = vmatpush2.msra.mxu0 0.0
  %128 = vmatprep.subr.mxu0 0.0
  %129 = vmatpush2.msra.mxu0 0.0
  %130 = vmatprep.subr.mxu0 0.0
  %131 = vmatpush2.msra.mxu0 0.0
  %132 = vmatprep.subr.mxu0 0.0
  %133 = vmatpush2.msra.mxu0 0.0
  %134 = vmatprep.subr.mxu0 0.0
  %135 = vmatpush2.msra.mxu0 0.0
  %136 = vmatprep.mubr.f32.mxu0 0.0
  %137 = vmatmul.mubr.f32.gmra.mxu0 %v37
  %v138 = vpop.f32.mrf.mxu0
  %v139 = vadd.f32 0.0, %v138
  %v140 = vpop.f32.mrf.mxu0
  %141 = vmatprep.mubr.f32.mxu0 0.0
  %142 = vmatmul.mubr.f32.gmra.mxu0 %v40
  %v143 = vpop.f32.mrf.mxu0
  %v144 = vadd.f32 0.0, %v143
  %v145 = vpop.f32.mrf.mxu0
  %146 = vmatprep.mubr.f32.mxu0 0.0
  %147 = vmatmul.mubr.f32.gmra.mxu0 %v43
  %v148 = vpop.f32.mrf.mxu0
  %v149 = vadd.f32 0.0, %v148
  %v150 = vpop.f32.mrf.mxu0
  %151 = vmatprep.mubr.f32.mxu0 0.0
  %152 = vmatmul.mubr.f32.gmra.mxu0 %v46
  %v153 = vpop.f32.mrf.mxu0
  %v154 = vadd.f32 0.0, %v153
  %v155 = vpop.f32.mrf.mxu0
  %156 = vmatprep.mubr.f32.mxu0 0.0
  %157 = vmatmul.mubr.f32.gmra.mxu0 %v49
  %v158 = vpop.f32.mrf.mxu0
  %v159 = vadd.f32 0.0, %v158
  %v160 = vpop.f32.mrf.mxu0
  %161 = vmatprep.mubr.f32.mxu0 0.0
  %162 = vmatmul.mubr.f32.gmra.mxu0 %v52
  %v163 = vpop.f32.mrf.mxu0
  %v164 = vadd.f32 0.0, %v163
  %v165 = vpop.f32.mrf.mxu0
  %166 = vmatprep.mubr.f32.mxu0 0.0
  %167 = vmatmul.mubr.f32.gmra.mxu0 %v55
  %v168 = vpop.f32.mrf.mxu0
  %v169 = vadd.f32 0.0, %v168
  %v170 = vpop.f32.mrf.mxu0
  %171 = vmatprep.mubr.f32.mxu0 0.0
  %172 = vmatmul.mubr.f32.gmra.mxu0 %v58
  %v173 = vpop.f32.mrf.mxu0
  %v174 = vadd.f32 0.0, %v173
  %v175 = vpop.f32.mrf.mxu0
  %176 = vmatprep.mubr.f32.mxu0 0.0
  %177 = vmatmul.mubr.f32.gmra.mxu0 %v61
  %v178 = vpop.f32.mrf.mxu0
  %v179 = vadd.f32 0.0, %v178
  %v180 = vpop.f32.mrf.mxu0
  %181 = vmatprep.mubr.f32.mxu0 0.0
  %182 = vmatmul.mubr.f32.gmra.mxu0 %v64
  %v183 = vpop.f32.mrf.mxu0
  %v184 = vadd.f32 0.0, %v183
  %v185 = vpop.f32.mrf.mxu0
  %186 = vmatprep.mubr.f32.mxu0 0.0
  %187 = vmatmul.mubr.f32.gmra.mxu0 %v67
  %v188 = vpop.f32.mrf.mxu0
  %v189 = vadd.f32 0.0, %v188
  %v190 = vpop.f32.mrf.mxu0
  %191 = vmatprep.mubr.f32.mxu0 0.0
  %192 = vmatmul.mubr.f32.gmra.mxu0 %v70
  %v193 = vpop.f32.mrf.mxu0
  %v194 = vadd.f32 0.0, %v193
  %v195 = vpop.f32.mrf.mxu0
  %196 = vdwg.mxu0
  %197 = vxpose.xlu0.b32.start [1/16] %v139, 128
  %198 = vxpose.xlu0.b32.cont [2/16] %v144, 128
  %199 = vxpose.xlu0.b32.cont [3/16] %v149, 128
  %200 = vxpose.xlu0.b32.cont [4/16] %v154, 128
  %201 = vxpose.xlu0.b32.cont [5/16] 0.0, 128
  %202 = vxpose.xlu0.b32.cont [6/16] 0.0, 128
  %203 = vxpose.xlu0.b32.cont [7/16] 0.0, 128
  %204 = vxpose.xlu0.b32.cont [8/16] 0.0, 128
  %205 = vxpose.xlu0.b32.cont [9/16] 0.0, 128
  %206 = vxpose.xlu0.b32.cont [10/16] 0.0, 128
  %207 = vxpose.xlu0.b32.cont [11/16] 0.0, 128
  %208 = vxpose.xlu0.b32.cont [12/16] 0.0, 128
  %209 = vxpose.xlu0.b32.cont [13/16] 0.0, 128
  %210 = vxpose.xlu0.b32.cont [14/16] 0.0, 128
  %211 = vxpose.xlu0.b32.cont [15/16] 0.0, 128
  %212 = vxpose.xlu0.b32.end [16/16] 0.0, 128
  %v213 = vpop.trf.xlu0
  %v214 = vpop.trf.xlu0
  %v215 = vpop.trf.xlu0
  %v216 = vpop.trf.xlu0
  %v217 = vpop.trf.xlu0
  %v218 = vpop.trf.xlu0
  %v219 = vpop.trf.xlu0
  %v220 = vpop.trf.xlu0
  %v221 = vpop.trf.xlu0
  %v222 = vpop.trf.xlu0
  %v223 = vpop.trf.xlu0
  %v224 = vpop.trf.xlu0
  %v225 = vpop.trf.xlu0
  %v226 = vpop.trf.xlu0
  %v227 = vpop.trf.xlu0
  %v228 = vpop.trf.xlu0
  %v229 = vlaneseq
  %v230 = vshrl.u32 %v229, 7
  %v231 = vsub.s32 0, %v230
  %v232 = vrot.slane %v30, %v231
  %v233 = vadd.f32 %v213, %v232
  %v234 = vadd.f32 %v214, %v232
  %v235 = vadd.f32 %v215, %v232
  %v236 = vadd.f32 %v216, %v232
  %v237 = vadd.f32 %v217, %v232
  %v238 = vadd.f32 %v218, %v232
  %v239 = vadd.f32 %v219, %v232
  %v240 = vadd.f32 %v220, %v232
  %v241 = vadd.f32 %v159, %v29
  %vm242 = vcmask 64512
  %v244 = vsel %vm242, %v233, 0
  %v247 = vsel %vm242, %v234, 0
  %v250 = vsel %vm242, %v235, 0
  %v253 = vsel %vm242, %v236, 0
  %v256 = vsel %vm242, %v237, 0
  %v259 = vsel %vm242, %v238, 0
  %v262 = vsel %vm242, %v239, 0
  %v265 = vsel %vm242, %v240, 0
  %267 = vmatprep.subr.mxu0 0.0
  %268 = vmatpush1.msra.mxu0 0.0
  %269 = vmatprep.subr.mxu0 0.0
  %270 = vmatpush1.msra.mxu0 0.0
  %271 = vmatprep.subr.mxu0 0.0
  %272 = vmatpush1.msra.mxu0 0.0
  %273 = vmatprep.subr.mxu0 0.0
  %274 = vmatpush1.msra.mxu0 0.0
  %275 = vmatprep.subr.mxu0 0.0
  %276 = vmatpush1.msra.mxu0 0.0
  %277 = vmatprep.subr.mxu0 0.0
  %278 = vmatpush1.msra.mxu0 0.0
  %279 = vmatprep.subr.mxu0 0.0
  %280 = vmatpush1.msra.mxu0 0.0
  %281 = vmatprep.subr.mxu0 0.0
  %282 = vmatpush1.msra.mxu0 0.0
  %283 = vmatprep.subr.mxu0 0.0
  %284 = vmatpush1.msra.mxu0 0.0
  %285 = vmatprep.subr.mxu0 0.0
  %286 = vmatpush1.msra.mxu0 0.0
  %287 = vmatprep.subr.mxu0 0.0
  %288 = vmatpush1.msra.mxu0 0.0
  %289 = vmatprep.subr.mxu0 0.0
  %290 = vmatpush1.msra.mxu0 0.0
  %291 = vmatprep.subr.mxu0 0.0
  %292 = vmatpush1.msra.mxu0 0.0
  %293 = vmatprep.subr.mxu0 0.0
  %294 = vmatpush1.msra.mxu0 0.0
  %295 = vmatprep.subr.mxu0 0.0
  %296 = vmatpush1.msra.mxu0 0.0
  %297 = vmatprep.subr.mxu0 0.0
  %298 = vmatpush1.msra.mxu0 %v241
  %299 = vmatprep.subr.mxu0 0.0
  %300 = vmatpush2.msra.mxu0 0.0
  %301 = vmatprep.subr.mxu0 0.0
  %302 = vmatpush2.msra.mxu0 0.0
  %303 = vmatprep.subr.mxu0 0.0
  %304 = vmatpush2.msra.mxu0 0.0
  %305 = vmatprep.subr.mxu0 0.0
  %306 = vmatpush2.msra.mxu0 0.0
  %307 = vmatprep.subr.mxu0 0.0
  %308 = vmatpush2.msra.mxu0 0.0
  %309 = vmatprep.subr.mxu0 0.0
  %310 = vmatpush2.msra.mxu0 0.0
  %311 = vmatprep.subr.mxu0 0.0
  %312 = vmatpush2.msra.mxu0 0.0
  %313 = vmatprep.subr.mxu0 0.0
  %314 = vmatpush2.msra.mxu0 0.0
  %315 = vmatprep.subr.mxu0 0.0
  %316 = vmatpush2.msra.mxu0 0.0
  %317 = vmatprep.subr.mxu0 0.0
  %318 = vmatpush2.msra.mxu0 0.0
  %319 = vmatprep.subr.mxu0 0.0
  %320 = vmatpush2.msra.mxu0 0.0
  %321 = vmatprep.subr.mxu0 0.0
  %322 = vmatpush2.msra.mxu0 0.0
  %323 = vmatprep.subr.mxu0 0.0
  %324 = vmatpush2.msra.mxu0 0.0
  %325 = vmatprep.subr.mxu0 0.0
  %326 = vmatpush2.msra.mxu0 0.0
  %327 = vmatprep.subr.mxu0 0.0
  %328 = vmatpush2.msra.mxu0 0.0
  %329 = vmatprep.subr.mxu0 0.0
  %330 = vmatpush2.msra.mxu0 0.0
  %331 = vmatprep.mubr.f32.mxu0 0.0
  %332 = vmatmul.mubr.f32.gmra.mxu0 %v244
  %v333 = vpop.f32.mrf.mxu0
  %v334 = vadd.f32 0.0, %v333
  %v335 = vpop.f32.mrf.mxu0
  %336 = vmatprep.mubr.f32.mxu0 0.0
  %337 = vmatmul.mubr.f32.gmra.mxu0 %v247
  %v338 = vpop.f32.mrf.mxu0
  %v339 = vadd.f32 0.0, %v338
  %v340 = vpop.f32.mrf.mxu0
  %341 = vmatprep.mubr.f32.mxu0 0.0
  %342 = vmatmul.mubr.f32.gmra.mxu0 %v250
  %v343 = vpop.f32.mrf.mxu0
  %v344 = vadd.f32 0.0, %v343
  %v345 = vpop.f32.mrf.mxu0
  %346 = vmatprep.mubr.f32.mxu0 0.0
  %347 = vmatmul.mubr.f32.gmra.mxu0 %v253
  %v348 = vpop.f32.mrf.mxu0
  %v349 = vadd.f32 0.0, %v348
  %v350 = vpop.f32.mrf.mxu0
  %351 = vmatprep.mubr.f32.mxu0 0.0
  %352 = vmatmul.mubr.f32.gmra.mxu0 %v256
  %v353 = vpop.f32.mrf.mxu0
  %v354 = vadd.f32 0.0, %v353
  %v355 = vpop.f32.mrf.mxu0
  %356 = vmatprep.mubr.f32.mxu0 0.0
  %357 = vmatmul.mubr.f32.gmra.mxu0 %v259
  %v358 = vpop.f32.mrf.mxu0
  %v359 = vadd.f32 0.0, %v358
  %v360 = vpop.f32.mrf.mxu0
  %361 = vmatprep.mubr.f32.mxu0 0.0
  %362 = vmatmul.mubr.f32.gmra.mxu0 %v262
  %v363 = vpop.f32.mrf.mxu0
  %v364 = vadd.f32 0.0, %v363
  %v365 = vpop.f32.mrf.mxu0
  %366 = vmatprep.mubr.f32.mxu0 0.0
  %367 = vmatmul.mubr.f32.gmra.mxu0 %v265
  %v368 = vpop.f32.mrf.mxu0
  %v369 = vadd.f32 0.0, %v368
  %v370 = vpop.f32.mrf.mxu0
  %371 = vdwg.mxu0
  %vm372 = vcmask 523264
  %v373 = vsel %vm372, %v334, -inf
  %374 = vmax.xlane.f32.xlu0 %v373
  %v375 = vpop.xlane.xlu0 %374
  %v376 = vsel %vm372, %v339, -inf
  %377 = vmax.xlane.f32.xlu0 %v376
  %v378 = vpop.xlane.xlu0 %377
  %v379 = vsel %vm372, %v344, -inf
  %380 = vmax.xlane.f32.xlu0 %v379
  %v381 = vpop.xlane.xlu0 %380
  %v382 = vsel %vm372, %v349, -inf
  %383 = vmax.xlane.f32.xlu0 %v382
  %v384 = vpop.xlane.xlu0 %383
  %v385 = vsel %vm372, %v354, -inf
  %386 = vmax.xlane.f32.xlu0 %v385
  %v387 = vpop.xlane.xlu0 %386
  %v388 = vsel %vm372, %v359, -inf
  %389 = vmax.xlane.f32.xlu0 %v388
  %v390 = vpop.xlane.xlu0 %389
  %v391 = vsel %vm372, %v364, -inf
  %392 = vmax.xlane.f32.xlu0 %v391
  %v393 = vpop.xlane.xlu0 %392
  %v394 = vsel %vm372, %v369, -inf
  %395 = vmax.xlane.f32.xlu0 %v394
  %v396 = vpop.xlane.xlu0 %395
  %v397 = vsub.f32 %v334, %v375
  %v398 = vsub.f32 %v339, %v378
  %v399 = vsub.f32 %v344, %v381
  %v400 = vsub.f32 %v349, %v384
  %v401 = vsub.f32 %v354, %v387
  %v402 = vsub.f32 %v359, %v390
  %v403 = vsub.f32 %v364, %v393
  %v404 = vsub.f32 %v369, %v396
  %v405 = vmul.f32 %v397, 1.442695
  %v406 = vpow.pop %v405
  %v407 = vmul.f32 %v398, 1.442695
  %v408 = vpow.pop %v407
  %v409 = vmul.f32 %v399, 1.442695
  %v410 = vpow.pop %v409
  %v411 = vmul.f32 %v400, 1.442695
  %v412 = vpow.pop %v411
  %v413 = vmul.f32 %v401, 1.442695
  %v414 = vpow.pop %v413
  %v415 = vmul.f32 %v402, 1.442695
  %v416 = vpow.pop %v415
  %v417 = vmul.f32 %v403, 1.442695
  %v418 = vpow.pop %v417
  %v419 = vmul.f32 %v404, 1.442695
  %v420 = vpow.pop %v419
  %v421 = vsel %vm372, %v406, 0.0
  %422 = vadd.xlane.f32.xlu0 %v421
  %v423 = vpop.xlane.xlu0 %422
  %v424 = vsel %vm372, %v408, 0.0
  %425 = vadd.xlane.f32.xlu0 %v424
  %v426 = vpop.xlane.xlu0 %425
  %v427 = vsel %vm372, %v410, 0.0
  %428 = vadd.xlane.f32.xlu0 %v427
  %v429 = vpop.xlane.xlu0 %428
  %v430 = vsel %vm372, %v412, 0.0
  %431 = vadd.xlane.f32.xlu0 %v430
  %v432 = vpop.xlane.xlu0 %431
  %v433 = vsel %vm372, %v414, 0.0
  %434 = vadd.xlane.f32.xlu0 %v433
  %v435 = vpop.xlane.xlu0 %434
  %v436 = vsel %vm372, %v416, 0.0
  %437 = vadd.xlane.f32.xlu0 %v436
  %v438 = vpop.xlane.xlu0 %437
  %v439 = vsel %vm372, %v418, 0.0
  %440 = vadd.xlane.f32.xlu0 %v439
  %v441 = vpop.xlane.xlu0 %440
  %v442 = vsel %vm372, %v420, 0.0
  %443 = vadd.xlane.f32.xlu0 %v442
  %v444 = vpop.xlane.xlu0 %443
  %v446 = vsel %vm372, %v406, 0
  %v449 = vsel %vm372, %v408, 0
  %v452 = vsel %vm372, %v410, 0
  %v455 = vsel %vm372, %v412, 0
  %v458 = vsel %vm372, %v414, 0
  %v461 = vsel %vm372, %v416, 0
  %v464 = vsel %vm372, %v418, 0
  %v467 = vsel %vm372, %v420, 0
  %v470 = vsel %vm372, %v179, 0
  %472 = vmatprep.subr.mxu0 0.0
  %473 = vmatpush1.xpose.msra.mxu0 0.0
  %474 = vmatprep.subr.mxu0 0.0
  %475 = vmatpush1.xpose.msra.mxu0 0.0
  %476 = vmatprep.subr.mxu0 0.0
  %477 = vmatpush1.xpose.msra.mxu0 0.0
  %478 = vmatprep.subr.mxu0 0.0
  %479 = vmatpush1.xpose.msra.mxu0 0.0
  %480 = vmatprep.subr.mxu0 0.0
  %481 = vmatpush1.xpose.msra.mxu0 0.0
  %482 = vmatprep.subr.mxu0 0.0
  %483 = vmatpush1.xpose.msra.mxu0 0.0
  %484 = vmatprep.subr.mxu0 0.0
  %485 = vmatpush1.xpose.msra.mxu0 0.0
  %486 = vmatprep.subr.mxu0 0.0
  %487 = vmatpush1.xpose.msra.mxu0 0.0
  %488 = vmatprep.subr.mxu0 0.0
  %489 = vmatpush1.xpose.msra.mxu0 0.0
  %490 = vmatprep.subr.mxu0 0.0
  %491 = vmatpush1.xpose.msra.mxu0 0.0
  %492 = vmatprep.subr.mxu0 0.0
  %493 = vmatpush1.xpose.msra.mxu0 0.0
  %494 = vmatprep.subr.mxu0 0.0
  %495 = vmatpush1.xpose.msra.mxu0 0.0
  %496 = vmatprep.subr.mxu0 0.0
  %497 = vmatpush1.xpose.msra.mxu0 0.0
  %498 = vmatprep.subr.mxu0 0.0
  %499 = vmatpush1.xpose.msra.mxu0 0.0
  %500 = vmatprep.subr.mxu0 0.0
  %501 = vmatpush1.xpose.msra.mxu0 0.0
  %502 = vmatprep.subr.mxu0 0.0
  %503 = vmatpush1.xpose.msra.mxu0 %v470
  %504 = vmatprep.subr.mxu0 0.0
  %505 = vmatpush2.xpose.msra.mxu0 0.0
  %506 = vmatprep.subr.mxu0 0.0
  %507 = vmatpush2.xpose.msra.mxu0 0.0
  %508 = vmatprep.subr.mxu0 0.0
  %509 = vmatpush2.xpose.msra.mxu0 0.0
  %510 = vmatprep.subr.mxu0 0.0
  %511 = vmatpush2.xpose.msra.mxu0 0.0
  %512 = vmatprep.subr.mxu0 0.0
  %513 = vmatpush2.xpose.msra.mxu0 0.0
  %514 = vmatprep.subr.mxu0 0.0
  %515 = vmatpush2.xpose.msra.mxu0 0.0
  %516 = vmatprep.subr.mxu0 0.0
  %517 = vmatpush2.xpose.msra.mxu0 0.0
  %518 = vmatprep.subr.mxu0 0.0
  %519 = vmatpush2.xpose.msra.mxu0 0.0
  %520 = vmatprep.subr.mxu0 0.0
  %521 = vmatpush2.xpose.msra.mxu0 0.0
  %522 = vmatprep.subr.mxu0 0.0
  %523 = vmatpush2.xpose.msra.mxu0 0.0
  %524 = vmatprep.subr.mxu0 0.0
  %525 = vmatpush2.xpose.msra.mxu0 0.0
  %526 = vmatprep.subr.mxu0 0.0
  %527 = vmatpush2.xpose.msra.mxu0 0.0
  %528 = vmatprep.subr.mxu0 0.0
  %529 = vmatpush2.xpose.msra.mxu0 0.0
  %530 = vmatprep.subr.mxu0 0.0
  %531 = vmatpush2.xpose.msra.mxu0 0.0
  %532 = vmatprep.subr.mxu0 0.0
  %533 = vmatpush2.xpose.msra.mxu0 0.0
  %534 = vmatprep.subr.mxu0 0.0
  %535 = vmatpush2.xpose.msra.mxu0 0.0
  %536 = vmatprep.mubr.f32.mxu0 0.0
  %537 = vmatmul.mubr.f32.gmra.mxu0 %v446
  %v538 = vpop.f32.mrf.mxu0
  %v539 = vadd.f32 0.0, %v538
  %v540 = vpop.f32.mrf.mxu0
  %541 = vmatprep.mubr.f32.mxu0 0.0
  %542 = vmatmul.mubr.f32.gmra.mxu0 %v449
  %v543 = vpop.f32.mrf.mxu0
  %v544 = vadd.f32 0.0, %v543
  %v545 = vpop.f32.mrf.mxu0
  %546 = vmatprep.mubr.f32.mxu0 0.0
  %547 = vmatmul.mubr.f32.gmra.mxu0 %v452
  %v548 = vpop.f32.mrf.mxu0
  %v549 = vadd.f32 0.0, %v548
  %v550 = vpop.f32.mrf.mxu0
  %551 = vmatprep.mubr.f32.mxu0 0.0
  %552 = vmatmul.mubr.f32.gmra.mxu0 %v455
  %v553 = vpop.f32.mrf.mxu0
  %v554 = vadd.f32 0.0, %v553
  %v555 = vpop.f32.mrf.mxu0
  %556 = vmatprep.mubr.f32.mxu0 0.0
  %557 = vmatmul.mubr.f32.gmra.mxu0 %v458
  %v558 = vpop.f32.mrf.mxu0
  %v559 = vadd.f32 0.0, %v558
  %v560 = vpop.f32.mrf.mxu0
  %561 = vmatprep.mubr.f32.mxu0 0.0
  %562 = vmatmul.mubr.f32.gmra.mxu0 %v461
  %v563 = vpop.f32.mrf.mxu0
  %v564 = vadd.f32 0.0, %v563
  %v565 = vpop.f32.mrf.mxu0
  %566 = vmatprep.mubr.f32.mxu0 0.0
  %567 = vmatmul.mubr.f32.gmra.mxu0 %v464
  %v568 = vpop.f32.mrf.mxu0
  %v569 = vadd.f32 0.0, %v568
  %v570 = vpop.f32.mrf.mxu0
  %571 = vmatprep.mubr.f32.mxu0 0.0
  %572 = vmatmul.mubr.f32.gmra.mxu0 %v467
  %v573 = vpop.f32.mrf.mxu0
  %v574 = vadd.f32 0.0, %v573
  %v575 = vpop.f32.mrf.mxu0
  %576 = vdwg.mxu0
  %v577 = vrcp.pop %v423
  %v578 = vrcp.pop %v426
  %v579 = vrcp.pop %v429
  %v580 = vrcp.pop %v432
  %v581 = vrcp.pop %v435
  %v582 = vrcp.pop %v438
  %v583 = vrcp.pop %v441
  %v584 = vrcp.pop %v444
  %v585 = vmul.f32 %v539, %v577
  %v586 = vmul.f32 %v544, %v578
  %v587 = vmul.f32 %v549, %v579
  %v588 = vmul.f32 %v554, %v580
  %v589 = vmul.f32 %v559, %v581
  %v590 = vmul.f32 %v564, %v582
  %v591 = vmul.f32 %v569, %v583
  %v592 = vmul.f32 %v574, %v584
  %v593 = vlaneseq
  %v594 = vshrl.u32 %v593, 7
  %v595 = vsub.s32 1, %v594
  %v596 = vrot.slane %v30, %v595
  %v597 = vadd.f32 %v585, %v596
  %v598 = vadd.f32 %v586, %v596
  %v599 = vadd.f32 %v587, %v596
  %v600 = vadd.f32 %v588, %v596
  %v601 = vadd.f32 %v589, %v596
  %v602 = vadd.f32 %v590, %v596
  %v603 = vadd.f32 %v591, %v596
  %v604 = vadd.f32 %v592, %v596
  %605 = vst.msk [vmem:[%s4] sm:$0xff] %vm242, %v597
  %606 = vst.msk [vmem:[%s4 + $0x8] sm:$0xff] %vm242, %v598
  %607 = vst.msk [vmem:[%s4 + $0x10] sm:$0xff] %vm242, %v599
  %608 = vst.msk [vmem:[%s4 + $0x18] sm:$0xff] %vm242, %v600
  %609 = vst.msk [vmem:[%s4 + $0x20] sm:$0xff] %vm242, %v601
  %610 = vst.msk [vmem:[%s4 + $0x28] sm:$0xff] %vm242, %v602
  %611 = vst.msk [vmem:[%s4 + $0x30] sm:$0xff] %vm242, %v603
  %612 = vst.msk [vmem:[%s4 + $0x38] sm:$0xff] %vm242, %v604
  %v613 = vadd.f32 %v164, %v29
  %614 = vrot.lane.b32.xlu0 %v233, 120
  %v615 = vpop.permute.xlu0 %614
  %616 = vrot.lane.b32.xlu0 %v234, 120
  %v617 = vpop.permute.xlu0 %616
  %618 = vrot.lane.b32.xlu0 %v235, 120
  %v619 = vpop.permute.xlu0 %618
  %620 = vrot.lane.b32.xlu0 %v236, 120
  %v621 = vpop.permute.xlu0 %620
  %622 = vrot.lane.b32.xlu0 %v237, 120
  %v623 = vpop.permute.xlu0 %622
  %624 = vrot.lane.b32.xlu0 %v238, 120
  %v625 = vpop.permute.xlu0 %624
  %626 = vrot.lane.b32.xlu0 %v239, 120
  %v627 = vpop.permute.xlu0 %626
  %628 = vrot.lane.b32.xlu0 %v240, 120
  %v629 = vpop.permute.xlu0 %628
  %v630 = vsel %vm242, %v615, 0
  %v632 = vsel %vm242, %v617, 0
  %v634 = vsel %vm242, %v619, 0
  %v636 = vsel %vm242, %v621, 0
  %v638 = vsel %vm242, %v623, 0
  %v640 = vsel %vm242, %v625, 0
  %v642 = vsel %vm242, %v627, 0
  %v644 = vsel %vm242, %v629, 0
  %646 = vmatprep.subr.mxu0 0.0
  %647 = vmatpush1.msra.mxu0 0.0
  %648 = vmatprep.subr.mxu0 0.0
  %649 = vmatpush1.msra.mxu0 0.0
  %650 = vmatprep.subr.mxu0 0.0
  %651 = vmatpush1.msra.mxu0 0.0
  %652 = vmatprep.subr.mxu0 0.0
  %653 = vmatpush1.msra.mxu0 0.0
  %654 = vmatprep.subr.mxu0 0.0
  %655 = vmatpush1.msra.mxu0 0.0
  %656 = vmatprep.subr.mxu0 0.0
  %657 = vmatpush1.msra.mxu0 0.0
  %658 = vmatprep.subr.mxu0 0.0
  %659 = vmatpush1.msra.mxu0 0.0
  %660 = vmatprep.subr.mxu0 0.0
  %661 = vmatpush1.msra.mxu0 0.0
  %662 = vmatprep.subr.mxu0 0.0
  %663 = vmatpush1.msra.mxu0 0.0
  %664 = vmatprep.subr.mxu0 0.0
  %665 = vmatpush1.msra.mxu0 0.0
  %666 = vmatprep.subr.mxu0 0.0
  %667 = vmatpush1.msra.mxu0 0.0
  %668 = vmatprep.subr.mxu0 0.0
  %669 = vmatpush1.msra.mxu0 0.0
  %670 = vmatprep.subr.mxu0 0.0
  %671 = vmatpush1.msra.mxu0 0.0
  %672 = vmatprep.subr.mxu0 0.0
  %673 = vmatpush1.msra.mxu0 0.0
  %674 = vmatprep.subr.mxu0 0.0
  %675 = vmatpush1.msra.mxu0 0.0
  %676 = vmatprep.subr.mxu0 0.0
  %677 = vmatpush1.msra.mxu0 %v613
  %678 = vmatprep.subr.mxu0 0.0
  %679 = vmatpush2.msra.mxu0 0.0
  %680 = vmatprep.subr.mxu0 0.0
  %681 = vmatpush2.msra.mxu0 0.0
  %682 = vmatprep.subr.mxu0 0.0
  %683 = vmatpush2.msra.mxu0 0.0
  %684 = vmatprep.subr.mxu0 0.0
  %685 = vmatpush2.msra.mxu0 0.0
  %686 = vmatprep.subr.mxu0 0.0
  %687 = vmatpush2.msra.mxu0 0.0
  %688 = vmatprep.subr.mxu0 0.0
  %689 = vmatpush2.msra.mxu0 0.0
  %690 = vmatprep.subr.mxu0 0.0
  %691 = vmatpush2.msra.mxu0 0.0
  %692 = vmatprep.subr.mxu0 0.0
  %693 = vmatpush2.msra.mxu0 0.0
  %694 = vmatprep.subr.mxu0 0.0
  %695 = vmatpush2.msra.mxu0 0.0
  %696 = vmatprep.subr.mxu0 0.0
  %697 = vmatpush2.msra.mxu0 0.0
  %698 = vmatprep.subr.mxu0 0.0
  %699 = vmatpush2.msra.mxu0 0.0
  %700 = vmatprep.subr.mxu0 0.0
  %701 = vmatpush2.msra.mxu0 0.0
  %702 = vmatprep.subr.mxu0 0.0
  %703 = vmatpush2.msra.mxu0 0.0
  %704 = vmatprep.subr.mxu0 0.0
  %705 = vmatpush2.msra.mxu0 0.0
  %706 = vmatprep.subr.mxu0 0.0
  %707 = vmatpush2.msra.mxu0 0.0
  %708 = vmatprep.subr.mxu0 0.0
  %709 = vmatpush2.msra.mxu0 0.0
  %710 = vmatprep.mubr.f32.mxu0 0.0
  %711 = vmatmul.mubr.f32.gmra.mxu0 %v630
  %v712 = vpop.f32.mrf.mxu0
  %v713 = vadd.f32 0.0, %v712
  %v714 = vpop.f32.mrf.mxu0
  %715 = vmatprep.mubr.f32.mxu0 0.0
  %716 = vmatmul.mubr.f32.gmra.mxu0 %v632
  %v717 = vpop.f32.mrf.mxu0
  %v718 = vadd.f32 0.0, %v717
  %v719 = vpop.f32.mrf.mxu0
  %720 = vmatprep.mubr.f32.mxu0 0.0
  %721 = vmatmul.mubr.f32.gmra.mxu0 %v634
  %v722 = vpop.f32.mrf.mxu0
  %v723 = vadd.f32 0.0, %v722
  %v724 = vpop.f32.mrf.mxu0
  %725 = vmatprep.mubr.f32.mxu0 0.0
  %726 = vmatmul.mubr.f32.gmra.mxu0 %v636
  %v727 = vpop.f32.mrf.mxu0
  %v728 = vadd.f32 0.0, %v727
  %v729 = vpop.f32.mrf.mxu0
  %730 = vmatprep.mubr.f32.mxu0 0.0
  %731 = vmatmul.mubr.f32.gmra.mxu0 %v638
  %v732 = vpop.f32.mrf.mxu0
  %v733 = vadd.f32 0.0, %v732
  %v734 = vpop.f32.mrf.mxu0
  %735 = vmatprep.mubr.f32.mxu0 0.0
  %736 = vmatmul.mubr.f32.gmra.mxu0 %v640
  %v737 = vpop.f32.mrf.mxu0
  %v738 = vadd.f32 0.0, %v737
  %v739 = vpop.f32.mrf.mxu0
  %740 = vmatprep.mubr.f32.mxu0 0.0
  %741 = vmatmul.mubr.f32.gmra.mxu0 %v642
  %v742 = vpop.f32.mrf.mxu0
  %v743 = vadd.f32 0.0, %v742
  %v744 = vpop.f32.mrf.mxu0
  %745 = vmatprep.mubr.f32.mxu0 0.0
  %746 = vmatmul.mubr.f32.gmra.mxu0 %v644
  %v747 = vpop.f32.mrf.mxu0
  %v748 = vadd.f32 0.0, %v747
  %v749 = vpop.f32.mrf.mxu0
  %750 = vdwg.mxu0
  %v751 = vsel %vm372, %v713, -inf
  %752 = vmax.xlane.f32.xlu0 %v751
  %v753 = vpop.xlane.xlu0 %752
  %v754 = vsel %vm372, %v718, -inf
  %755 = vmax.xlane.f32.xlu0 %v754
  %v756 = vpop.xlane.xlu0 %755
  %v757 = vsel %vm372, %v723, -inf
  %758 = vmax.xlane.f32.xlu0 %v757
  %v759 = vpop.xlane.xlu0 %758
  %v760 = vsel %vm372, %v728, -inf
  %761 = vmax.xlane.f32.xlu0 %v760
  %v762 = vpop.xlane.xlu0 %761
  %v763 = vsel %vm372, %v733, -inf
  %764 = vmax.xlane.f32.xlu0 %v763
  %v765 = vpop.xlane.xlu0 %764
  %v766 = vsel %vm372, %v738, -inf
  %767 = vmax.xlane.f32.xlu0 %v766
  %v768 = vpop.xlane.xlu0 %767
  %v769 = vsel %vm372, %v743, -inf
  %770 = vmax.xlane.f32.xlu0 %v769
  %v771 = vpop.xlane.xlu0 %770
  %v772 = vsel %vm372, %v748, -inf
  %773 = vmax.xlane.f32.xlu0 %v772
  %v774 = vpop.xlane.xlu0 %773
  %v775 = vsub.f32 %v713, %v753
  %v776 = vsub.f32 %v718, %v756
  %v777 = vsub.f32 %v723, %v759
  %v778 = vsub.f32 %v728, %v762
  %v779 = vsub.f32 %v733, %v765
  %v780 = vsub.f32 %v738, %v768
  %v781 = vsub.f32 %v743, %v771
  %v782 = vsub.f32 %v748, %v774
  %v783 = vmul.f32 %v775, 1.442695
  %v784 = vpow.pop %v783
  %v785 = vmul.f32 %v776, 1.442695
  %v786 = vpow.pop %v785
  %v787 = vmul.f32 %v777, 1.442695
  %v788 = vpow.pop %v787
  %v789 = vmul.f32 %v778, 1.442695
  %v790 = vpow.pop %v789
  %v791 = vmul.f32 %v779, 1.442695
  %v792 = vpow.pop %v791
  %v793 = vmul.f32 %v780, 1.442695
  %v794 = vpow.pop %v793
  %v795 = vmul.f32 %v781, 1.442695
  %v796 = vpow.pop %v795
  %v797 = vmul.f32 %v782, 1.442695
  %v798 = vpow.pop %v797
  %v799 = vsel %vm372, %v784, 0.0
  %800 = vadd.xlane.f32.xlu0 %v799
  %v801 = vpop.xlane.xlu0 %800
  %v802 = vsel %vm372, %v786, 0.0
  %803 = vadd.xlane.f32.xlu0 %v802
  %v804 = vpop.xlane.xlu0 %803
  %v805 = vsel %vm372, %v788, 0.0
  %806 = vadd.xlane.f32.xlu0 %v805
  %v807 = vpop.xlane.xlu0 %806
  %v808 = vsel %vm372, %v790, 0.0
  %809 = vadd.xlane.f32.xlu0 %v808
  %v810 = vpop.xlane.xlu0 %809
  %v811 = vsel %vm372, %v792, 0.0
  %812 = vadd.xlane.f32.xlu0 %v811
  %v813 = vpop.xlane.xlu0 %812
  %v814 = vsel %vm372, %v794, 0.0
  %815 = vadd.xlane.f32.xlu0 %v814
  %v816 = vpop.xlane.xlu0 %815
  %v817 = vsel %vm372, %v796, 0.0
  %818 = vadd.xlane.f32.xlu0 %v817
  %v819 = vpop.xlane.xlu0 %818
  %v820 = vsel %vm372, %v798, 0.0
  %821 = vadd.xlane.f32.xlu0 %v820
  %v822 = vpop.xlane.xlu0 %821
  %v824 = vsel %vm372, %v784, 0
  %v827 = vsel %vm372, %v786, 0
  %v830 = vsel %vm372, %v788, 0
  %v833 = vsel %vm372, %v790, 0
  %v836 = vsel %vm372, %v792, 0
  %v839 = vsel %vm372, %v794, 0
  %v842 = vsel %vm372, %v796, 0
  %v845 = vsel %vm372, %v798, 0
  %v848 = vsel %vm372, %v184, 0
  %850 = vmatprep.subr.mxu0 0.0
  %851 = vmatpush1.xpose.msra.mxu0 0.0
  %852 = vmatprep.subr.mxu0 0.0
  %853 = vmatpush1.xpose.msra.mxu0 0.0
  %854 = vmatprep.subr.mxu0 0.0
  %855 = vmatpush1.xpose.msra.mxu0 0.0
  %856 = vmatprep.subr.mxu0 0.0
  %857 = vmatpush1.xpose.msra.mxu0 0.0
  %858 = vmatprep.subr.mxu0 0.0
  %859 = vmatpush1.xpose.msra.mxu0 0.0
  %860 = vmatprep.subr.mxu0 0.0
  %861 = vmatpush1.xpose.msra.mxu0 0.0
  %862 = vmatprep.subr.mxu0 0.0
  %863 = vmatpush1.xpose.msra.mxu0 0.0
  %864 = vmatprep.subr.mxu0 0.0
  %865 = vmatpush1.xpose.msra.mxu0 0.0
  %866 = vmatprep.subr.mxu0 0.0
  %867 = vmatpush1.xpose.msra.mxu0 0.0
  %868 = vmatprep.subr.mxu0 0.0
  %869 = vmatpush1.xpose.msra.mxu0 0.0
  %870 = vmatprep.subr.mxu0 0.0
  %871 = vmatpush1.xpose.msra.mxu0 0.0
  %872 = vmatprep.subr.mxu0 0.0
  %873 = vmatpush1.xpose.msra.mxu0 0.0
  %874 = vmatprep.subr.mxu0 0.0
  %875 = vmatpush1.xpose.msra.mxu0 0.0
  %876 = vmatprep.subr.mxu0 0.0
  %877 = vmatpush1.xpose.msra.mxu0 0.0
  %878 = vmatprep.subr.mxu0 0.0
  %879 = vmatpush1.xpose.msra.mxu0 0.0
  %880 = vmatprep.subr.mxu0 0.0
  %881 = vmatpush1.xpose.msra.mxu0 %v848
  %882 = vmatprep.subr.mxu0 0.0
  %883 = vmatpush2.xpose.msra.mxu0 0.0
  %884 = vmatprep.subr.mxu0 0.0
  %885 = vmatpush2.xpose.msra.mxu0 0.0
  %886 = vmatprep.subr.mxu0 0.0
  %887 = vmatpush2.xpose.msra.mxu0 0.0
  %888 = vmatprep.subr.mxu0 0.0
  %889 = vmatpush2.xpose.msra.mxu0 0.0
  %890 = vmatprep.subr.mxu0 0.0
  %891 = vmatpush2.xpose.msra.mxu0 0.0
  %892 = vmatprep.subr.mxu0 0.0
  %893 = vmatpush2.xpose.msra.mxu0 0.0
  %894 = vmatprep.subr.mxu0 0.0
  %895 = vmatpush2.xpose.msra.mxu0 0.0
  %896 = vmatprep.subr.mxu0 0.0
  %897 = vmatpush2.xpose.msra.mxu0 0.0
  %898 = vmatprep.subr.mxu0 0.0
  %899 = vmatpush2.xpose.msra.mxu0 0.0
  %900 = vmatprep.subr.mxu0 0.0
  %901 = vmatpush2.xpose.msra.mxu0 0.0
  %902 = vmatprep.subr.mxu0 0.0
  %903 = vmatpush2.xpose.msra.mxu0 0.0
  %904 = vmatprep.subr.mxu0 0.0
  %905 = vmatpush2.xpose.msra.mxu0 0.0
  %906 = vmatprep.subr.mxu0 0.0
  %907 = vmatpush2.xpose.msra.mxu0 0.0
  %908 = vmatprep.subr.mxu0 0.0
  %909 = vmatpush2.xpose.msra.mxu0 0.0
  %910 = vmatprep.subr.mxu0 0.0
  %911 = vmatpush2.xpose.msra.mxu0 0.0
  %912 = vmatprep.subr.mxu0 0.0
  %913 = vmatpush2.xpose.msra.mxu0 0.0
  %914 = vmatprep.mubr.f32.mxu0 0.0
  %915 = vmatmul.mubr.f32.gmra.mxu0 %v824
  %v916 = vpop.f32.mrf.mxu0
  %v917 = vadd.f32 0.0, %v916
  %v918 = vpop.f32.mrf.mxu0
  %919 = vmatprep.mubr.f32.mxu0 0.0
  %920 = vmatmul.mubr.f32.gmra.mxu0 %v827
  %v921 = vpop.f32.mrf.mxu0
  %v922 = vadd.f32 0.0, %v921
  %v923 = vpop.f32.mrf.mxu0
  %924 = vmatprep.mubr.f32.mxu0 0.0
  %925 = vmatmul.mubr.f32.gmra.mxu0 %v830
  %v926 = vpop.f32.mrf.mxu0
  %v927 = vadd.f32 0.0, %v926
  %v928 = vpop.f32.mrf.mxu0
  %929 = vmatprep.mubr.f32.mxu0 0.0
  %930 = vmatmul.mubr.f32.gmra.mxu0 %v833
  %v931 = vpop.f32.mrf.mxu0
  %v932 = vadd.f32 0.0, %v931
  %v933 = vpop.f32.mrf.mxu0
  %934 = vmatprep.mubr.f32.mxu0 0.0
  %935 = vmatmul.mubr.f32.gmra.mxu0 %v836
  %v936 = vpop.f32.mrf.mxu0
  %v937 = vadd.f32 0.0, %v936
  %v938 = vpop.f32.mrf.mxu0
  %939 = vmatprep.mubr.f32.mxu0 0.0
  %940 = vmatmul.mubr.f32.gmra.mxu0 %v839
  %v941 = vpop.f32.mrf.mxu0
  %v942 = vadd.f32 0.0, %v941
  %v943 = vpop.f32.mrf.mxu0
  %944 = vmatprep.mubr.f32.mxu0 0.0
  %945 = vmatmul.mubr.f32.gmra.mxu0 %v842
  %v946 = vpop.f32.mrf.mxu0
  %v947 = vadd.f32 0.0, %v946
  %v948 = vpop.f32.mrf.mxu0
  %949 = vmatprep.mubr.f32.mxu0 0.0
  %950 = vmatmul.mubr.f32.gmra.mxu0 %v845
  %v951 = vpop.f32.mrf.mxu0
  %v952 = vadd.f32 0.0, %v951
  %v953 = vpop.f32.mrf.mxu0
  %954 = vdwg.mxu0
  %v955 = vrcp.pop %v801
  %v956 = vrcp.pop %v804
  %v957 = vrcp.pop %v807
  %v958 = vrcp.pop %v810
  %v959 = vrcp.pop %v813
  %v960 = vrcp.pop %v816
  %v961 = vrcp.pop %v819
  %v962 = vrcp.pop %v822
  %v963 = vmul.f32 %v917, %v955
  %v964 = vmul.f32 %v922, %v956
  %v965 = vmul.f32 %v927, %v957
  %v966 = vmul.f32 %v932, %v958
  %v967 = vmul.f32 %v937, %v959
  %v968 = vmul.f32 %v942, %v960
  %v969 = vmul.f32 %v947, %v961
  %v970 = vmul.f32 %v952, %v962
  %972 = vrot.lane.b32.xlu0 %v596, 120
  %v973 = vpop.permute.xlu0 %972
  %v975 = vadd.f32 %v963, %v973
  %v976 = vadd.f32 %v964, %v973
  %v977 = vadd.f32 %v965, %v973
  %v978 = vadd.f32 %v966, %v973
  %v979 = vadd.f32 %v967, %v973
  %v980 = vadd.f32 %v968, %v973
  %v981 = vadd.f32 %v969, %v973
  %v982 = vadd.f32 %v970, %v973
  %s983 = scalar_lea.vmem %s4, 64
  %984 = vst.msk [vmem:[%s983] sm:$0xff] %vm242, %v975
  %985 = vst.msk [vmem:[%s983 + $0x8] sm:$0xff] %vm242, %v976
  %986 = vst.msk [vmem:[%s983 + $0x10] sm:$0xff] %vm242, %v977
  %987 = vst.msk [vmem:[%s983 + $0x18] sm:$0xff] %vm242, %v978
  %988 = vst.msk [vmem:[%s983 + $0x20] sm:$0xff] %vm242, %v979
  %989 = vst.msk [vmem:[%s983 + $0x28] sm:$0xff] %vm242, %v980
  %990 = vst.msk [vmem:[%s983 + $0x30] sm:$0xff] %vm242, %v981
  %991 = vst.msk [vmem:[%s983 + $0x38] sm:$0xff] %vm242, %v982
  %v992 = vadd.f32 %v169, %v29
  %993 = vrot.lane.b32.xlu0 %v233, 112
  %v994 = vpop.permute.xlu0 %993
  %995 = vrot.lane.b32.xlu0 %v234, 112
  %v996 = vpop.permute.xlu0 %995
  %997 = vrot.lane.b32.xlu0 %v235, 112
  %v998 = vpop.permute.xlu0 %997
  %999 = vrot.lane.b32.xlu0 %v236, 112
  %v1000 = vpop.permute.xlu0 %999
  %1001 = vrot.lane.b32.xlu0 %v237, 112
  %v1002 = vpop.permute.xlu0 %1001
  %1003 = vrot.lane.b32.xlu0 %v238, 112
  %v1004 = vpop.permute.xlu0 %1003
  %1005 = vrot.lane.b32.xlu0 %v239, 112
  %v1006 = vpop.permute.xlu0 %1005
  %1007 = vrot.lane.b32.xlu0 %v240, 112
  %v1008 = vpop.permute.xlu0 %1007
  %v1009 = vsel %vm242, %v994, 0
  %v1011 = vsel %vm242, %v996, 0
  %v1013 = vsel %vm242, %v998, 0
  %v1015 = vsel %vm242, %v1000, 0
  %v1017 = vsel %vm242, %v1002, 0
  %v1019 = vsel %vm242, %v1004, 0
  %v1021 = vsel %vm242, %v1006, 0
  %v1023 = vsel %vm242, %v1008, 0
  %1025 = vmatprep.subr.mxu0 0.0
  %1026 = vmatpush1.msra.mxu0 0.0
  %1027 = vmatprep.subr.mxu0 0.0
  %1028 = vmatpush1.msra.mxu0 0.0
  %1029 = vmatprep.subr.mxu0 0.0
  %1030 = vmatpush1.msra.mxu0 0.0
  %1031 = vmatprep.subr.mxu0 0.0
  %1032 = vmatpush1.msra.mxu0 0.0
  %1033 = vmatprep.subr.mxu0 0.0
  %1034 = vmatpush1.msra.mxu0 0.0
  %1035 = vmatprep.subr.mxu0 0.0
  %1036 = vmatpush1.msra.mxu0 0.0
  %1037 = vmatprep.subr.mxu0 0.0
  %1038 = vmatpush1.msra.mxu0 0.0
  %1039 = vmatprep.subr.mxu0 0.0
  %1040 = vmatpush1.msra.mxu0 0.0
  %1041 = vmatprep.subr.mxu0 0.0
  %1042 = vmatpush1.msra.mxu0 0.0
  %1043 = vmatprep.subr.mxu0 0.0
  %1044 = vmatpush1.msra.mxu0 0.0
  %1045 = vmatprep.subr.mxu0 0.0
  %1046 = vmatpush1.msra.mxu0 0.0
  %1047 = vmatprep.subr.mxu0 0.0
  %1048 = vmatpush1.msra.mxu0 0.0
  %1049 = vmatprep.subr.mxu0 0.0
  %1050 = vmatpush1.msra.mxu0 0.0
  %1051 = vmatprep.subr.mxu0 0.0
  %1052 = vmatpush1.msra.mxu0 0.0
  %1053 = vmatprep.subr.mxu0 0.0
  %1054 = vmatpush1.msra.mxu0 0.0
  %1055 = vmatprep.subr.mxu0 0.0
  %1056 = vmatpush1.msra.mxu0 %v992
  %1057 = vmatprep.subr.mxu0 0.0
  %1058 = vmatpush2.msra.mxu0 0.0
  %1059 = vmatprep.subr.mxu0 0.0
  %1060 = vmatpush2.msra.mxu0 0.0
  %1061 = vmatprep.subr.mxu0 0.0
  %1062 = vmatpush2.msra.mxu0 0.0
  %1063 = vmatprep.subr.mxu0 0.0
  %1064 = vmatpush2.msra.mxu0 0.0
  %1065 = vmatprep.subr.mxu0 0.0
  %1066 = vmatpush2.msra.mxu0 0.0
  %1067 = vmatprep.subr.mxu0 0.0
  %1068 = vmatpush2.msra.mxu0 0.0
  %1069 = vmatprep.subr.mxu0 0.0
  %1070 = vmatpush2.msra.mxu0 0.0
  %1071 = vmatprep.subr.mxu0 0.0
  %1072 = vmatpush2.msra.mxu0 0.0
  %1073 = vmatprep.subr.mxu0 0.0
  %1074 = vmatpush2.msra.mxu0 0.0
  %1075 = vmatprep.subr.mxu0 0.0
  %1076 = vmatpush2.msra.mxu0 0.0
  %1077 = vmatprep.subr.mxu0 0.0
  %1078 = vmatpush2.msra.mxu0 0.0
  %1079 = vmatprep.subr.mxu0 0.0
  %1080 = vmatpush2.msra.mxu0 0.0
  %1081 = vmatprep.subr.mxu0 0.0
  %1082 = vmatpush2.msra.mxu0 0.0
  %1083 = vmatprep.subr.mxu0 0.0
  %1084 = vmatpush2.msra.mxu0 0.0
  %1085 = vmatprep.subr.mxu0 0.0
  %1086 = vmatpush2.msra.mxu0 0.0
  %1087 = vmatprep.subr.mxu0 0.0
  %1088 = vmatpush2.msra.mxu0 0.0
  %1089 = vmatprep.mubr.f32.mxu0 0.0
  %1090 = vmatmul.mubr.f32.gmra.mxu0 %v1009
  %v1091 = vpop.f32.mrf.mxu0
  %v1092 = vadd.f32 0.0, %v1091
  %v1093 = vpop.f32.mrf.mxu0
  %1094 = vmatprep.mubr.f32.mxu0 0.0
  %1095 = vmatmul.mubr.f32.gmra.mxu0 %v1011
  %v1096 = vpop.f32.mrf.mxu0
  %v1097 = vadd.f32 0.0, %v1096
  %v1098 = vpop.f32.mrf.mxu0
  %1099 = vmatprep.mubr.f32.mxu0 0.0
  %1100 = vmatmul.mubr.f32.gmra.mxu0 %v1013
  %v1101 = vpop.f32.mrf.mxu0
  %v1102 = vadd.f32 0.0, %v1101
  %v1103 = vpop.f32.mrf.mxu0
  %1104 = vmatprep.mubr.f32.mxu0 0.0
  %1105 = vmatmul.mubr.f32.gmra.mxu0 %v1015
  %v1106 = vpop.f32.mrf.mxu0
  %v1107 = vadd.f32 0.0, %v1106
  %v1108 = vpop.f32.mrf.mxu0
  %1109 = vmatprep.mubr.f32.mxu0 0.0
  %1110 = vmatmul.mubr.f32.gmra.mxu0 %v1017
  %v1111 = vpop.f32.mrf.mxu0
  %v1112 = vadd.f32 0.0, %v1111
  %v1113 = vpop.f32.mrf.mxu0
  %1114 = vmatprep.mubr.f32.mxu0 0.0
  %1115 = vmatmul.mubr.f32.gmra.mxu0 %v1019
  %v1116 = vpop.f32.mrf.mxu0
  %v1117 = vadd.f32 0.0, %v1116
  %v1118 = vpop.f32.mrf.mxu0
  %1119 = vmatprep.mubr.f32.mxu0 0.0
  %1120 = vmatmul.mubr.f32.gmra.mxu0 %v1021
  %v1121 = vpop.f32.mrf.mxu0
  %v1122 = vadd.f32 0.0, %v1121
  %v1123 = vpop.f32.mrf.mxu0
  %1124 = vmatprep.mubr.f32.mxu0 0.0
  %1125 = vmatmul.mubr.f32.gmra.mxu0 %v1023
  %v1126 = vpop.f32.mrf.mxu0
  %v1127 = vadd.f32 0.0, %v1126
  %v1128 = vpop.f32.mrf.mxu0
  %1129 = vdwg.mxu0
  %v1130 = vsel %vm372, %v1092, -inf
  %1131 = vmax.xlane.f32.xlu0 %v1130
  %v1132 = vpop.xlane.xlu0 %1131
  %v1133 = vsel %vm372, %v1097, -inf
  %1134 = vmax.xlane.f32.xlu0 %v1133
  %v1135 = vpop.xlane.xlu0 %1134
  %v1136 = vsel %vm372, %v1102, -inf
  %1137 = vmax.xlane.f32.xlu0 %v1136
  %v1138 = vpop.xlane.xlu0 %1137
  %v1139 = vsel %vm372, %v1107, -inf
  %1140 = vmax.xlane.f32.xlu0 %v1139
  %v1141 = vpop.xlane.xlu0 %1140
  %v1142 = vsel %vm372, %v1112, -inf
  %1143 = vmax.xlane.f32.xlu0 %v1142
  %v1144 = vpop.xlane.xlu0 %1143
  %v1145 = vsel %vm372, %v1117, -inf
  %1146 = vmax.xlane.f32.xlu0 %v1145
  %v1147 = vpop.xlane.xlu0 %1146
  %v1148 = vsel %vm372, %v1122, -inf
  %1149 = vmax.xlane.f32.xlu0 %v1148
  %v1150 = vpop.xlane.xlu0 %1149
  %v1151 = vsel %vm372, %v1127, -inf
  %1152 = vmax.xlane.f32.xlu0 %v1151
  %v1153 = vpop.xlane.xlu0 %1152
  %v1154 = vsub.f32 %v1092, %v1132
  %v1155 = vsub.f32 %v1097, %v1135
  %v1156 = vsub.f32 %v1102, %v1138
  %v1157 = vsub.f32 %v1107, %v1141
  %v1158 = vsub.f32 %v1112, %v1144
  %v1159 = vsub.f32 %v1117, %v1147
  %v1160 = vsub.f32 %v1122, %v1150
  %v1161 = vsub.f32 %v1127, %v1153
  %v1162 = vmul.f32 %v1154, 1.442695
  %v1163 = vpow.pop %v1162
  %v1164 = vmul.f32 %v1155, 1.442695
  %v1165 = vpow.pop %v1164
  %v1166 = vmul.f32 %v1156, 1.442695
  %v1167 = vpow.pop %v1166
  %v1168 = vmul.f32 %v1157, 1.442695
  %v1169 = vpow.pop %v1168
  %v1170 = vmul.f32 %v1158, 1.442695
  %v1171 = vpow.pop %v1170
  %v1172 = vmul.f32 %v1159, 1.442695
  %v1173 = vpow.pop %v1172
  %v1174 = vmul.f32 %v1160, 1.442695
  %v1175 = vpow.pop %v1174
  %v1176 = vmul.f32 %v1161, 1.442695
  %v1177 = vpow.pop %v1176
  %v1178 = vsel %vm372, %v1163, 0.0
  %1179 = vadd.xlane.f32.xlu0 %v1178
  %v1180 = vpop.xlane.xlu0 %1179
  %v1181 = vsel %vm372, %v1165, 0.0
  %1182 = vadd.xlane.f32.xlu0 %v1181
  %v1183 = vpop.xlane.xlu0 %1182
  %v1184 = vsel %vm372, %v1167, 0.0
  %1185 = vadd.xlane.f32.xlu0 %v1184
  %v1186 = vpop.xlane.xlu0 %1185
  %v1187 = vsel %vm372, %v1169, 0.0
  %1188 = vadd.xlane.f32.xlu0 %v1187
  %v1189 = vpop.xlane.xlu0 %1188
  %v1190 = vsel %vm372, %v1171, 0.0
  %1191 = vadd.xlane.f32.xlu0 %v1190
  %v1192 = vpop.xlane.xlu0 %1191
  %v1193 = vsel %vm372, %v1173, 0.0
  %1194 = vadd.xlane.f32.xlu0 %v1193
  %v1195 = vpop.xlane.xlu0 %1194
  %v1196 = vsel %vm372, %v1175, 0.0
  %1197 = vadd.xlane.f32.xlu0 %v1196
  %v1198 = vpop.xlane.xlu0 %1197
  %v1199 = vsel %vm372, %v1177, 0.0
  %1200 = vadd.xlane.f32.xlu0 %v1199
  %v1201 = vpop.xlane.xlu0 %1200
  %v1203 = vsel %vm372, %v1163, 0
  %v1206 = vsel %vm372, %v1165, 0
  %v1209 = vsel %vm372, %v1167, 0
  %v1212 = vsel %vm372, %v1169, 0
  %v1215 = vsel %vm372, %v1171, 0
  %v1218 = vsel %vm372, %v1173, 0
  %v1221 = vsel %vm372, %v1175, 0
  %v1224 = vsel %vm372, %v1177, 0
  %v1227 = vsel %vm372, %v189, 0
  %1229 = vmatprep.subr.mxu0 0.0
  %1230 = vmatpush1.xpose.msra.mxu0 0.0
  %1231 = vmatprep.subr.mxu0 0.0
  %1232 = vmatpush1.xpose.msra.mxu0 0.0
  %1233 = vmatprep.subr.mxu0 0.0
  %1234 = vmatpush1.xpose.msra.mxu0 0.0
  %1235 = vmatprep.subr.mxu0 0.0
  %1236 = vmatpush1.xpose.msra.mxu0 0.0
  %1237 = vmatprep.subr.mxu0 0.0
  %1238 = vmatpush1.xpose.msra.mxu0 0.0
  %1239 = vmatprep.subr.mxu0 0.0
  %1240 = vmatpush1.xpose.msra.mxu0 0.0
  %1241 = vmatprep.subr.mxu0 0.0
  %1242 = vmatpush1.xpose.msra.mxu0 0.0
  %1243 = vmatprep.subr.mxu0 0.0
  %1244 = vmatpush1.xpose.msra.mxu0 0.0
  %1245 = vmatprep.subr.mxu0 0.0
  %1246 = vmatpush1.xpose.msra.mxu0 0.0
  %1247 = vmatprep.subr.mxu0 0.0
  %1248 = vmatpush1.xpose.msra.mxu0 0.0
  %1249 = vmatprep.subr.mxu0 0.0
  %1250 = vmatpush1.xpose.msra.mxu0 0.0
  %1251 = vmatprep.subr.mxu0 0.0
  %1252 = vmatpush1.xpose.msra.mxu0 0.0
  %1253 = vmatprep.subr.mxu0 0.0
  %1254 = vmatpush1.xpose.msra.mxu0 0.0
  %1255 = vmatprep.subr.mxu0 0.0
  %1256 = vmatpush1.xpose.msra.mxu0 0.0
  %1257 = vmatprep.subr.mxu0 0.0
  %1258 = vmatpush1.xpose.msra.mxu0 0.0
  %1259 = vmatprep.subr.mxu0 0.0
  %1260 = vmatpush1.xpose.msra.mxu0 %v1227
  %1261 = vmatprep.subr.mxu0 0.0
  %1262 = vmatpush2.xpose.msra.mxu0 0.0
  %1263 = vmatprep.subr.mxu0 0.0
  %1264 = vmatpush2.xpose.msra.mxu0 0.0
  %1265 = vmatprep.subr.mxu0 0.0
  %1266 = vmatpush2.xpose.msra.mxu0 0.0
  %1267 = vmatprep.subr.mxu0 0.0
  %1268 = vmatpush2.xpose.msra.mxu0 0.0
  %1269 = vmatprep.subr.mxu0 0.0
  %1270 = vmatpush2.xpose.msra.mxu0 0.0
  %1271 = vmatprep.subr.mxu0 0.0
  %1272 = vmatpush2.xpose.msra.mxu0 0.0
  %1273 = vmatprep.subr.mxu0 0.0
  %1274 = vmatpush2.xpose.msra.mxu0 0.0
  %1275 = vmatprep.subr.mxu0 0.0
  %1276 = vmatpush2.xpose.msra.mxu0 0.0
  %1277 = vmatprep.subr.mxu0 0.0
  %1278 = vmatpush2.xpose.msra.mxu0 0.0
  %1279 = vmatprep.subr.mxu0 0.0
  %1280 = vmatpush2.xpose.msra.mxu0 0.0
  %1281 = vmatprep.subr.mxu0 0.0
  %1282 = vmatpush2.xpose.msra.mxu0 0.0
  %1283 = vmatprep.subr.mxu0 0.0
  %1284 = vmatpush2.xpose.msra.mxu0 0.0
  %1285 = vmatprep.subr.mxu0 0.0
  %1286 = vmatpush2.xpose.msra.mxu0 0.0
  %1287 = vmatprep.subr.mxu0 0.0
  %1288 = vmatpush2.xpose.msra.mxu0 0.0
  %1289 = vmatprep.subr.mxu0 0.0
  %1290 = vmatpush2.xpose.msra.mxu0 0.0
  %1291 = vmatprep.subr.mxu0 0.0
  %1292 = vmatpush2.xpose.msra.mxu0 0.0
  %1293 = vmatprep.mubr.f32.mxu0 0.0
  %1294 = vmatmul.mubr.f32.gmra.mxu0 %v1203
  %v1295 = vpop.f32.mrf.mxu0
  %v1296 = vadd.f32 0.0, %v1295
  %v1297 = vpop.f32.mrf.mxu0
  %1298 = vmatprep.mubr.f32.mxu0 0.0
  %1299 = vmatmul.mubr.f32.gmra.mxu0 %v1206
  %v1300 = vpop.f32.mrf.mxu0
  %v1301 = vadd.f32 0.0, %v1300
  %v1302 = vpop.f32.mrf.mxu0
  %1303 = vmatprep.mubr.f32.mxu0 0.0
  %1304 = vmatmul.mubr.f32.gmra.mxu0 %v1209
  %v1305 = vpop.f32.mrf.mxu0
  %v1306 = vadd.f32 0.0, %v1305
  %v1307 = vpop.f32.mrf.mxu0
  %1308 = vmatprep.mubr.f32.mxu0 0.0
  %1309 = vmatmul.mubr.f32.gmra.mxu0 %v1212
  %v1310 = vpop.f32.mrf.mxu0
  %v1311 = vadd.f32 0.0, %v1310
  %v1312 = vpop.f32.mrf.mxu0
  %1313 = vmatprep.mubr.f32.mxu0 0.0
  %1314 = vmatmul.mubr.f32.gmra.mxu0 %v1215
  %v1315 = vpop.f32.mrf.mxu0
  %v1316 = vadd.f32 0.0, %v1315
  %v1317 = vpop.f32.mrf.mxu0
  %1318 = vmatprep.mubr.f32.mxu0 0.0
  %1319 = vmatmul.mubr.f32.gmra.mxu0 %v1218
  %v1320 = vpop.f32.mrf.mxu0
  %v1321 = vadd.f32 0.0, %v1320
  %v1322 = vpop.f32.mrf.mxu0
  %1323 = vmatprep.mubr.f32.mxu0 0.0
  %1324 = vmatmul.mubr.f32.gmra.mxu0 %v1221
  %v1325 = vpop.f32.mrf.mxu0
  %v1326 = vadd.f32 0.0, %v1325
  %v1327 = vpop.f32.mrf.mxu0
  %1328 = vmatprep.mubr.f32.mxu0 0.0
  %1329 = vmatmul.mubr.f32.gmra.mxu0 %v1224
  %v1330 = vpop.f32.mrf.mxu0
  %v1331 = vadd.f32 0.0, %v1330
  %v1332 = vpop.f32.mrf.mxu0
  %1333 = vdwg.mxu0
  %v1334 = vrcp.pop %v1180
  %v1335 = vrcp.pop %v1183
  %v1336 = vrcp.pop %v1186
  %v1337 = vrcp.pop %v1189
  %v1338 = vrcp.pop %v1192
  %v1339 = vrcp.pop %v1195
  %v1340 = vrcp.pop %v1198
  %v1341 = vrcp.pop %v1201
  %v1342 = vmul.f32 %v1296, %v1334
  %v1343 = vmul.f32 %v1301, %v1335
  %v1344 = vmul.f32 %v1306, %v1336
  %v1345 = vmul.f32 %v1311, %v1337
  %v1346 = vmul.f32 %v1316, %v1338
  %v1347 = vmul.f32 %v1321, %v1339
  %v1348 = vmul.f32 %v1326, %v1340
  %v1349 = vmul.f32 %v1331, %v1341
  %1350 = vrot.lane.b32.xlu0 %v596, 112
  %v1351 = vpop.permute.xlu0 %1350
  %v1353 = vadd.f32 %v1342, %v1351
  %v1354 = vadd.f32 %v1343, %v1351
  %v1355 = vadd.f32 %v1344, %v1351
  %v1356 = vadd.f32 %v1345, %v1351
  %v1357 = vadd.f32 %v1346, %v1351
  %v1358 = vadd.f32 %v1347, %v1351
  %v1359 = vadd.f32 %v1348, %v1351
  %v1360 = vadd.f32 %v1349, %v1351
  %s1361 = scalar_lea.vmem %s4, 128
  %1362 = vst.msk [vmem:[%s1361] sm:$0xff] %vm242, %v1353
  %1363 = vst.msk [vmem:[%s1361 + $0x8] sm:$0xff] %vm242, %v1354
  %1364 = vst.msk [vmem:[%s1361 + $0x10] sm:$0xff] %vm242, %v1355
  %1365 = vst.msk [vmem:[%s1361 + $0x18] sm:$0xff] %vm242, %v1356
  %1366 = vst.msk [vmem:[%s1361 + $0x20] sm:$0xff] %vm242, %v1357
  %1367 = vst.msk [vmem:[%s1361 + $0x28] sm:$0xff] %vm242, %v1358
  %1368 = vst.msk [vmem:[%s1361 + $0x30] sm:$0xff] %vm242, %v1359
  %1369 = vst.msk [vmem:[%s1361 + $0x38] sm:$0xff] %vm242, %v1360
  %v1370 = vadd.f32 %v174, %v29
  %1371 = vrot.lane.b32.xlu0 %v233, 104
  %v1372 = vpop.permute.xlu0 %1371
  %1373 = vrot.lane.b32.xlu0 %v234, 104
  %v1374 = vpop.permute.xlu0 %1373
  %1375 = vrot.lane.b32.xlu0 %v235, 104
  %v1376 = vpop.permute.xlu0 %1375
  %1377 = vrot.lane.b32.xlu0 %v236, 104
  %v1378 = vpop.permute.xlu0 %1377
  %1379 = vrot.lane.b32.xlu0 %v237, 104
  %v1380 = vpop.permute.xlu0 %1379
  %1381 = vrot.lane.b32.xlu0 %v238, 104
  %v1382 = vpop.permute.xlu0 %1381
  %1383 = vrot.lane.b32.xlu0 %v239, 104
  %v1384 = vpop.permute.xlu0 %1383
  %1385 = vrot.lane.b32.xlu0 %v240, 104
  %v1386 = vpop.permute.xlu0 %1385
  %v1387 = vsel %vm242, %v1372, 0
  %v1389 = vsel %vm242, %v1374, 0
  %v1391 = vsel %vm242, %v1376, 0
  %v1393 = vsel %vm242, %v1378, 0
  %v1395 = vsel %vm242, %v1380, 0
  %v1397 = vsel %vm242, %v1382, 0
  %v1399 = vsel %vm242, %v1384, 0
  %v1401 = vsel %vm242, %v1386, 0
  %1403 = vmatprep.subr.mxu0 0.0
  %1404 = vmatpush1.msra.mxu0 0.0
  %1405 = vmatprep.subr.mxu0 0.0
  %1406 = vmatpush1.msra.mxu0 0.0
  %1407 = vmatprep.subr.mxu0 0.0
  %1408 = vmatpush1.msra.mxu0 0.0
  %1409 = vmatprep.subr.mxu0 0.0
  %1410 = vmatpush1.msra.mxu0 0.0
  %1411 = vmatprep.subr.mxu0 0.0
  %1412 = vmatpush1.msra.mxu0 0.0
  %1413 = vmatprep.subr.mxu0 0.0
  %1414 = vmatpush1.msra.mxu0 0.0
  %1415 = vmatprep.subr.mxu0 0.0
  %1416 = vmatpush1.msra.mxu0 0.0
  %1417 = vmatprep.subr.mxu0 0.0
  %1418 = vmatpush1.msra.mxu0 0.0
  %1419 = vmatprep.subr.mxu0 0.0
  %1420 = vmatpush1.msra.mxu0 0.0
  %1421 = vmatprep.subr.mxu0 0.0
  %1422 = vmatpush1.msra.mxu0 0.0
  %1423 = vmatprep.subr.mxu0 0.0
  %1424 = vmatpush1.msra.mxu0 0.0
  %1425 = vmatprep.subr.mxu0 0.0
  %1426 = vmatpush1.msra.mxu0 0.0
  %1427 = vmatprep.subr.mxu0 0.0
  %1428 = vmatpush1.msra.mxu0 0.0
  %1429 = vmatprep.subr.mxu0 0.0
  %1430 = vmatpush1.msra.mxu0 0.0
  %1431 = vmatprep.subr.mxu0 0.0
  %1432 = vmatpush1.msra.mxu0 0.0
  %1433 = vmatprep.subr.mxu0 0.0
  %1434 = vmatpush1.msra.mxu0 %v1370
  %1435 = vmatprep.subr.mxu0 0.0
  %1436 = vmatpush2.msra.mxu0 0.0
  %1437 = vmatprep.subr.mxu0 0.0
  %1438 = vmatpush2.msra.mxu0 0.0
  %1439 = vmatprep.subr.mxu0 0.0
  %1440 = vmatpush2.msra.mxu0 0.0
  %1441 = vmatprep.subr.mxu0 0.0
  %1442 = vmatpush2.msra.mxu0 0.0
  %1443 = vmatprep.subr.mxu0 0.0
  %1444 = vmatpush2.msra.mxu0 0.0
  %1445 = vmatprep.subr.mxu0 0.0
  %1446 = vmatpush2.msra.mxu0 0.0
  %1447 = vmatprep.subr.mxu0 0.0
  %1448 = vmatpush2.msra.mxu0 0.0
  %1449 = vmatprep.subr.mxu0 0.0
  %1450 = vmatpush2.msra.mxu0 0.0
  %1451 = vmatprep.subr.mxu0 0.0
  %1452 = vmatpush2.msra.mxu0 0.0
  %1453 = vmatprep.subr.mxu0 0.0
  %1454 = vmatpush2.msra.mxu0 0.0
  %1455 = vmatprep.subr.mxu0 0.0
  %1456 = vmatpush2.msra.mxu0 0.0
  %1457 = vmatprep.subr.mxu0 0.0
  %1458 = vmatpush2.msra.mxu0 0.0
  %1459 = vmatprep.subr.mxu0 0.0
  %1460 = vmatpush2.msra.mxu0 0.0
  %1461 = vmatprep.subr.mxu0 0.0
  %1462 = vmatpush2.msra.mxu0 0.0
  %1463 = vmatprep.subr.mxu0 0.0
  %1464 = vmatpush2.msra.mxu0 0.0
  %1465 = vmatprep.subr.mxu0 0.0
  %1466 = vmatpush2.msra.mxu0 0.0
  %1467 = vmatprep.mubr.f32.mxu0 0.0
  %1468 = vmatmul.mubr.f32.gmra.mxu0 %v1387
  %v1469 = vpop.f32.mrf.mxu0
  %v1470 = vadd.f32 0.0, %v1469
  %v1471 = vpop.f32.mrf.mxu0
  %1472 = vmatprep.mubr.f32.mxu0 0.0
  %1473 = vmatmul.mubr.f32.gmra.mxu0 %v1389
  %v1474 = vpop.f32.mrf.mxu0
  %v1475 = vadd.f32 0.0, %v1474
  %v1476 = vpop.f32.mrf.mxu0
  %1477 = vmatprep.mubr.f32.mxu0 0.0
  %1478 = vmatmul.mubr.f32.gmra.mxu0 %v1391
  %v1479 = vpop.f32.mrf.mxu0
  %v1480 = vadd.f32 0.0, %v1479
  %v1481 = vpop.f32.mrf.mxu0
  %1482 = vmatprep.mubr.f32.mxu0 0.0
  %1483 = vmatmul.mubr.f32.gmra.mxu0 %v1393
  %v1484 = vpop.f32.mrf.mxu0
  %v1485 = vadd.f32 0.0, %v1484
  %v1486 = vpop.f32.mrf.mxu0
  %1487 = vmatprep.mubr.f32.mxu0 0.0
  %1488 = vmatmul.mubr.f32.gmra.mxu0 %v1395
  %v1489 = vpop.f32.mrf.mxu0
  %v1490 = vadd.f32 0.0, %v1489
  %v1491 = vpop.f32.mrf.mxu0
  %1492 = vmatprep.mubr.f32.mxu0 0.0
  %1493 = vmatmul.mubr.f32.gmra.mxu0 %v1397
  %v1494 = vpop.f32.mrf.mxu0
  %v1495 = vadd.f32 0.0, %v1494
  %v1496 = vpop.f32.mrf.mxu0
  %1497 = vmatprep.mubr.f32.mxu0 0.0
  %1498 = vmatmul.mubr.f32.gmra.mxu0 %v1399
  %v1499 = vpop.f32.mrf.mxu0
  %v1500 = vadd.f32 0.0, %v1499
  %v1501 = vpop.f32.mrf.mxu0
  %1502 = vmatprep.mubr.f32.mxu0 0.0
  %1503 = vmatmul.mubr.f32.gmra.mxu0 %v1401
  %v1504 = vpop.f32.mrf.mxu0
  %v1505 = vadd.f32 0.0, %v1504
  %v1506 = vpop.f32.mrf.mxu0
  %1507 = vdwg.mxu0
  %v1508 = vsel %vm372, %v1470, -inf
  %1509 = vmax.xlane.f32.xlu0 %v1508
  %v1510 = vpop.xlane.xlu0 %1509
  %v1511 = vsel %vm372, %v1475, -inf
  %1512 = vmax.xlane.f32.xlu0 %v1511
  %v1513 = vpop.xlane.xlu0 %1512
  %v1514 = vsel %vm372, %v1480, -inf
  %1515 = vmax.xlane.f32.xlu0 %v1514
  %v1516 = vpop.xlane.xlu0 %1515
  %v1517 = vsel %vm372, %v1485, -inf
  %1518 = vmax.xlane.f32.xlu0 %v1517
  %v1519 = vpop.xlane.xlu0 %1518
  %v1520 = vsel %vm372, %v1490, -inf
  %1521 = vmax.xlane.f32.xlu0 %v1520
  %v1522 = vpop.xlane.xlu0 %1521
  %v1523 = vsel %vm372, %v1495, -inf
  %1524 = vmax.xlane.f32.xlu0 %v1523
  %v1525 = vpop.xlane.xlu0 %1524
  %v1526 = vsel %vm372, %v1500, -inf
  %1527 = vmax.xlane.f32.xlu0 %v1526
  %v1528 = vpop.xlane.xlu0 %1527
  %v1529 = vsel %vm372, %v1505, -inf
  %1530 = vmax.xlane.f32.xlu0 %v1529
  %v1531 = vpop.xlane.xlu0 %1530
  %v1532 = vsub.f32 %v1470, %v1510
  %v1533 = vsub.f32 %v1475, %v1513
  %v1534 = vsub.f32 %v1480, %v1516
  %v1535 = vsub.f32 %v1485, %v1519
  %v1536 = vsub.f32 %v1490, %v1522
  %v1537 = vsub.f32 %v1495, %v1525
  %v1538 = vsub.f32 %v1500, %v1528
  %v1539 = vsub.f32 %v1505, %v1531
  %v1540 = vmul.f32 %v1532, 1.442695
  %v1541 = vpow.pop %v1540
  %v1542 = vmul.f32 %v1533, 1.442695
  %v1543 = vpow.pop %v1542
  %v1544 = vmul.f32 %v1534, 1.442695
  %v1545 = vpow.pop %v1544
  %v1546 = vmul.f32 %v1535, 1.442695
  %v1547 = vpow.pop %v1546
  %v1548 = vmul.f32 %v1536, 1.442695
  %v1549 = vpow.pop %v1548
  %v1550 = vmul.f32 %v1537, 1.442695
  %v1551 = vpow.pop %v1550
  %v1552 = vmul.f32 %v1538, 1.442695
  %v1553 = vpow.pop %v1552
  %v1554 = vmul.f32 %v1539, 1.442695
  %v1555 = vpow.pop %v1554
  %v1556 = vsel %vm372, %v1541, 0.0
  %1557 = vadd.xlane.f32.xlu0 %v1556
  %v1558 = vpop.xlane.xlu0 %1557
  %v1559 = vsel %vm372, %v1543, 0.0
  %1560 = vadd.xlane.f32.xlu0 %v1559
  %v1561 = vpop.xlane.xlu0 %1560
  %v1562 = vsel %vm372, %v1545, 0.0
  %1563 = vadd.xlane.f32.xlu0 %v1562
  %v1564 = vpop.xlane.xlu0 %1563
  %v1565 = vsel %vm372, %v1547, 0.0
  %1566 = vadd.xlane.f32.xlu0 %v1565
  %v1567 = vpop.xlane.xlu0 %1566
  %v1568 = vsel %vm372, %v1549, 0.0
  %1569 = vadd.xlane.f32.xlu0 %v1568
  %v1570 = vpop.xlane.xlu0 %1569
  %v1571 = vsel %vm372, %v1551, 0.0
  %1572 = vadd.xlane.f32.xlu0 %v1571
  %v1573 = vpop.xlane.xlu0 %1572
  %v1574 = vsel %vm372, %v1553, 0.0
  %1575 = vadd.xlane.f32.xlu0 %v1574
  %v1576 = vpop.xlane.xlu0 %1575
  %v1577 = vsel %vm372, %v1555, 0.0
  %1578 = vadd.xlane.f32.xlu0 %v1577
  %v1579 = vpop.xlane.xlu0 %1578
  %v1581 = vsel %vm372, %v1541, 0
  %v1584 = vsel %vm372, %v1543, 0
  %v1587 = vsel %vm372, %v1545, 0
  %v1590 = vsel %vm372, %v1547, 0
  %v1593 = vsel %vm372, %v1549, 0
  %v1596 = vsel %vm372, %v1551, 0
  %v1599 = vsel %vm372, %v1553, 0
  %v1602 = vsel %vm372, %v1555, 0
  %v1605 = vsel %vm372, %v194, 0
  %1607 = vmatprep.subr.mxu0 0.0
  %1608 = vmatpush1.xpose.msra.mxu0 0.0
  %1609 = vmatprep.subr.mxu0 0.0
  %1610 = vmatpush1.xpose.msra.mxu0 0.0
  %1611 = vmatprep.subr.mxu0 0.0
  %1612 = vmatpush1.xpose.msra.mxu0 0.0
  %1613 = vmatprep.subr.mxu0 0.0
  %1614 = vmatpush1.xpose.msra.mxu0 0.0
  %1615 = vmatprep.subr.mxu0 0.0
  %1616 = vmatpush1.xpose.msra.mxu0 0.0
  %1617 = vmatprep.subr.mxu0 0.0
  %1618 = vmatpush1.xpose.msra.mxu0 0.0
  %1619 = vmatprep.subr.mxu0 0.0
  %1620 = vmatpush1.xpose.msra.mxu0 0.0
  %1621 = vmatprep.subr.mxu0 0.0
  %1622 = vmatpush1.xpose.msra.mxu0 0.0
  %1623 = vmatprep.subr.mxu0 0.0
  %1624 = vmatpush1.xpose.msra.mxu0 0.0
  %1625 = vmatprep.subr.mxu0 0.0
  %1626 = vmatpush1.xpose.msra.mxu0 0.0
  %1627 = vmatprep.subr.mxu0 0.0
  %1628 = vmatpush1.xpose.msra.mxu0 0.0
  %1629 = vmatprep.subr.mxu0 0.0
  %1630 = vmatpush1.xpose.msra.mxu0 0.0
  %1631 = vmatprep.subr.mxu0 0.0
  %1632 = vmatpush1.xpose.msra.mxu0 0.0
  %1633 = vmatprep.subr.mxu0 0.0
  %1634 = vmatpush1.xpose.msra.mxu0 0.0
  %1635 = vmatprep.subr.mxu0 0.0
  %1636 = vmatpush1.xpose.msra.mxu0 0.0
  %1637 = vmatprep.subr.mxu0 0.0
  %1638 = vmatpush1.xpose.msra.mxu0 %v1605
  %1639 = vmatprep.subr.mxu0 0.0
  %1640 = vmatpush2.xpose.msra.mxu0 0.0
  %1641 = vmatprep.subr.mxu0 0.0
  %1642 = vmatpush2.xpose.msra.mxu0 0.0
  %1643 = vmatprep.subr.mxu0 0.0
  %1644 = vmatpush2.xpose.msra.mxu0 0.0
  %1645 = vmatprep.subr.mxu0 0.0
  %1646 = vmatpush2.xpose.msra.mxu0 0.0
  %1647 = vmatprep.subr.mxu0 0.0
  %1648 = vmatpush2.xpose.msra.mxu0 0.0
  %1649 = vmatprep.subr.mxu0 0.0
  %1650 = vmatpush2.xpose.msra.mxu0 0.0
  %1651 = vmatprep.subr.mxu0 0.0
  %1652 = vmatpush2.xpose.msra.mxu0 0.0
  %1653 = vmatprep.subr.mxu0 0.0
  %1654 = vmatpush2.xpose.msra.mxu0 0.0
  %1655 = vmatprep.subr.mxu0 0.0
  %1656 = vmatpush2.xpose.msra.mxu0 0.0
  %1657 = vmatprep.subr.mxu0 0.0
  %1658 = vmatpush2.xpose.msra.mxu0 0.0
  %1659 = vmatprep.subr.mxu0 0.0
  %1660 = vmatpush2.xpose.msra.mxu0 0.0
  %1661 = vmatprep.subr.mxu0 0.0
  %1662 = vmatpush2.xpose.msra.mxu0 0.0
  %1663 = vmatprep.subr.mxu0 0.0
  %1664 = vmatpush2.xpose.msra.mxu0 0.0
  %1665 = vmatprep.subr.mxu0 0.0
  %1666 = vmatpush2.xpose.msra.mxu0 0.0
  %1667 = vmatprep.subr.mxu0 0.0
  %1668 = vmatpush2.xpose.msra.mxu0 0.0
  %1669 = vmatprep.subr.mxu0 0.0
  %1670 = vmatpush2.xpose.msra.mxu0 0.0
  %1671 = vmatprep.mubr.f32.mxu0 0.0
  %1672 = vmatmul.mubr.f32.gmra.mxu0 %v1581
  %v1673 = vpop.f32.mrf.mxu0
  %v1674 = vadd.f32 0.0, %v1673
  %v1675 = vpop.f32.mrf.mxu0
  %1676 = vmatprep.mubr.f32.mxu0 0.0
  %1677 = vmatmul.mubr.f32.gmra.mxu0 %v1584
  %v1678 = vpop.f32.mrf.mxu0
  %v1679 = vadd.f32 0.0, %v1678
  %v1680 = vpop.f32.mrf.mxu0
  %1681 = vmatprep.mubr.f32.mxu0 0.0
  %1682 = vmatmul.mubr.f32.gmra.mxu0 %v1587
  %v1683 = vpop.f32.mrf.mxu0
  %v1684 = vadd.f32 0.0, %v1683
  %v1685 = vpop.f32.mrf.mxu0
  %1686 = vmatprep.mubr.f32.mxu0 0.0
  %1687 = vmatmul.mubr.f32.gmra.mxu0 %v1590
  %v1688 = vpop.f32.mrf.mxu0
  %v1689 = vadd.f32 0.0, %v1688
  %v1690 = vpop.f32.mrf.mxu0
  %1691 = vmatprep.mubr.f32.mxu0 0.0
  %1692 = vmatmul.mubr.f32.gmra.mxu0 %v1593
  %v1693 = vpop.f32.mrf.mxu0
  %v1694 = vadd.f32 0.0, %v1693
  %v1695 = vpop.f32.mrf.mxu0
  %1696 = vmatprep.mubr.f32.mxu0 0.0
  %1697 = vmatmul.mubr.f32.gmra.mxu0 %v1596
  %v1698 = vpop.f32.mrf.mxu0
  %v1699 = vadd.f32 0.0, %v1698
  %v1700 = vpop.f32.mrf.mxu0
  %1701 = vmatprep.mubr.f32.mxu0 0.0
  %1702 = vmatmul.mubr.f32.gmra.mxu0 %v1599
  %v1703 = vpop.f32.mrf.mxu0
  %v1704 = vadd.f32 0.0, %v1703
  %v1705 = vpop.f32.mrf.mxu0
  %1706 = vmatprep.mubr.f32.mxu0 0.0
  %1707 = vmatmul.mubr.f32.gmra.mxu0 %v1602
  %v1708 = vpop.f32.mrf.mxu0
  %v1709 = vadd.f32 0.0, %v1708
  %v1710 = vpop.f32.mrf.mxu0
  %1711 = vdwg.mxu0
  %v1712 = vrcp.pop %v1558
  %v1713 = vrcp.pop %v1561
  %v1714 = vrcp.pop %v1564
  %v1715 = vrcp.pop %v1567
  %v1716 = vrcp.pop %v1570
  %v1717 = vrcp.pop %v1573
  %v1718 = vrcp.pop %v1576
  %v1719 = vrcp.pop %v1579
  %v1720 = vmul.f32 %v1674, %v1712
  %v1721 = vmul.f32 %v1679, %v1713
  %v1722 = vmul.f32 %v1684, %v1714
  %v1723 = vmul.f32 %v1689, %v1715
  %v1724 = vmul.f32 %v1694, %v1716
  %v1725 = vmul.f32 %v1699, %v1717
  %v1726 = vmul.f32 %v1704, %v1718
  %v1727 = vmul.f32 %v1709, %v1719
  %1728 = vrot.lane.b32.xlu0 %v596, 104
  %v1729 = vpop.permute.xlu0 %1728
  %v1731 = vadd.f32 %v1720, %v1729
  %v1732 = vadd.f32 %v1721, %v1729
  %v1733 = vadd.f32 %v1722, %v1729
  %v1734 = vadd.f32 %v1723, %v1729
  %v1735 = vadd.f32 %v1724, %v1729
  %v1736 = vadd.f32 %v1725, %v1729
  %v1737 = vadd.f32 %v1726, %v1729
  %v1738 = vadd.f32 %v1727, %v1729
  %s1739 = scalar_lea.vmem %s4, 192
  %1740 = vst.msk [vmem:[%s1739] sm:$0xff] %vm242, %v1731
  %1741 = vst.msk [vmem:[%s1739 + $0x8] sm:$0xff] %vm242, %v1732
  %1742 = vst.msk [vmem:[%s1739 + $0x10] sm:$0xff] %vm242, %v1733
  %1743 = vst.msk [vmem:[%s1739 + $0x18] sm:$0xff] %vm242, %v1734
  %1744 = vst.msk [vmem:[%s1739 + $0x20] sm:$0xff] %vm242, %v1735
  %1745 = vst.msk [vmem:[%s1739 + $0x28] sm:$0xff] %vm242, %v1736
  %1746 = vst.msk [vmem:[%s1739 + $0x30] sm:$0xff] %vm242, %v1737
  %1747 = vst.msk [vmem:[%s1739 + $0x38] sm:$0xff] %vm242, %v1738
  %s1748 = scalar_lea.vmem %s0, 32
  %v1749 = vld [vmem:[%s1748] sm:$0xff]
  %v1750 = vld [vmem:[%s1748 + $0x8] sm:$0xff]
  %v1751 = vld [vmem:[%s1748 + $0x10] sm:$0xff]
  %v1752 = vld [vmem:[%s1748 + $0x18] sm:$0xff]
  %1753 = vmatprep.subr.mxu0 0.0
  %1754 = vmatpush1.msra.mxu0 0.0
  %1755 = vmatprep.subr.mxu0 0.0
  %1756 = vmatpush1.msra.mxu0 0.0
  %1757 = vmatprep.subr.mxu0 0.0
  %1758 = vmatpush1.msra.mxu0 0.0
  %1759 = vmatprep.subr.mxu0 0.0
  %1760 = vmatpush1.msra.mxu0 0.0
  %1761 = vmatprep.subr.mxu0 0.0
  %1762 = vmatpush1.msra.mxu0 0.0
  %1763 = vmatprep.subr.mxu0 0.0
  %1764 = vmatpush1.msra.mxu0 0.0
  %1765 = vmatprep.subr.mxu0 0.0
  %1766 = vmatpush1.msra.mxu0 0.0
  %1767 = vmatprep.subr.mxu0 0.0
  %1768 = vmatpush1.msra.mxu0 0.0
  %1769 = vmatprep.subr.mxu0 0.0
  %1770 = vmatpush1.msra.mxu0 0.0
  %1771 = vmatprep.subr.mxu0 0.0
  %1772 = vmatpush1.msra.mxu0 0.0
  %1773 = vmatprep.subr.mxu0 0.0
  %1774 = vmatpush1.msra.mxu0 0.0
  %1775 = vmatprep.subr.mxu0 0.0
  %1776 = vmatpush1.msra.mxu0 0.0
  %1777 = vmatprep.subr.mxu0 0.0
  %1778 = vmatpush1.msra.mxu0 %v1752
  %1779 = vmatprep.subr.mxu0 0.0
  %1780 = vmatpush1.msra.mxu0 %v1751
  %1781 = vmatprep.subr.mxu0 0.0
  %1782 = vmatpush1.msra.mxu0 %v1750
  %1783 = vmatprep.subr.mxu0 0.0
  %1784 = vmatpush1.msra.mxu0 %v1749
  %1785 = vmatprep.subr.mxu0 0.0
  %1786 = vmatpush2.msra.mxu0 0.0
  %1787 = vmatprep.subr.mxu0 0.0
  %1788 = vmatpush2.msra.mxu0 0.0
  %1789 = vmatprep.subr.mxu0 0.0
  %1790 = vmatpush2.msra.mxu0 0.0
  %1791 = vmatprep.subr.mxu0 0.0
  %1792 = vmatpush2.msra.mxu0 0.0
  %1793 = vmatprep.subr.mxu0 0.0
  %1794 = vmatpush2.msra.mxu0 0.0
  %1795 = vmatprep.subr.mxu0 0.0
  %1796 = vmatpush2.msra.mxu0 0.0
  %1797 = vmatprep.subr.mxu0 0.0
  %1798 = vmatpush2.msra.mxu0 0.0
  %1799 = vmatprep.subr.mxu0 0.0
  %1800 = vmatpush2.msra.mxu0 0.0
  %1801 = vmatprep.subr.mxu0 0.0
  %1802 = vmatpush2.msra.mxu0 0.0
  %1803 = vmatprep.subr.mxu0 0.0
  %1804 = vmatpush2.msra.mxu0 0.0
  %1805 = vmatprep.subr.mxu0 0.0
  %1806 = vmatpush2.msra.mxu0 0.0
  %1807 = vmatprep.subr.mxu0 0.0
  %1808 = vmatpush2.msra.mxu0 0.0
  %1809 = vmatprep.subr.mxu0 0.0
  %1810 = vmatpush2.msra.mxu0 0.0
  %1811 = vmatprep.subr.mxu0 0.0
  %1812 = vmatpush2.msra.mxu0 0.0
  %1813 = vmatprep.subr.mxu0 0.0
  %1814 = vmatpush2.msra.mxu0 0.0
  %1815 = vmatprep.subr.mxu0 0.0
  %1816 = vmatpush2.msra.mxu0 0.0
  %1817 = vmatprep.mubr.f32.mxu0 0.0
  %1818 = vmatmul.mubr.f32.gmra.mxu0 %v37
  %v1819 = vpop.f32.mrf.mxu0
  %v1820 = vadd.f32 0.0, %v1819
  %v1821 = vpop.f32.mrf.mxu0
  %1822 = vmatprep.mubr.f32.mxu0 0.0
  %1823 = vmatmul.mubr.f32.gmra.mxu0 %v40
  %v1824 = vpop.f32.mrf.mxu0
  %v1825 = vadd.f32 0.0, %v1824
  %v1826 = vpop.f32.mrf.mxu0
  %1827 = vmatprep.mubr.f32.mxu0 0.0
  %1828 = vmatmul.mubr.f32.gmra.mxu0 %v43
  %v1829 = vpop.f32.mrf.mxu0
  %v1830 = vadd.f32 0.0, %v1829
  %v1831 = vpop.f32.mrf.mxu0
  %1832 = vmatprep.mubr.f32.mxu0 0.0
  %1833 = vmatmul.mubr.f32.gmra.mxu0 %v46
  %v1834 = vpop.f32.mrf.mxu0
  %v1835 = vadd.f32 0.0, %v1834
  %v1836 = vpop.f32.mrf.mxu0
  %1837 = vmatprep.mubr.f32.mxu0 0.0
  %1838 = vmatmul.mubr.f32.gmra.mxu0 %v49
  %v1839 = vpop.f32.mrf.mxu0
  %v1840 = vadd.f32 0.0, %v1839
  %v1841 = vpop.f32.mrf.mxu0
  %1842 = vmatprep.mubr.f32.mxu0 0.0
  %1843 = vmatmul.mubr.f32.gmra.mxu0 %v52
  %v1844 = vpop.f32.mrf.mxu0
  %v1845 = vadd.f32 0.0, %v1844
  %v1846 = vpop.f32.mrf.mxu0
  %1847 = vmatprep.mubr.f32.mxu0 0.0
  %1848 = vmatmul.mubr.f32.gmra.mxu0 %v55
  %v1849 = vpop.f32.mrf.mxu0
  %v1850 = vadd.f32 0.0, %v1849
  %v1851 = vpop.f32.mrf.mxu0
  %1852 = vmatprep.mubr.f32.mxu0 0.0
  %1853 = vmatmul.mubr.f32.gmra.mxu0 %v58
  %v1854 = vpop.f32.mrf.mxu0
  %v1855 = vadd.f32 0.0, %v1854
  %v1856 = vpop.f32.mrf.mxu0
  %1857 = vmatprep.mubr.f32.mxu0 0.0
  %1858 = vmatmul.mubr.f32.gmra.mxu0 %v61
  %v1859 = vpop.f32.mrf.mxu0
  %v1860 = vadd.f32 0.0, %v1859
  %v1861 = vpop.f32.mrf.mxu0
  %1862 = vmatprep.mubr.f32.mxu0 0.0
  %1863 = vmatmul.mubr.f32.gmra.mxu0 %v64
  %v1864 = vpop.f32.mrf.mxu0
  %v1865 = vadd.f32 0.0, %v1864
  %v1866 = vpop.f32.mrf.mxu0
  %1867 = vmatprep.mubr.f32.mxu0 0.0
  %1868 = vmatmul.mubr.f32.gmra.mxu0 %v67
  %v1869 = vpop.f32.mrf.mxu0
  %v1870 = vadd.f32 0.0, %v1869
  %v1871 = vpop.f32.mrf.mxu0
  %1872 = vmatprep.mubr.f32.mxu0 0.0
  %1873 = vmatmul.mubr.f32.gmra.mxu0 %v70
  %v1874 = vpop.f32.mrf.mxu0
  %v1875 = vadd.f32 0.0, %v1874
  %v1876 = vpop.f32.mrf.mxu0
  %1877 = vdwg.mxu0
  %1878 = vxpose.xlu0.b32.start [1/16] %v1820, 128
  %1879 = vxpose.xlu0.b32.cont [2/16] %v1825, 128
  %1880 = vxpose.xlu0.b32.cont [3/16] %v1830, 128
  %1881 = vxpose.xlu0.b32.cont [4/16] %v1835, 128
  %1882 = vxpose.xlu0.b32.cont [5/16] 0.0, 128
  %1883 = vxpose.xlu0.b32.cont [6/16] 0.0, 128
  %1884 = vxpose.xlu0.b32.cont [7/16] 0.0, 128
  %1885 = vxpose.xlu0.b32.cont [8/16] 0.0, 128
  %1886 = vxpose.xlu0.b32.cont [9/16] 0.0, 128
  %1887 = vxpose.xlu0.b32.cont [10/16] 0.0, 128
  %1888 = vxpose.xlu0.b32.cont [11/16] 0.0, 128
  %1889 = vxpose.xlu0.b32.cont [12/16] 0.0, 128
  %1890 = vxpose.xlu0.b32.cont [13/16] 0.0, 128
  %1891 = vxpose.xlu0.b32.cont [14/16] 0.0, 128
  %1892 = vxpose.xlu0.b32.cont [15/16] 0.0, 128
  %1893 = vxpose.xlu0.b32.end [16/16] 0.0, 128
  %v1894 = vpop.trf.xlu0
  %v1895 = vpop.trf.xlu0
  %v1896 = vpop.trf.xlu0
  %v1897 = vpop.trf.xlu0
  %v1898 = vpop.trf.xlu0
  %v1899 = vpop.trf.xlu0
  %v1900 = vpop.trf.xlu0
  %v1901 = vpop.trf.xlu0
  %v1902 = vpop.trf.xlu0
  %v1903 = vpop.trf.xlu0
  %v1904 = vpop.trf.xlu0
  %v1905 = vpop.trf.xlu0
  %v1906 = vpop.trf.xlu0
  %v1907 = vpop.trf.xlu0
  %v1908 = vpop.trf.xlu0
  %v1909 = vpop.trf.xlu0
  %v1910 = vadd.f32 %v1894, %v232
  %v1911 = vadd.f32 %v1895, %v232
  %v1912 = vadd.f32 %v1896, %v232
  %v1913 = vadd.f32 %v1897, %v232
  %v1914 = vadd.f32 %v1898, %v232
  %v1915 = vadd.f32 %v1899, %v232
  %v1916 = vadd.f32 %v1900, %v232
  %v1917 = vadd.f32 %v1901, %v232
  %v1918 = vadd.f32 %v1840, %v29
  %v1920 = vsel %vm242, %v1910, 0
  %v1923 = vsel %vm242, %v1911, 0
  %v1926 = vsel %vm242, %v1912, 0
  %v1929 = vsel %vm242, %v1913, 0
  %v1932 = vsel %vm242, %v1914, 0
  %v1935 = vsel %vm242, %v1915, 0
  %v1938 = vsel %vm242, %v1916, 0
  %v1941 = vsel %vm242, %v1917, 0
  %1943 = vmatprep.subr.mxu0 0.0
  %1944 = vmatpush1.msra.mxu0 0.0
  %1945 = vmatprep.subr.mxu0 0.0
  %1946 = vmatpush1.msra.mxu0 0.0
  %1947 = vmatprep.subr.mxu0 0.0
  %1948 = vmatpush1.msra.mxu0 0.0
  %1949 = vmatprep.subr.mxu0 0.0
  %1950 = vmatpush1.msra.mxu0 0.0
  %1951 = vmatprep.subr.mxu0 0.0
  %1952 = vmatpush1.msra.mxu0 0.0
  %1953 = vmatprep.subr.mxu0 0.0
  %1954 = vmatpush1.msra.mxu0 0.0
  %1955 = vmatprep.subr.mxu0 0.0
  %1956 = vmatpush1.msra.mxu0 0.0
  %1957 = vmatprep.subr.mxu0 0.0
  %1958 = vmatpush1.msra.mxu0 0.0
  %1959 = vmatprep.subr.mxu0 0.0
  %1960 = vmatpush1.msra.mxu0 0.0
  %1961 = vmatprep.subr.mxu0 0.0
  %1962 = vmatpush1.msra.mxu0 0.0
  %1963 = vmatprep.subr.mxu0 0.0
  %1964 = vmatpush1.msra.mxu0 0.0
  %1965 = vmatprep.subr.mxu0 0.0
  %1966 = vmatpush1.msra.mxu0 0.0
  %1967 = vmatprep.subr.mxu0 0.0
  %1968 = vmatpush1.msra.mxu0 0.0
  %1969 = vmatprep.subr.mxu0 0.0
  %1970 = vmatpush1.msra.mxu0 0.0
  %1971 = vmatprep.subr.mxu0 0.0
  %1972 = vmatpush1.msra.mxu0 0.0
  %1973 = vmatprep.subr.mxu0 0.0
  %1974 = vmatpush1.msra.mxu0 %v1918
  %1975 = vmatprep.subr.mxu0 0.0
  %1976 = vmatpush2.msra.mxu0 0.0
  %1977 = vmatprep.subr.mxu0 0.0
  %1978 = vmatpush2.msra.mxu0 0.0
  %1979 = vmatprep.subr.mxu0 0.0
  %1980 = vmatpush2.msra.mxu0 0.0
  %1981 = vmatprep.subr.mxu0 0.0
  %1982 = vmatpush2.msra.mxu0 0.0
  %1983 = vmatprep.subr.mxu0 0.0
  %1984 = vmatpush2.msra.mxu0 0.0
  %1985 = vmatprep.subr.mxu0 0.0
  %1986 = vmatpush2.msra.mxu0 0.0
  %1987 = vmatprep.subr.mxu0 0.0
  %1988 = vmatpush2.msra.mxu0 0.0
  %1989 = vmatprep.subr.mxu0 0.0
  %1990 = vmatpush2.msra.mxu0 0.0
  %1991 = vmatprep.subr.mxu0 0.0
  %1992 = vmatpush2.msra.mxu0 0.0
  %1993 = vmatprep.subr.mxu0 0.0
  %1994 = vmatpush2.msra.mxu0 0.0
  %1995 = vmatprep.subr.mxu0 0.0
  %1996 = vmatpush2.msra.mxu0 0.0
  %1997 = vmatprep.subr.mxu0 0.0
  %1998 = vmatpush2.msra.mxu0 0.0
  %1999 = vmatprep.subr.mxu0 0.0
  %2000 = vmatpush2.msra.mxu0 0.0
  %2001 = vmatprep.subr.mxu0 0.0
  %2002 = vmatpush2.msra.mxu0 0.0
  %2003 = vmatprep.subr.mxu0 0.0
  %2004 = vmatpush2.msra.mxu0 0.0
  %2005 = vmatprep.subr.mxu0 0.0
  %2006 = vmatpush2.msra.mxu0 0.0
  %2007 = vmatprep.mubr.f32.mxu0 0.0
  %2008 = vmatmul.mubr.f32.gmra.mxu0 %v1920
  %v2009 = vpop.f32.mrf.mxu0
  %v2010 = vadd.f32 0.0, %v2009
  %v2011 = vpop.f32.mrf.mxu0
  %2012 = vmatprep.mubr.f32.mxu0 0.0
  %2013 = vmatmul.mubr.f32.gmra.mxu0 %v1923
  %v2014 = vpop.f32.mrf.mxu0
  %v2015 = vadd.f32 0.0, %v2014
  %v2016 = vpop.f32.mrf.mxu0
  %2017 = vmatprep.mubr.f32.mxu0 0.0
  %2018 = vmatmul.mubr.f32.gmra.mxu0 %v1926
  %v2019 = vpop.f32.mrf.mxu0
  %v2020 = vadd.f32 0.0, %v2019
  %v2021 = vpop.f32.mrf.mxu0
  %2022 = vmatprep.mubr.f32.mxu0 0.0
  %2023 = vmatmul.mubr.f32.gmra.mxu0 %v1929
  %v2024 = vpop.f32.mrf.mxu0
  %v2025 = vadd.f32 0.0, %v2024
  %v2026 = vpop.f32.mrf.mxu0
  %2027 = vmatprep.mubr.f32.mxu0 0.0
  %2028 = vmatmul.mubr.f32.gmra.mxu0 %v1932
  %v2029 = vpop.f32.mrf.mxu0
  %v2030 = vadd.f32 0.0, %v2029
  %v2031 = vpop.f32.mrf.mxu0
  %2032 = vmatprep.mubr.f32.mxu0 0.0
  %2033 = vmatmul.mubr.f32.gmra.mxu0 %v1935
  %v2034 = vpop.f32.mrf.mxu0
  %v2035 = vadd.f32 0.0, %v2034
  %v2036 = vpop.f32.mrf.mxu0
  %2037 = vmatprep.mubr.f32.mxu0 0.0
  %2038 = vmatmul.mubr.f32.gmra.mxu0 %v1938
  %v2039 = vpop.f32.mrf.mxu0
  %v2040 = vadd.f32 0.0, %v2039
  %v2041 = vpop.f32.mrf.mxu0
  %2042 = vmatprep.mubr.f32.mxu0 0.0
  %2043 = vmatmul.mubr.f32.gmra.mxu0 %v1941
  %v2044 = vpop.f32.mrf.mxu0
  %v2045 = vadd.f32 0.0, %v2044
  %v2046 = vpop.f32.mrf.mxu0
  %2047 = vdwg.mxu0
  %v2048 = vsel %vm372, %v2010, -inf
  %2049 = vmax.xlane.f32.xlu0 %v2048
  %v2050 = vpop.xlane.xlu0 %2049
  %v2051 = vsel %vm372, %v2015, -inf
  %2052 = vmax.xlane.f32.xlu0 %v2051
  %v2053 = vpop.xlane.xlu0 %2052
  %v2054 = vsel %vm372, %v2020, -inf
  %2055 = vmax.xlane.f32.xlu0 %v2054
  %v2056 = vpop.xlane.xlu0 %2055
  %v2057 = vsel %vm372, %v2025, -inf
  %2058 = vmax.xlane.f32.xlu0 %v2057
  %v2059 = vpop.xlane.xlu0 %2058
  %v2060 = vsel %vm372, %v2030, -inf
  %2061 = vmax.xlane.f32.xlu0 %v2060
  %v2062 = vpop.xlane.xlu0 %2061
  %v2063 = vsel %vm372, %v2035, -inf
  %2064 = vmax.xlane.f32.xlu0 %v2063
  %v2065 = vpop.xlane.xlu0 %2064
  %v2066 = vsel %vm372, %v2040, -inf
  %2067 = vmax.xlane.f32.xlu0 %v2066
  %v2068 = vpop.xlane.xlu0 %2067
  %v2069 = vsel %vm372, %v2045, -inf
  %2070 = vmax.xlane.f32.xlu0 %v2069
  %v2071 = vpop.xlane.xlu0 %2070
  %v2072 = vsub.f32 %v2010, %v2050
  %v2073 = vsub.f32 %v2015, %v2053
  %v2074 = vsub.f32 %v2020, %v2056
  %v2075 = vsub.f32 %v2025, %v2059
  %v2076 = vsub.f32 %v2030, %v2062
  %v2077 = vsub.f32 %v2035, %v2065
  %v2078 = vsub.f32 %v2040, %v2068
  %v2079 = vsub.f32 %v2045, %v2071
  %v2080 = vmul.f32 %v2072, 1.442695
  %v2081 = vpow.pop %v2080
  %v2082 = vmul.f32 %v2073, 1.442695
  %v2083 = vpow.pop %v2082
  %v2084 = vmul.f32 %v2074, 1.442695
  %v2085 = vpow.pop %v2084
  %v2086 = vmul.f32 %v2075, 1.442695
  %v2087 = vpow.pop %v2086
  %v2088 = vmul.f32 %v2076, 1.442695
  %v2089 = vpow.pop %v2088
  %v2090 = vmul.f32 %v2077, 1.442695
  %v2091 = vpow.pop %v2090
  %v2092 = vmul.f32 %v2078, 1.442695
  %v2093 = vpow.pop %v2092
  %v2094 = vmul.f32 %v2079, 1.442695
  %v2095 = vpow.pop %v2094
  %v2096 = vsel %vm372, %v2081, 0.0
  %2097 = vadd.xlane.f32.xlu0 %v2096
  %v2098 = vpop.xlane.xlu0 %2097
  %v2099 = vsel %vm372, %v2083, 0.0
  %2100 = vadd.xlane.f32.xlu0 %v2099
  %v2101 = vpop.xlane.xlu0 %2100
  %v2102 = vsel %vm372, %v2085, 0.0
  %2103 = vadd.xlane.f32.xlu0 %v2102
  %v2104 = vpop.xlane.xlu0 %2103
  %v2105 = vsel %vm372, %v2087, 0.0
  %2106 = vadd.xlane.f32.xlu0 %v2105
  %v2107 = vpop.xlane.xlu0 %2106
  %v2108 = vsel %vm372, %v2089, 0.0
  %2109 = vadd.xlane.f32.xlu0 %v2108
  %v2110 = vpop.xlane.xlu0 %2109
  %v2111 = vsel %vm372, %v2091, 0.0
  %2112 = vadd.xlane.f32.xlu0 %v2111
  %v2113 = vpop.xlane.xlu0 %2112
  %v2114 = vsel %vm372, %v2093, 0.0
  %2115 = vadd.xlane.f32.xlu0 %v2114
  %v2116 = vpop.xlane.xlu0 %2115
  %v2117 = vsel %vm372, %v2095, 0.0
  %2118 = vadd.xlane.f32.xlu0 %v2117
  %v2119 = vpop.xlane.xlu0 %2118
  %v2121 = vsel %vm372, %v2081, 0
  %v2124 = vsel %vm372, %v2083, 0
  %v2127 = vsel %vm372, %v2085, 0
  %v2130 = vsel %vm372, %v2087, 0
  %v2133 = vsel %vm372, %v2089, 0
  %v2136 = vsel %vm372, %v2091, 0
  %v2139 = vsel %vm372, %v2093, 0
  %v2142 = vsel %vm372, %v2095, 0
  %v2145 = vsel %vm372, %v1860, 0
  %2147 = vmatprep.subr.mxu0 0.0
  %2148 = vmatpush1.xpose.msra.mxu0 0.0
  %2149 = vmatprep.subr.mxu0 0.0
  %2150 = vmatpush1.xpose.msra.mxu0 0.0
  %2151 = vmatprep.subr.mxu0 0.0
  %2152 = vmatpush1.xpose.msra.mxu0 0.0
  %2153 = vmatprep.subr.mxu0 0.0
  %2154 = vmatpush1.xpose.msra.mxu0 0.0
  %2155 = vmatprep.subr.mxu0 0.0
  %2156 = vmatpush1.xpose.msra.mxu0 0.0
  %2157 = vmatprep.subr.mxu0 0.0
  %2158 = vmatpush1.xpose.msra.mxu0 0.0
  %2159 = vmatprep.subr.mxu0 0.0
  %2160 = vmatpush1.xpose.msra.mxu0 0.0
  %2161 = vmatprep.subr.mxu0 0.0
  %2162 = vmatpush1.xpose.msra.mxu0 0.0
  %2163 = vmatprep.subr.mxu0 0.0
  %2164 = vmatpush1.xpose.msra.mxu0 0.0
  %2165 = vmatprep.subr.mxu0 0.0
  %2166 = vmatpush1.xpose.msra.mxu0 0.0
  %2167 = vmatprep.subr.mxu0 0.0
  %2168 = vmatpush1.xpose.msra.mxu0 0.0
  %2169 = vmatprep.subr.mxu0 0.0
  %2170 = vmatpush1.xpose.msra.mxu0 0.0
  %2171 = vmatprep.subr.mxu0 0.0
  %2172 = vmatpush1.xpose.msra.mxu0 0.0
  %2173 = vmatprep.subr.mxu0 0.0
  %2174 = vmatpush1.xpose.msra.mxu0 0.0
  %2175 = vmatprep.subr.mxu0 0.0
  %2176 = vmatpush1.xpose.msra.mxu0 0.0
  %2177 = vmatprep.subr.mxu0 0.0
  %2178 = vmatpush1.xpose.msra.mxu0 %v2145
  %2179 = vmatprep.subr.mxu0 0.0
  %2180 = vmatpush2.xpose.msra.mxu0 0.0
  %2181 = vmatprep.subr.mxu0 0.0
  %2182 = vmatpush2.xpose.msra.mxu0 0.0
  %2183 = vmatprep.subr.mxu0 0.0
  %2184 = vmatpush2.xpose.msra.mxu0 0.0
  %2185 = vmatprep.subr.mxu0 0.0
  %2186 = vmatpush2.xpose.msra.mxu0 0.0
  %2187 = vmatprep.subr.mxu0 0.0
  %2188 = vmatpush2.xpose.msra.mxu0 0.0
  %2189 = vmatprep.subr.mxu0 0.0
  %2190 = vmatpush2.xpose.msra.mxu0 0.0
  %2191 = vmatprep.subr.mxu0 0.0
  %2192 = vmatpush2.xpose.msra.mxu0 0.0
  %2193 = vmatprep.subr.mxu0 0.0
  %2194 = vmatpush2.xpose.msra.mxu0 0.0
  %2195 = vmatprep.subr.mxu0 0.0
  %2196 = vmatpush2.xpose.msra.mxu0 0.0
  %2197 = vmatprep.subr.mxu0 0.0
  %2198 = vmatpush2.xpose.msra.mxu0 0.0
  %2199 = vmatprep.subr.mxu0 0.0
  %2200 = vmatpush2.xpose.msra.mxu0 0.0
  %2201 = vmatprep.subr.mxu0 0.0
  %2202 = vmatpush2.xpose.msra.mxu0 0.0
  %2203 = vmatprep.subr.mxu0 0.0
  %2204 = vmatpush2.xpose.msra.mxu0 0.0
  %2205 = vmatprep.subr.mxu0 0.0
  %2206 = vmatpush2.xpose.msra.mxu0 0.0
  %2207 = vmatprep.subr.mxu0 0.0
  %2208 = vmatpush2.xpose.msra.mxu0 0.0
  %2209 = vmatprep.subr.mxu0 0.0
  %2210 = vmatpush2.xpose.msra.mxu0 0.0
  %2211 = vmatprep.mubr.f32.mxu0 0.0
  %2212 = vmatmul.mubr.f32.gmra.mxu0 %v2121
  %v2213 = vpop.f32.mrf.mxu0
  %v2214 = vadd.f32 0.0, %v2213
  %v2215 = vpop.f32.mrf.mxu0
  %2216 = vmatprep.mubr.f32.mxu0 0.0
  %2217 = vmatmul.mubr.f32.gmra.mxu0 %v2124
  %v2218 = vpop.f32.mrf.mxu0
  %v2219 = vadd.f32 0.0, %v2218
  %v2220 = vpop.f32.mrf.mxu0
  %2221 = vmatprep.mubr.f32.mxu0 0.0
  %2222 = vmatmul.mubr.f32.gmra.mxu0 %v2127
  %v2223 = vpop.f32.mrf.mxu0
  %v2224 = vadd.f32 0.0, %v2223
  %v2225 = vpop.f32.mrf.mxu0
  %2226 = vmatprep.mubr.f32.mxu0 0.0
  %2227 = vmatmul.mubr.f32.gmra.mxu0 %v2130
  %v2228 = vpop.f32.mrf.mxu0
  %v2229 = vadd.f32 0.0, %v2228
  %v2230 = vpop.f32.mrf.mxu0
  %2231 = vmatprep.mubr.f32.mxu0 0.0
  %2232 = vmatmul.mubr.f32.gmra.mxu0 %v2133
  %v2233 = vpop.f32.mrf.mxu0
  %v2234 = vadd.f32 0.0, %v2233
  %v2235 = vpop.f32.mrf.mxu0
  %2236 = vmatprep.mubr.f32.mxu0 0.0
  %2237 = vmatmul.mubr.f32.gmra.mxu0 %v2136
  %v2238 = vpop.f32.mrf.mxu0
  %v2239 = vadd.f32 0.0, %v2238
  %v2240 = vpop.f32.mrf.mxu0
  %2241 = vmatprep.mubr.f32.mxu0 0.0
  %2242 = vmatmul.mubr.f32.gmra.mxu0 %v2139
  %v2243 = vpop.f32.mrf.mxu0
  %v2244 = vadd.f32 0.0, %v2243
  %v2245 = vpop.f32.mrf.mxu0
  %2246 = vmatprep.mubr.f32.mxu0 0.0
  %2247 = vmatmul.mubr.f32.gmra.mxu0 %v2142
  %v2248 = vpop.f32.mrf.mxu0
  %v2249 = vadd.f32 0.0, %v2248
  %v2250 = vpop.f32.mrf.mxu0
  %2251 = vdwg.mxu0
  %v2252 = vrcp.pop %v2098
  %v2253 = vrcp.pop %v2101
  %v2254 = vrcp.pop %v2104
  %v2255 = vrcp.pop %v2107
  %v2256 = vrcp.pop %v2110
  %v2257 = vrcp.pop %v2113
  %v2258 = vrcp.pop %v2116
  %v2259 = vrcp.pop %v2119
  %v2260 = vmul.f32 %v2214, %v2252
  %v2261 = vmul.f32 %v2219, %v2253
  %v2262 = vmul.f32 %v2224, %v2254
  %v2263 = vmul.f32 %v2229, %v2255
  %v2264 = vmul.f32 %v2234, %v2256
  %v2265 = vmul.f32 %v2239, %v2257
  %v2266 = vmul.f32 %v2244, %v2258
  %v2267 = vmul.f32 %v2249, %v2259
  %v2268 = vadd.f32 %v2260, %v596
  %v2269 = vadd.f32 %v2261, %v596
  %v2270 = vadd.f32 %v2262, %v596
  %v2271 = vadd.f32 %v2263, %v596
  %v2272 = vadd.f32 %v2264, %v596
  %v2273 = vadd.f32 %v2265, %v596
  %v2274 = vadd.f32 %v2266, %v596
  %v2275 = vadd.f32 %v2267, %v596
  %s2276 = scalar_lea.vmem %s4, 256
  %2277 = vst.msk [vmem:[%s2276] sm:$0xff] %vm242, %v2268
  %2278 = vst.msk [vmem:[%s2276 + $0x8] sm:$0xff] %vm242, %v2269
  %2279 = vst.msk [vmem:[%s2276 + $0x10] sm:$0xff] %vm242, %v2270
  %2280 = vst.msk [vmem:[%s2276 + $0x18] sm:$0xff] %vm242, %v2271
  %2281 = vst.msk [vmem:[%s2276 + $0x20] sm:$0xff] %vm242, %v2272
  %2282 = vst.msk [vmem:[%s2276 + $0x28] sm:$0xff] %vm242, %v2273
  %2283 = vst.msk [vmem:[%s2276 + $0x30] sm:$0xff] %vm242, %v2274
  %2284 = vst.msk [vmem:[%s2276 + $0x38] sm:$0xff] %vm242, %v2275
  %v2285 = vadd.f32 %v1845, %v29
  %2286 = vrot.lane.b32.xlu0 %v1910, 120
  %v2287 = vpop.permute.xlu0 %2286
  %2288 = vrot.lane.b32.xlu0 %v1911, 120
  %v2289 = vpop.permute.xlu0 %2288
  %2290 = vrot.lane.b32.xlu0 %v1912, 120
  %v2291 = vpop.permute.xlu0 %2290
  %2292 = vrot.lane.b32.xlu0 %v1913, 120
  %v2293 = vpop.permute.xlu0 %2292
  %2294 = vrot.lane.b32.xlu0 %v1914, 120
  %v2295 = vpop.permute.xlu0 %2294
  %2296 = vrot.lane.b32.xlu0 %v1915, 120
  %v2297 = vpop.permute.xlu0 %2296
  %2298 = vrot.lane.b32.xlu0 %v1916, 120
  %v2299 = vpop.permute.xlu0 %2298
  %2300 = vrot.lane.b32.xlu0 %v1917, 120
  %v2301 = vpop.permute.xlu0 %2300
  %v2302 = vsel %vm242, %v2287, 0
  %v2304 = vsel %vm242, %v2289, 0
  %v2306 = vsel %vm242, %v2291, 0
  %v2308 = vsel %vm242, %v2293, 0
  %v2310 = vsel %vm242, %v2295, 0
  %v2312 = vsel %vm242, %v2297, 0
  %v2314 = vsel %vm242, %v2299, 0
  %v2316 = vsel %vm242, %v2301, 0
  %2318 = vmatprep.subr.mxu0 0.0
  %2319 = vmatpush1.msra.mxu0 0.0
  %2320 = vmatprep.subr.mxu0 0.0
  %2321 = vmatpush1.msra.mxu0 0.0
  %2322 = vmatprep.subr.mxu0 0.0
  %2323 = vmatpush1.msra.mxu0 0.0
  %2324 = vmatprep.subr.mxu0 0.0
  %2325 = vmatpush1.msra.mxu0 0.0
  %2326 = vmatprep.subr.mxu0 0.0
  %2327 = vmatpush1.msra.mxu0 0.0
  %2328 = vmatprep.subr.mxu0 0.0
  %2329 = vmatpush1.msra.mxu0 0.0
  %2330 = vmatprep.subr.mxu0 0.0
  %2331 = vmatpush1.msra.mxu0 0.0
  %2332 = vmatprep.subr.mxu0 0.0
  %2333 = vmatpush1.msra.mxu0 0.0
  %2334 = vmatprep.subr.mxu0 0.0
  %2335 = vmatpush1.msra.mxu0 0.0
  %2336 = vmatprep.subr.mxu0 0.0
  %2337 = vmatpush1.msra.mxu0 0.0
  %2338 = vmatprep.subr.mxu0 0.0
  %2339 = vmatpush1.msra.mxu0 0.0
  %2340 = vmatprep.subr.mxu0 0.0
  %2341 = vmatpush1.msra.mxu0 0.0
  %2342 = vmatprep.subr.mxu0 0.0
  %2343 = vmatpush1.msra.mxu0 0.0
  %2344 = vmatprep.subr.mxu0 0.0
  %2345 = vmatpush1.msra.mxu0 0.0
  %2346 = vmatprep.subr.mxu0 0.0
  %2347 = vmatpush1.msra.mxu0 0.0
  %2348 = vmatprep.subr.mxu0 0.0
  %2349 = vmatpush1.msra.mxu0 %v2285
  %2350 = vmatprep.subr.mxu0 0.0
  %2351 = vmatpush2.msra.mxu0 0.0
  %2352 = vmatprep.subr.mxu0 0.0
  %2353 = vmatpush2.msra.mxu0 0.0
  %2354 = vmatprep.subr.mxu0 0.0
  %2355 = vmatpush2.msra.mxu0 0.0
  %2356 = vmatprep.subr.mxu0 0.0
  %2357 = vmatpush2.msra.mxu0 0.0
  %2358 = vmatprep.subr.mxu0 0.0
  %2359 = vmatpush2.msra.mxu0 0.0
  %2360 = vmatprep.subr.mxu0 0.0
  %2361 = vmatpush2.msra.mxu0 0.0
  %2362 = vmatprep.subr.mxu0 0.0
  %2363 = vmatpush2.msra.mxu0 0.0
  %2364 = vmatprep.subr.mxu0 0.0
  %2365 = vmatpush2.msra.mxu0 0.0
  %2366 = vmatprep.subr.mxu0 0.0
  %2367 = vmatpush2.msra.mxu0 0.0
  %2368 = vmatprep.subr.mxu0 0.0
  %2369 = vmatpush2.msra.mxu0 0.0
  %2370 = vmatprep.subr.mxu0 0.0
  %2371 = vmatpush2.msra.mxu0 0.0
  %2372 = vmatprep.subr.mxu0 0.0
  %2373 = vmatpush2.msra.mxu0 0.0
  %2374 = vmatprep.subr.mxu0 0.0
  %2375 = vmatpush2.msra.mxu0 0.0
  %2376 = vmatprep.subr.mxu0 0.0
  %2377 = vmatpush2.msra.mxu0 0.0
  %2378 = vmatprep.subr.mxu0 0.0
  %2379 = vmatpush2.msra.mxu0 0.0
  %2380 = vmatprep.subr.mxu0 0.0
  %2381 = vmatpush2.msra.mxu0 0.0
  %2382 = vmatprep.mubr.f32.mxu0 0.0
  %2383 = vmatmul.mubr.f32.gmra.mxu0 %v2302
  %v2384 = vpop.f32.mrf.mxu0
  %v2385 = vadd.f32 0.0, %v2384
  %v2386 = vpop.f32.mrf.mxu0
  %2387 = vmatprep.mubr.f32.mxu0 0.0
  %2388 = vmatmul.mubr.f32.gmra.mxu0 %v2304
  %v2389 = vpop.f32.mrf.mxu0
  %v2390 = vadd.f32 0.0, %v2389
  %v2391 = vpop.f32.mrf.mxu0
  %2392 = vmatprep.mubr.f32.mxu0 0.0
  %2393 = vmatmul.mubr.f32.gmra.mxu0 %v2306
  %v2394 = vpop.f32.mrf.mxu0
  %v2395 = vadd.f32 0.0, %v2394
  %v2396 = vpop.f32.mrf.mxu0
  %2397 = vmatprep.mubr.f32.mxu0 0.0
  %2398 = vmatmul.mubr.f32.gmra.mxu0 %v2308
  %v2399 = vpop.f32.mrf.mxu0
  %v2400 = vadd.f32 0.0, %v2399
  %v2401 = vpop.f32.mrf.mxu0
  %2402 = vmatprep.mubr.f32.mxu0 0.0
  %2403 = vmatmul.mubr.f32.gmra.mxu0 %v2310
  %v2404 = vpop.f32.mrf.mxu0
  %v2405 = vadd.f32 0.0, %v2404
  %v2406 = vpop.f32.mrf.mxu0
  %2407 = vmatprep.mubr.f32.mxu0 0.0
  %2408 = vmatmul.mubr.f32.gmra.mxu0 %v2312
  %v2409 = vpop.f32.mrf.mxu0
  %v2410 = vadd.f32 0.0, %v2409
  %v2411 = vpop.f32.mrf.mxu0
  %2412 = vmatprep.mubr.f32.mxu0 0.0
  %2413 = vmatmul.mubr.f32.gmra.mxu0 %v2314
  %v2414 = vpop.f32.mrf.mxu0
  %v2415 = vadd.f32 0.0, %v2414
  %v2416 = vpop.f32.mrf.mxu0
  %2417 = vmatprep.mubr.f32.mxu0 0.0
  %2418 = vmatmul.mubr.f32.gmra.mxu0 %v2316
  %v2419 = vpop.f32.mrf.mxu0
  %v2420 = vadd.f32 0.0, %v2419
  %v2421 = vpop.f32.mrf.mxu0
  %2422 = vdwg.mxu0
  %v2423 = vsel %vm372, %v2385, -inf
  %2424 = vmax.xlane.f32.xlu0 %v2423
  %v2425 = vpop.xlane.xlu0 %2424
  %v2426 = vsel %vm372, %v2390, -inf
  %2427 = vmax.xlane.f32.xlu0 %v2426
  %v2428 = vpop.xlane.xlu0 %2427
  %v2429 = vsel %vm372, %v2395, -inf
  %2430 = vmax.xlane.f32.xlu0 %v2429
  %v2431 = vpop.xlane.xlu0 %2430
  %v2432 = vsel %vm372, %v2400, -inf
  %2433 = vmax.xlane.f32.xlu0 %v2432
  %v2434 = vpop.xlane.xlu0 %2433
  %v2435 = vsel %vm372, %v2405, -inf
  %2436 = vmax.xlane.f32.xlu0 %v2435
  %v2437 = vpop.xlane.xlu0 %2436
  %v2438 = vsel %vm372, %v2410, -inf
  %2439 = vmax.xlane.f32.xlu0 %v2438
  %v2440 = vpop.xlane.xlu0 %2439
  %v2441 = vsel %vm372, %v2415, -inf
  %2442 = vmax.xlane.f32.xlu0 %v2441
  %v2443 = vpop.xlane.xlu0 %2442
  %v2444 = vsel %vm372, %v2420, -inf
  %2445 = vmax.xlane.f32.xlu0 %v2444
  %v2446 = vpop.xlane.xlu0 %2445
  %v2447 = vsub.f32 %v2385, %v2425
  %v2448 = vsub.f32 %v2390, %v2428
  %v2449 = vsub.f32 %v2395, %v2431
  %v2450 = vsub.f32 %v2400, %v2434
  %v2451 = vsub.f32 %v2405, %v2437
  %v2452 = vsub.f32 %v2410, %v2440
  %v2453 = vsub.f32 %v2415, %v2443
  %v2454 = vsub.f32 %v2420, %v2446
  %v2455 = vmul.f32 %v2447, 1.442695
  %v2456 = vpow.pop %v2455
  %v2457 = vmul.f32 %v2448, 1.442695
  %v2458 = vpow.pop %v2457
  %v2459 = vmul.f32 %v2449, 1.442695
  %v2460 = vpow.pop %v2459
  %v2461 = vmul.f32 %v2450, 1.442695
  %v2462 = vpow.pop %v2461
  %v2463 = vmul.f32 %v2451, 1.442695
  %v2464 = vpow.pop %v2463
  %v2465 = vmul.f32 %v2452, 1.442695
  %v2466 = vpow.pop %v2465
  %v2467 = vmul.f32 %v2453, 1.442695
  %v2468 = vpow.pop %v2467
  %v2469 = vmul.f32 %v2454, 1.442695
  %v2470 = vpow.pop %v2469
  %v2471 = vsel %vm372, %v2456, 0.0
  %2472 = vadd.xlane.f32.xlu0 %v2471
  %v2473 = vpop.xlane.xlu0 %2472
  %v2474 = vsel %vm372, %v2458, 0.0
  %2475 = vadd.xlane.f32.xlu0 %v2474
  %v2476 = vpop.xlane.xlu0 %2475
  %v2477 = vsel %vm372, %v2460, 0.0
  %2478 = vadd.xlane.f32.xlu0 %v2477
  %v2479 = vpop.xlane.xlu0 %2478
  %v2480 = vsel %vm372, %v2462, 0.0
  %2481 = vadd.xlane.f32.xlu0 %v2480
  %v2482 = vpop.xlane.xlu0 %2481
  %v2483 = vsel %vm372, %v2464, 0.0
  %2484 = vadd.xlane.f32.xlu0 %v2483
  %v2485 = vpop.xlane.xlu0 %2484
  %v2486 = vsel %vm372, %v2466, 0.0
  %2487 = vadd.xlane.f32.xlu0 %v2486
  %v2488 = vpop.xlane.xlu0 %2487
  %v2489 = vsel %vm372, %v2468, 0.0
  %2490 = vadd.xlane.f32.xlu0 %v2489
  %v2491 = vpop.xlane.xlu0 %2490
  %v2492 = vsel %vm372, %v2470, 0.0
  %2493 = vadd.xlane.f32.xlu0 %v2492
  %v2494 = vpop.xlane.xlu0 %2493
  %v2496 = vsel %vm372, %v2456, 0
  %v2499 = vsel %vm372, %v2458, 0
  %v2502 = vsel %vm372, %v2460, 0
  %v2505 = vsel %vm372, %v2462, 0
  %v2508 = vsel %vm372, %v2464, 0
  %v2511 = vsel %vm372, %v2466, 0
  %v2514 = vsel %vm372, %v2468, 0
  %v2517 = vsel %vm372, %v2470, 0
  %v2520 = vsel %vm372, %v1865, 0
  %2522 = vmatprep.subr.mxu0 0.0
  %2523 = vmatpush1.xpose.msra.mxu0 0.0
  %2524 = vmatprep.subr.mxu0 0.0
  %2525 = vmatpush1.xpose.msra.mxu0 0.0
  %2526 = vmatprep.subr.mxu0 0.0
  %2527 = vmatpush1.xpose.msra.mxu0 0.0
  %2528 = vmatprep.subr.mxu0 0.0
  %2529 = vmatpush1.xpose.msra.mxu0 0.0
  %2530 = vmatprep.subr.mxu0 0.0
  %2531 = vmatpush1.xpose.msra.mxu0 0.0
  %2532 = vmatprep.subr.mxu0 0.0
  %2533 = vmatpush1.xpose.msra.mxu0 0.0
  %2534 = vmatprep.subr.mxu0 0.0
  %2535 = vmatpush1.xpose.msra.mxu0 0.0
  %2536 = vmatprep.subr.mxu0 0.0
  %2537 = vmatpush1.xpose.msra.mxu0 0.0
  %2538 = vmatprep.subr.mxu0 0.0
  %2539 = vmatpush1.xpose.msra.mxu0 0.0
  %2540 = vmatprep.subr.mxu0 0.0
  %2541 = vmatpush1.xpose.msra.mxu0 0.0
  %2542 = vmatprep.subr.mxu0 0.0
  %2543 = vmatpush1.xpose.msra.mxu0 0.0
  %2544 = vmatprep.subr.mxu0 0.0
  %2545 = vmatpush1.xpose.msra.mxu0 0.0
  %2546 = vmatprep.subr.mxu0 0.0
  %2547 = vmatpush1.xpose.msra.mxu0 0.0
  %2548 = vmatprep.subr.mxu0 0.0
  %2549 = vmatpush1.xpose.msra.mxu0 0.0
  %2550 = vmatprep.subr.mxu0 0.0
  %2551 = vmatpush1.xpose.msra.mxu0 0.0
  %2552 = vmatprep.subr.mxu0 0.0
  %2553 = vmatpush1.xpose.msra.mxu0 %v2520
  %2554 = vmatprep.subr.mxu0 0.0
  %2555 = vmatpush2.xpose.msra.mxu0 0.0
  %2556 = vmatprep.subr.mxu0 0.0
  %2557 = vmatpush2.xpose.msra.mxu0 0.0
  %2558 = vmatprep.subr.mxu0 0.0
  %2559 = vmatpush2.xpose.msra.mxu0 0.0
  %2560 = vmatprep.subr.mxu0 0.0
  %2561 = vmatpush2.xpose.msra.mxu0 0.0
  %2562 = vmatprep.subr.mxu0 0.0
  %2563 = vmatpush2.xpose.msra.mxu0 0.0
  %2564 = vmatprep.subr.mxu0 0.0
  %2565 = vmatpush2.xpose.msra.mxu0 0.0
  %2566 = vmatprep.subr.mxu0 0.0
  %2567 = vmatpush2.xpose.msra.mxu0 0.0
  %2568 = vmatprep.subr.mxu0 0.0
  %2569 = vmatpush2.xpose.msra.mxu0 0.0
  %2570 = vmatprep.subr.mxu0 0.0
  %2571 = vmatpush2.xpose.msra.mxu0 0.0
  %2572 = vmatprep.subr.mxu0 0.0
  %2573 = vmatpush2.xpose.msra.mxu0 0.0
  %2574 = vmatprep.subr.mxu0 0.0
  %2575 = vmatpush2.xpose.msra.mxu0 0.0
  %2576 = vmatprep.subr.mxu0 0.0
  %2577 = vmatpush2.xpose.msra.mxu0 0.0
  %2578 = vmatprep.subr.mxu0 0.0
  %2579 = vmatpush2.xpose.msra.mxu0 0.0
  %2580 = vmatprep.subr.mxu0 0.0
  %2581 = vmatpush2.xpose.msra.mxu0 0.0
  %2582 = vmatprep.subr.mxu0 0.0
  %2583 = vmatpush2.xpose.msra.mxu0 0.0
  %2584 = vmatprep.subr.mxu0 0.0
  %2585 = vmatpush2.xpose.msra.mxu0 0.0
  %2586 = vmatprep.mubr.f32.mxu0 0.0
  %2587 = vmatmul.mubr.f32.gmra.mxu0 %v2496
  %v2588 = vpop.f32.mrf.mxu0
  %v2589 = vadd.f32 0.0, %v2588
  %v2590 = vpop.f32.mrf.mxu0
  %2591 = vmatprep.mubr.f32.mxu0 0.0
  %2592 = vmatmul.mubr.f32.gmra.mxu0 %v2499
  %v2593 = vpop.f32.mrf.mxu0
  %v2594 = vadd.f32 0.0, %v2593
  %v2595 = vpop.f32.mrf.mxu0
  %2596 = vmatprep.mubr.f32.mxu0 0.0
  %2597 = vmatmul.mubr.f32.gmra.mxu0 %v2502
  %v2598 = vpop.f32.mrf.mxu0
  %v2599 = vadd.f32 0.0, %v2598
  %v2600 = vpop.f32.mrf.mxu0
  %2601 = vmatprep.mubr.f32.mxu0 0.0
  %2602 = vmatmul.mubr.f32.gmra.mxu0 %v2505
  %v2603 = vpop.f32.mrf.mxu0
  %v2604 = vadd.f32 0.0, %v2603
  %v2605 = vpop.f32.mrf.mxu0
  %2606 = vmatprep.mubr.f32.mxu0 0.0
  %2607 = vmatmul.mubr.f32.gmra.mxu0 %v2508
  %v2608 = vpop.f32.mrf.mxu0
  %v2609 = vadd.f32 0.0, %v2608
  %v2610 = vpop.f32.mrf.mxu0
  %2611 = vmatprep.mubr.f32.mxu0 0.0
  %2612 = vmatmul.mubr.f32.gmra.mxu0 %v2511
  %v2613 = vpop.f32.mrf.mxu0
  %v2614 = vadd.f32 0.0, %v2613
  %v2615 = vpop.f32.mrf.mxu0
  %2616 = vmatprep.mubr.f32.mxu0 0.0
  %2617 = vmatmul.mubr.f32.gmra.mxu0 %v2514
  %v2618 = vpop.f32.mrf.mxu0
  %v2619 = vadd.f32 0.0, %v2618
  %v2620 = vpop.f32.mrf.mxu0
  %2621 = vmatprep.mubr.f32.mxu0 0.0
  %2622 = vmatmul.mubr.f32.gmra.mxu0 %v2517
  %v2623 = vpop.f32.mrf.mxu0
  %v2624 = vadd.f32 0.0, %v2623
  %v2625 = vpop.f32.mrf.mxu0
  %2626 = vdwg.mxu0
  %v2627 = vrcp.pop %v2473
  %v2628 = vrcp.pop %v2476
  %v2629 = vrcp.pop %v2479
  %v2630 = vrcp.pop %v2482
  %v2631 = vrcp.pop %v2485
  %v2632 = vrcp.pop %v2488
  %v2633 = vrcp.pop %v2491
  %v2634 = vrcp.pop %v2494
  %v2635 = vmul.f32 %v2589, %v2627
  %v2636 = vmul.f32 %v2594, %v2628
  %v2637 = vmul.f32 %v2599, %v2629
  %v2638 = vmul.f32 %v2604, %v2630
  %v2639 = vmul.f32 %v2609, %v2631
  %v2640 = vmul.f32 %v2614, %v2632
  %v2641 = vmul.f32 %v2619, %v2633
  %v2642 = vmul.f32 %v2624, %v2634
  %v2643 = vadd.f32 %v2635, %v973
  %v2644 = vadd.f32 %v2636, %v973
  %v2645 = vadd.f32 %v2637, %v973
  %v2646 = vadd.f32 %v2638, %v973
  %v2647 = vadd.f32 %v2639, %v973
  %v2648 = vadd.f32 %v2640, %v973
  %v2649 = vadd.f32 %v2641, %v973
  %v2650 = vadd.f32 %v2642, %v973
  %s2651 = scalar_lea.vmem %s4, 320
  %2652 = vst.msk [vmem:[%s2651] sm:$0xff] %vm242, %v2643
  %2653 = vst.msk [vmem:[%s2651 + $0x8] sm:$0xff] %vm242, %v2644
  %2654 = vst.msk [vmem:[%s2651 + $0x10] sm:$0xff] %vm242, %v2645
  %2655 = vst.msk [vmem:[%s2651 + $0x18] sm:$0xff] %vm242, %v2646
  %2656 = vst.msk [vmem:[%s2651 + $0x20] sm:$0xff] %vm242, %v2647
  %2657 = vst.msk [vmem:[%s2651 + $0x28] sm:$0xff] %vm242, %v2648
  %2658 = vst.msk [vmem:[%s2651 + $0x30] sm:$0xff] %vm242, %v2649
  %2659 = vst.msk [vmem:[%s2651 + $0x38] sm:$0xff] %vm242, %v2650
  %v2660 = vadd.f32 %v1850, %v29
  %2661 = vrot.lane.b32.xlu0 %v1910, 112
  %v2662 = vpop.permute.xlu0 %2661
  %2663 = vrot.lane.b32.xlu0 %v1911, 112
  %v2664 = vpop.permute.xlu0 %2663
  %2665 = vrot.lane.b32.xlu0 %v1912, 112
  %v2666 = vpop.permute.xlu0 %2665
  %2667 = vrot.lane.b32.xlu0 %v1913, 112
  %v2668 = vpop.permute.xlu0 %2667
  %2669 = vrot.lane.b32.xlu0 %v1914, 112
  %v2670 = vpop.permute.xlu0 %2669
  %2671 = vrot.lane.b32.xlu0 %v1915, 112
  %v2672 = vpop.permute.xlu0 %2671
  %2673 = vrot.lane.b32.xlu0 %v1916, 112
  %v2674 = vpop.permute.xlu0 %2673
  %2675 = vrot.lane.b32.xlu0 %v1917, 112
  %v2676 = vpop.permute.xlu0 %2675
  %v2677 = vsel %vm242, %v2662, 0
  %v2679 = vsel %vm242, %v2664, 0
  %v2681 = vsel %vm242, %v2666, 0
  %v2683 = vsel %vm242, %v2668, 0
  %v2685 = vsel %vm242, %v2670, 0
  %v2687 = vsel %vm242, %v2672, 0
  %v2689 = vsel %vm242, %v2674, 0
  %v2691 = vsel %vm242, %v2676, 0
  %2693 = vmatprep.subr.mxu0 0.0
  %2694 = vmatpush1.msra.mxu0 0.0
  %2695 = vmatprep.subr.mxu0 0.0
  %2696 = vmatpush1.msra.mxu0 0.0
  %2697 = vmatprep.subr.mxu0 0.0
  %2698 = vmatpush1.msra.mxu0 0.0
  %2699 = vmatprep.subr.mxu0 0.0
  %2700 = vmatpush1.msra.mxu0 0.0
  %2701 = vmatprep.subr.mxu0 0.0
  %2702 = vmatpush1.msra.mxu0 0.0
  %2703 = vmatprep.subr.mxu0 0.0
  %2704 = vmatpush1.msra.mxu0 0.0
  %2705 = vmatprep.subr.mxu0 0.0
  %2706 = vmatpush1.msra.mxu0 0.0
  %2707 = vmatprep.subr.mxu0 0.0
  %2708 = vmatpush1.msra.mxu0 0.0
  %2709 = vmatprep.subr.mxu0 0.0
  %2710 = vmatpush1.msra.mxu0 0.0
  %2711 = vmatprep.subr.mxu0 0.0
  %2712 = vmatpush1.msra.mxu0 0.0
  %2713 = vmatprep.subr.mxu0 0.0
  %2714 = vmatpush1.msra.mxu0 0.0
  %2715 = vmatprep.subr.mxu0 0.0
  %2716 = vmatpush1.msra.mxu0 0.0
  %2717 = vmatprep.subr.mxu0 0.0
  %2718 = vmatpush1.msra.mxu0 0.0
  %2719 = vmatprep.subr.mxu0 0.0
  %2720 = vmatpush1.msra.mxu0 0.0
  %2721 = vmatprep.subr.mxu0 0.0
  %2722 = vmatpush1.msra.mxu0 0.0
  %2723 = vmatprep.subr.mxu0 0.0
  %2724 = vmatpush1.msra.mxu0 %v2660
  %2725 = vmatprep.subr.mxu0 0.0
  %2726 = vmatpush2.msra.mxu0 0.0
  %2727 = vmatprep.subr.mxu0 0.0
  %2728 = vmatpush2.msra.mxu0 0.0
  %2729 = vmatprep.subr.mxu0 0.0
  %2730 = vmatpush2.msra.mxu0 0.0
  %2731 = vmatprep.subr.mxu0 0.0
  %2732 = vmatpush2.msra.mxu0 0.0
  %2733 = vmatprep.subr.mxu0 0.0
  %2734 = vmatpush2.msra.mxu0 0.0
  %2735 = vmatprep.subr.mxu0 0.0
  %2736 = vmatpush2.msra.mxu0 0.0
  %2737 = vmatprep.subr.mxu0 0.0
  %2738 = vmatpush2.msra.mxu0 0.0
  %2739 = vmatprep.subr.mxu0 0.0
  %2740 = vmatpush2.msra.mxu0 0.0
  %2741 = vmatprep.subr.mxu0 0.0
  %2742 = vmatpush2.msra.mxu0 0.0
  %2743 = vmatprep.subr.mxu0 0.0
  %2744 = vmatpush2.msra.mxu0 0.0
  %2745 = vmatprep.subr.mxu0 0.0
  %2746 = vmatpush2.msra.mxu0 0.0
  %2747 = vmatprep.subr.mxu0 0.0
  %2748 = vmatpush2.msra.mxu0 0.0
  %2749 = vmatprep.subr.mxu0 0.0
  %2750 = vmatpush2.msra.mxu0 0.0
  %2751 = vmatprep.subr.mxu0 0.0
  %2752 = vmatpush2.msra.mxu0 0.0
  %2753 = vmatprep.subr.mxu0 0.0
  %2754 = vmatpush2.msra.mxu0 0.0
  %2755 = vmatprep.subr.mxu0 0.0
  %2756 = vmatpush2.msra.mxu0 0.0
  %2757 = vmatprep.mubr.f32.mxu0 0.0
  %2758 = vmatmul.mubr.f32.gmra.mxu0 %v2677
  %v2759 = vpop.f32.mrf.mxu0
  %v2760 = vadd.f32 0.0, %v2759
  %v2761 = vpop.f32.mrf.mxu0
  %2762 = vmatprep.mubr.f32.mxu0 0.0
  %2763 = vmatmul.mubr.f32.gmra.mxu0 %v2679
  %v2764 = vpop.f32.mrf.mxu0
  %v2765 = vadd.f32 0.0, %v2764
  %v2766 = vpop.f32.mrf.mxu0
  %2767 = vmatprep.mubr.f32.mxu0 0.0
  %2768 = vmatmul.mubr.f32.gmra.mxu0 %v2681
  %v2769 = vpop.f32.mrf.mxu0
  %v2770 = vadd.f32 0.0, %v2769
  %v2771 = vpop.f32.mrf.mxu0
  %2772 = vmatprep.mubr.f32.mxu0 0.0
  %2773 = vmatmul.mubr.f32.gmra.mxu0 %v2683
  %v2774 = vpop.f32.mrf.mxu0
  %v2775 = vadd.f32 0.0, %v2774
  %v2776 = vpop.f32.mrf.mxu0
  %2777 = vmatprep.mubr.f32.mxu0 0.0
  %2778 = vmatmul.mubr.f32.gmra.mxu0 %v2685
  %v2779 = vpop.f32.mrf.mxu0
  %v2780 = vadd.f32 0.0, %v2779
  %v2781 = vpop.f32.mrf.mxu0
  %2782 = vmatprep.mubr.f32.mxu0 0.0
  %2783 = vmatmul.mubr.f32.gmra.mxu0 %v2687
  %v2784 = vpop.f32.mrf.mxu0
  %v2785 = vadd.f32 0.0, %v2784
  %v2786 = vpop.f32.mrf.mxu0
  %2787 = vmatprep.mubr.f32.mxu0 0.0
  %2788 = vmatmul.mubr.f32.gmra.mxu0 %v2689
  %v2789 = vpop.f32.mrf.mxu0
  %v2790 = vadd.f32 0.0, %v2789
  %v2791 = vpop.f32.mrf.mxu0
  %2792 = vmatprep.mubr.f32.mxu0 0.0
  %2793 = vmatmul.mubr.f32.gmra.mxu0 %v2691
  %v2794 = vpop.f32.mrf.mxu0
  %v2795 = vadd.f32 0.0, %v2794
  %v2796 = vpop.f32.mrf.mxu0
  %2797 = vdwg.mxu0
  %v2798 = vsel %vm372, %v2760, -inf
  %2799 = vmax.xlane.f32.xlu0 %v2798
  %v2800 = vpop.xlane.xlu0 %2799
  %v2801 = vsel %vm372, %v2765, -inf
  %2802 = vmax.xlane.f32.xlu0 %v2801
  %v2803 = vpop.xlane.xlu0 %2802
  %v2804 = vsel %vm372, %v2770, -inf
  %2805 = vmax.xlane.f32.xlu0 %v2804
  %v2806 = vpop.xlane.xlu0 %2805
  %v2807 = vsel %vm372, %v2775, -inf
  %2808 = vmax.xlane.f32.xlu0 %v2807
  %v2809 = vpop.xlane.xlu0 %2808
  %v2810 = vsel %vm372, %v2780, -inf
  %2811 = vmax.xlane.f32.xlu0 %v2810
  %v2812 = vpop.xlane.xlu0 %2811
  %v2813 = vsel %vm372, %v2785, -inf
  %2814 = vmax.xlane.f32.xlu0 %v2813
  %v2815 = vpop.xlane.xlu0 %2814
  %v2816 = vsel %vm372, %v2790, -inf
  %2817 = vmax.xlane.f32.xlu0 %v2816
  %v2818 = vpop.xlane.xlu0 %2817
  %v2819 = vsel %vm372, %v2795, -inf
  %2820 = vmax.xlane.f32.xlu0 %v2819
  %v2821 = vpop.xlane.xlu0 %2820
  %v2822 = vsub.f32 %v2760, %v2800
  %v2823 = vsub.f32 %v2765, %v2803
  %v2824 = vsub.f32 %v2770, %v2806
  %v2825 = vsub.f32 %v2775, %v2809
  %v2826 = vsub.f32 %v2780, %v2812
  %v2827 = vsub.f32 %v2785, %v2815
  %v2828 = vsub.f32 %v2790, %v2818
  %v2829 = vsub.f32 %v2795, %v2821
  %v2830 = vmul.f32 %v2822, 1.442695
  %v2831 = vpow.pop %v2830
  %v2832 = vmul.f32 %v2823, 1.442695
  %v2833 = vpow.pop %v2832
  %v2834 = vmul.f32 %v2824, 1.442695
  %v2835 = vpow.pop %v2834
  %v2836 = vmul.f32 %v2825, 1.442695
  %v2837 = vpow.pop %v2836
  %v2838 = vmul.f32 %v2826, 1.442695
  %v2839 = vpow.pop %v2838
  %v2840 = vmul.f32 %v2827, 1.442695
  %v2841 = vpow.pop %v2840
  %v2842 = vmul.f32 %v2828, 1.442695
  %v2843 = vpow.pop %v2842
  %v2844 = vmul.f32 %v2829, 1.442695
  %v2845 = vpow.pop %v2844
  %v2846 = vsel %vm372, %v2831, 0.0
  %2847 = vadd.xlane.f32.xlu0 %v2846
  %v2848 = vpop.xlane.xlu0 %2847
  %v2849 = vsel %vm372, %v2833, 0.0
  %2850 = vadd.xlane.f32.xlu0 %v2849
  %v2851 = vpop.xlane.xlu0 %2850
  %v2852 = vsel %vm372, %v2835, 0.0
  %2853 = vadd.xlane.f32.xlu0 %v2852
  %v2854 = vpop.xlane.xlu0 %2853
  %v2855 = vsel %vm372, %v2837, 0.0
  %2856 = vadd.xlane.f32.xlu0 %v2855
  %v2857 = vpop.xlane.xlu0 %2856
  %v2858 = vsel %vm372, %v2839, 0.0
  %2859 = vadd.xlane.f32.xlu0 %v2858
  %v2860 = vpop.xlane.xlu0 %2859
  %v2861 = vsel %vm372, %v2841, 0.0
  %2862 = vadd.xlane.f32.xlu0 %v2861
  %v2863 = vpop.xlane.xlu0 %2862
  %v2864 = vsel %vm372, %v2843, 0.0
  %2865 = vadd.xlane.f32.xlu0 %v2864
  %v2866 = vpop.xlane.xlu0 %2865
  %v2867 = vsel %vm372, %v2845, 0.0
  %2868 = vadd.xlane.f32.xlu0 %v2867
  %v2869 = vpop.xlane.xlu0 %2868
  %v2871 = vsel %vm372, %v2831, 0
  %v2874 = vsel %vm372, %v2833, 0
  %v2877 = vsel %vm372, %v2835, 0
  %v2880 = vsel %vm372, %v2837, 0
  %v2883 = vsel %vm372, %v2839, 0
  %v2886 = vsel %vm372, %v2841, 0
  %v2889 = vsel %vm372, %v2843, 0
  %v2892 = vsel %vm372, %v2845, 0
  %v2895 = vsel %vm372, %v1870, 0
  %2897 = vmatprep.subr.mxu0 0.0
  %2898 = vmatpush1.xpose.msra.mxu0 0.0
  %2899 = vmatprep.subr.mxu0 0.0
  %2900 = vmatpush1.xpose.msra.mxu0 0.0
  %2901 = vmatprep.subr.mxu0 0.0
  %2902 = vmatpush1.xpose.msra.mxu0 0.0
  %2903 = vmatprep.subr.mxu0 0.0
  %2904 = vmatpush1.xpose.msra.mxu0 0.0
  %2905 = vmatprep.subr.mxu0 0.0
  %2906 = vmatpush1.xpose.msra.mxu0 0.0
  %2907 = vmatprep.subr.mxu0 0.0
  %2908 = vmatpush1.xpose.msra.mxu0 0.0
  %2909 = vmatprep.subr.mxu0 0.0
  %2910 = vmatpush1.xpose.msra.mxu0 0.0
  %2911 = vmatprep.subr.mxu0 0.0
  %2912 = vmatpush1.xpose.msra.mxu0 0.0
  %2913 = vmatprep.subr.mxu0 0.0
  %2914 = vmatpush1.xpose.msra.mxu0 0.0
  %2915 = vmatprep.subr.mxu0 0.0
  %2916 = vmatpush1.xpose.msra.mxu0 0.0
  %2917 = vmatprep.subr.mxu0 0.0
  %2918 = vmatpush1.xpose.msra.mxu0 0.0
  %2919 = vmatprep.subr.mxu0 0.0
  %2920 = vmatpush1.xpose.msra.mxu0 0.0
  %2921 = vmatprep.subr.mxu0 0.0
  %2922 = vmatpush1.xpose.msra.mxu0 0.0
  %2923 = vmatprep.subr.mxu0 0.0
  %2924 = vmatpush1.xpose.msra.mxu0 0.0
  %2925 = vmatprep.subr.mxu0 0.0
  %2926 = vmatpush1.xpose.msra.mxu0 0.0
  %2927 = vmatprep.subr.mxu0 0.0
  %2928 = vmatpush1.xpose.msra.mxu0 %v2895
  %2929 = vmatprep.subr.mxu0 0.0
  %2930 = vmatpush2.xpose.msra.mxu0 0.0
  %2931 = vmatprep.subr.mxu0 0.0
  %2932 = vmatpush2.xpose.msra.mxu0 0.0
  %2933 = vmatprep.subr.mxu0 0.0
  %2934 = vmatpush2.xpose.msra.mxu0 0.0
  %2935 = vmatprep.subr.mxu0 0.0
  %2936 = vmatpush2.xpose.msra.mxu0 0.0
  %2937 = vmatprep.subr.mxu0 0.0
  %2938 = vmatpush2.xpose.msra.mxu0 0.0
  %2939 = vmatprep.subr.mxu0 0.0
  %2940 = vmatpush2.xpose.msra.mxu0 0.0
  %2941 = vmatprep.subr.mxu0 0.0
  %2942 = vmatpush2.xpose.msra.mxu0 0.0
  %2943 = vmatprep.subr.mxu0 0.0
  %2944 = vmatpush2.xpose.msra.mxu0 0.0
  %2945 = vmatprep.subr.mxu0 0.0
  %2946 = vmatpush2.xpose.msra.mxu0 0.0
  %2947 = vmatprep.subr.mxu0 0.0
  %2948 = vmatpush2.xpose.msra.mxu0 0.0
  %2949 = vmatprep.subr.mxu0 0.0
  %2950 = vmatpush2.xpose.msra.mxu0 0.0
  %2951 = vmatprep.subr.mxu0 0.0
  %2952 = vmatpush2.xpose.msra.mxu0 0.0
  %2953 = vmatprep.subr.mxu0 0.0
  %2954 = vmatpush2.xpose.msra.mxu0 0.0
  %2955 = vmatprep.subr.mxu0 0.0
  %2956 = vmatpush2.xpose.msra.mxu0 0.0
  %2957 = vmatprep.subr.mxu0 0.0
  %2958 = vmatpush2.xpose.msra.mxu0 0.0
  %2959 = vmatprep.subr.mxu0 0.0
  %2960 = vmatpush2.xpose.msra.mxu0 0.0
  %2961 = vmatprep.mubr.f32.mxu0 0.0
  %2962 = vmatmul.mubr.f32.gmra.mxu0 %v2871
  %v2963 = vpop.f32.mrf.mxu0
  %v2964 = vadd.f32 0.0, %v2963
  %v2965 = vpop.f32.mrf.mxu0
  %2966 = vmatprep.mubr.f32.mxu0 0.0
  %2967 = vmatmul.mubr.f32.gmra.mxu0 %v2874
  %v2968 = vpop.f32.mrf.mxu0
  %v2969 = vadd.f32 0.0, %v2968
  %v2970 = vpop.f32.mrf.mxu0
  %2971 = vmatprep.mubr.f32.mxu0 0.0
  %2972 = vmatmul.mubr.f32.gmra.mxu0 %v2877
  %v2973 = vpop.f32.mrf.mxu0
  %v2974 = vadd.f32 0.0, %v2973
  %v2975 = vpop.f32.mrf.mxu0
  %2976 = vmatprep.mubr.f32.mxu0 0.0
  %2977 = vmatmul.mubr.f32.gmra.mxu0 %v2880
  %v2978 = vpop.f32.mrf.mxu0
  %v2979 = vadd.f32 0.0, %v2978
  %v2980 = vpop.f32.mrf.mxu0
  %2981 = vmatprep.mubr.f32.mxu0 0.0
  %2982 = vmatmul.mubr.f32.gmra.mxu0 %v2883
  %v2983 = vpop.f32.mrf.mxu0
  %v2984 = vadd.f32 0.0, %v2983
  %v2985 = vpop.f32.mrf.mxu0
  %2986 = vmatprep.mubr.f32.mxu0 0.0
  %2987 = vmatmul.mubr.f32.gmra.mxu0 %v2886
  %v2988 = vpop.f32.mrf.mxu0
  %v2989 = vadd.f32 0.0, %v2988
  %v2990 = vpop.f32.mrf.mxu0
  %2991 = vmatprep.mubr.f32.mxu0 0.0
  %2992 = vmatmul.mubr.f32.gmra.mxu0 %v2889
  %v2993 = vpop.f32.mrf.mxu0
  %v2994 = vadd.f32 0.0, %v2993
  %v2995 = vpop.f32.mrf.mxu0
  %2996 = vmatprep.mubr.f32.mxu0 0.0
  %2997 = vmatmul.mubr.f32.gmra.mxu0 %v2892
  %v2998 = vpop.f32.mrf.mxu0
  %v2999 = vadd.f32 0.0, %v2998
  %v3000 = vpop.f32.mrf.mxu0
  %3001 = vdwg.mxu0
  %v3002 = vrcp.pop %v2848
  %v3003 = vrcp.pop %v2851
  %v3004 = vrcp.pop %v2854
  %v3005 = vrcp.pop %v2857
  %v3006 = vrcp.pop %v2860
  %v3007 = vrcp.pop %v2863
  %v3008 = vrcp.pop %v2866
  %v3009 = vrcp.pop %v2869
  %v3010 = vmul.f32 %v2964, %v3002
  %v3011 = vmul.f32 %v2969, %v3003
  %v3012 = vmul.f32 %v2974, %v3004
  %v3013 = vmul.f32 %v2979, %v3005
  %v3014 = vmul.f32 %v2984, %v3006
  %v3015 = vmul.f32 %v2989, %v3007
  %v3016 = vmul.f32 %v2994, %v3008
  %v3017 = vmul.f32 %v2999, %v3009
  %v3018 = vadd.f32 %v3010, %v1351
  %v3019 = vadd.f32 %v3011, %v1351
  %v3020 = vadd.f32 %v3012, %v1351
  %v3021 = vadd.f32 %v3013, %v1351
  %v3022 = vadd.f32 %v3014, %v1351
  %v3023 = vadd.f32 %v3015, %v1351
  %v3024 = vadd.f32 %v3016, %v1351
  %v3025 = vadd.f32 %v3017, %v1351
  %s3026 = scalar_lea.vmem %s4, 384
  %3027 = vst.msk [vmem:[%s3026] sm:$0xff] %vm242, %v3018
  %3028 = vst.msk [vmem:[%s3026 + $0x8] sm:$0xff] %vm242, %v3019
  %3029 = vst.msk [vmem:[%s3026 + $0x10] sm:$0xff] %vm242, %v3020
  %3030 = vst.msk [vmem:[%s3026 + $0x18] sm:$0xff] %vm242, %v3021
  %3031 = vst.msk [vmem:[%s3026 + $0x20] sm:$0xff] %vm242, %v3022
  %3032 = vst.msk [vmem:[%s3026 + $0x28] sm:$0xff] %vm242, %v3023
  %3033 = vst.msk [vmem:[%s3026 + $0x30] sm:$0xff] %vm242, %v3024
  %3034 = vst.msk [vmem:[%s3026 + $0x38] sm:$0xff] %vm242, %v3025
  %v3035 = vadd.f32 %v1855, %v29
  %3036 = vrot.lane.b32.xlu0 %v1910, 104
  %v3037 = vpop.permute.xlu0 %3036
  %3038 = vrot.lane.b32.xlu0 %v1911, 104
  %v3039 = vpop.permute.xlu0 %3038
  %3040 = vrot.lane.b32.xlu0 %v1912, 104
  %v3041 = vpop.permute.xlu0 %3040
  %3042 = vrot.lane.b32.xlu0 %v1913, 104
  %v3043 = vpop.permute.xlu0 %3042
  %3044 = vrot.lane.b32.xlu0 %v1914, 104
  %v3045 = vpop.permute.xlu0 %3044
  %3046 = vrot.lane.b32.xlu0 %v1915, 104
  %v3047 = vpop.permute.xlu0 %3046
  %3048 = vrot.lane.b32.xlu0 %v1916, 104
  %v3049 = vpop.permute.xlu0 %3048
  %3050 = vrot.lane.b32.xlu0 %v1917, 104
  %v3051 = vpop.permute.xlu0 %3050
  %v3052 = vsel %vm242, %v3037, 0
  %v3054 = vsel %vm242, %v3039, 0
  %v3056 = vsel %vm242, %v3041, 0
  %v3058 = vsel %vm242, %v3043, 0
  %v3060 = vsel %vm242, %v3045, 0
  %v3062 = vsel %vm242, %v3047, 0
  %v3064 = vsel %vm242, %v3049, 0
  %v3066 = vsel %vm242, %v3051, 0
  %3068 = vmatprep.subr.mxu0 0.0
  %3069 = vmatpush1.msra.mxu0 0.0
  %3070 = vmatprep.subr.mxu0 0.0
  %3071 = vmatpush1.msra.mxu0 0.0
  %3072 = vmatprep.subr.mxu0 0.0
  %3073 = vmatpush1.msra.mxu0 0.0
  %3074 = vmatprep.subr.mxu0 0.0
  %3075 = vmatpush1.msra.mxu0 0.0
  %3076 = vmatprep.subr.mxu0 0.0
  %3077 = vmatpush1.msra.mxu0 0.0
  %3078 = vmatprep.subr.mxu0 0.0
  %3079 = vmatpush1.msra.mxu0 0.0
  %3080 = vmatprep.subr.mxu0 0.0
  %3081 = vmatpush1.msra.mxu0 0.0
  %3082 = vmatprep.subr.mxu0 0.0
  %3083 = vmatpush1.msra.mxu0 0.0
  %3084 = vmatprep.subr.mxu0 0.0
  %3085 = vmatpush1.msra.mxu0 0.0
  %3086 = vmatprep.subr.mxu0 0.0
  %3087 = vmatpush1.msra.mxu0 0.0
  %3088 = vmatprep.subr.mxu0 0.0
  %3089 = vmatpush1.msra.mxu0 0.0
  %3090 = vmatprep.subr.mxu0 0.0
  %3091 = vmatpush1.msra.mxu0 0.0
  %3092 = vmatprep.subr.mxu0 0.0
  %3093 = vmatpush1.msra.mxu0 0.0
  %3094 = vmatprep.subr.mxu0 0.0
  %3095 = vmatpush1.msra.mxu0 0.0
  %3096 = vmatprep.subr.mxu0 0.0
  %3097 = vmatpush1.msra.mxu0 0.0
  %3098 = vmatprep.subr.mxu0 0.0
  %3099 = vmatpush1.msra.mxu0 %v3035
  %3100 = vmatprep.subr.mxu0 0.0
  %3101 = vmatpush2.msra.mxu0 0.0
  %3102 = vmatprep.subr.mxu0 0.0
  %3103 = vmatpush2.msra.mxu0 0.0
  %3104 = vmatprep.subr.mxu0 0.0
  %3105 = vmatpush2.msra.mxu0 0.0
  %3106 = vmatprep.subr.mxu0 0.0
  %3107 = vmatpush2.msra.mxu0 0.0
  %3108 = vmatprep.subr.mxu0 0.0
  %3109 = vmatpush2.msra.mxu0 0.0
  %3110 = vmatprep.subr.mxu0 0.0
  %3111 = vmatpush2.msra.mxu0 0.0
  %3112 = vmatprep.subr.mxu0 0.0
  %3113 = vmatpush2.msra.mxu0 0.0
  %3114 = vmatprep.subr.mxu0 0.0
  %3115 = vmatpush2.msra.mxu0 0.0
  %3116 = vmatprep.subr.mxu0 0.0
  %3117 = vmatpush2.msra.mxu0 0.0
  %3118 = vmatprep.subr.mxu0 0.0
  %3119 = vmatpush2.msra.mxu0 0.0
  %3120 = vmatprep.subr.mxu0 0.0
  %3121 = vmatpush2.msra.mxu0 0.0
  %3122 = vmatprep.subr.mxu0 0.0
  %3123 = vmatpush2.msra.mxu0 0.0
  %3124 = vmatprep.subr.mxu0 0.0
  %3125 = vmatpush2.msra.mxu0 0.0
  %3126 = vmatprep.subr.mxu0 0.0
  %3127 = vmatpush2.msra.mxu0 0.0
  %3128 = vmatprep.subr.mxu0 0.0
  %3129 = vmatpush2.msra.mxu0 0.0
  %3130 = vmatprep.subr.mxu0 0.0
  %3131 = vmatpush2.msra.mxu0 0.0
  %3132 = vmatprep.mubr.f32.mxu0 0.0
  %3133 = vmatmul.mubr.f32.gmra.mxu0 %v3052
  %v3134 = vpop.f32.mrf.mxu0
  %v3135 = vadd.f32 0.0, %v3134
  %v3136 = vpop.f32.mrf.mxu0
  %3137 = vmatprep.mubr.f32.mxu0 0.0
  %3138 = vmatmul.mubr.f32.gmra.mxu0 %v3054
  %v3139 = vpop.f32.mrf.mxu0
  %v3140 = vadd.f32 0.0, %v3139
  %v3141 = vpop.f32.mrf.mxu0
  %3142 = vmatprep.mubr.f32.mxu0 0.0
  %3143 = vmatmul.mubr.f32.gmra.mxu0 %v3056
  %v3144 = vpop.f32.mrf.mxu0
  %v3145 = vadd.f32 0.0, %v3144
  %v3146 = vpop.f32.mrf.mxu0
  %3147 = vmatprep.mubr.f32.mxu0 0.0
  %3148 = vmatmul.mubr.f32.gmra.mxu0 %v3058
  %v3149 = vpop.f32.mrf.mxu0
  %v3150 = vadd.f32 0.0, %v3149
  %v3151 = vpop.f32.mrf.mxu0
  %3152 = vmatprep.mubr.f32.mxu0 0.0
  %3153 = vmatmul.mubr.f32.gmra.mxu0 %v3060
  %v3154 = vpop.f32.mrf.mxu0
  %v3155 = vadd.f32 0.0, %v3154
  %v3156 = vpop.f32.mrf.mxu0
  %3157 = vmatprep.mubr.f32.mxu0 0.0
  %3158 = vmatmul.mubr.f32.gmra.mxu0 %v3062
  %v3159 = vpop.f32.mrf.mxu0
  %v3160 = vadd.f32 0.0, %v3159
  %v3161 = vpop.f32.mrf.mxu0
  %3162 = vmatprep.mubr.f32.mxu0 0.0
  %3163 = vmatmul.mubr.f32.gmra.mxu0 %v3064
  %v3164 = vpop.f32.mrf.mxu0
  %v3165 = vadd.f32 0.0, %v3164
  %v3166 = vpop.f32.mrf.mxu0
  %3167 = vmatprep.mubr.f32.mxu0 0.0
  %3168 = vmatmul.mubr.f32.gmra.mxu0 %v3066
  %v3169 = vpop.f32.mrf.mxu0
  %v3170 = vadd.f32 0.0, %v3169
  %v3171 = vpop.f32.mrf.mxu0
  %3172 = vdwg.mxu0
  %v3173 = vsel %vm372, %v3135, -inf
  %3174 = vmax.xlane.f32.xlu0 %v3173
  %v3175 = vpop.xlane.xlu0 %3174
  %v3176 = vsel %vm372, %v3140, -inf
  %3177 = vmax.xlane.f32.xlu0 %v3176
  %v3178 = vpop.xlane.xlu0 %3177
  %v3179 = vsel %vm372, %v3145, -inf
  %3180 = vmax.xlane.f32.xlu0 %v3179
  %v3181 = vpop.xlane.xlu0 %3180
  %v3182 = vsel %vm372, %v3150, -inf
  %3183 = vmax.xlane.f32.xlu0 %v3182
  %v3184 = vpop.xlane.xlu0 %3183
  %v3185 = vsel %vm372, %v3155, -inf
  %3186 = vmax.xlane.f32.xlu0 %v3185
  %v3187 = vpop.xlane.xlu0 %3186
  %v3188 = vsel %vm372, %v3160, -inf
  %3189 = vmax.xlane.f32.xlu0 %v3188
  %v3190 = vpop.xlane.xlu0 %3189
  %v3191 = vsel %vm372, %v3165, -inf
  %3192 = vmax.xlane.f32.xlu0 %v3191
  %v3193 = vpop.xlane.xlu0 %3192
  %v3194 = vsel %vm372, %v3170, -inf
  %3195 = vmax.xlane.f32.xlu0 %v3194
  %v3196 = vpop.xlane.xlu0 %3195
  %v3197 = vsub.f32 %v3135, %v3175
  %v3198 = vsub.f32 %v3140, %v3178
  %v3199 = vsub.f32 %v3145, %v3181
  %v3200 = vsub.f32 %v3150, %v3184
  %v3201 = vsub.f32 %v3155, %v3187
  %v3202 = vsub.f32 %v3160, %v3190
  %v3203 = vsub.f32 %v3165, %v3193
  %v3204 = vsub.f32 %v3170, %v3196
  %v3205 = vmul.f32 %v3197, 1.442695
  %v3206 = vpow.pop %v3205
  %v3207 = vmul.f32 %v3198, 1.442695
  %v3208 = vpow.pop %v3207
  %v3209 = vmul.f32 %v3199, 1.442695
  %v3210 = vpow.pop %v3209
  %v3211 = vmul.f32 %v3200, 1.442695
  %v3212 = vpow.pop %v3211
  %v3213 = vmul.f32 %v3201, 1.442695
  %v3214 = vpow.pop %v3213
  %v3215 = vmul.f32 %v3202, 1.442695
  %v3216 = vpow.pop %v3215
  %v3217 = vmul.f32 %v3203, 1.442695
  %v3218 = vpow.pop %v3217
  %v3219 = vmul.f32 %v3204, 1.442695
  %v3220 = vpow.pop %v3219
  %v3221 = vsel %vm372, %v3206, 0.0
  %3222 = vadd.xlane.f32.xlu0 %v3221
  %v3223 = vpop.xlane.xlu0 %3222
  %v3224 = vsel %vm372, %v3208, 0.0
  %3225 = vadd.xlane.f32.xlu0 %v3224
  %v3226 = vpop.xlane.xlu0 %3225
  %v3227 = vsel %vm372, %v3210, 0.0
  %3228 = vadd.xlane.f32.xlu0 %v3227
  %v3229 = vpop.xlane.xlu0 %3228
  %v3230 = vsel %vm372, %v3212, 0.0
  %3231 = vadd.xlane.f32.xlu0 %v3230
  %v3232 = vpop.xlane.xlu0 %3231
  %v3233 = vsel %vm372, %v3214, 0.0
  %3234 = vadd.xlane.f32.xlu0 %v3233
  %v3235 = vpop.xlane.xlu0 %3234
  %v3236 = vsel %vm372, %v3216, 0.0
  %3237 = vadd.xlane.f32.xlu0 %v3236
  %v3238 = vpop.xlane.xlu0 %3237
  %v3239 = vsel %vm372, %v3218, 0.0
  %3240 = vadd.xlane.f32.xlu0 %v3239
  %v3241 = vpop.xlane.xlu0 %3240
  %v3242 = vsel %vm372, %v3220, 0.0
  %3243 = vadd.xlane.f32.xlu0 %v3242
  %v3244 = vpop.xlane.xlu0 %3243
  %v3246 = vsel %vm372, %v3206, 0
  %v3249 = vsel %vm372, %v3208, 0
  %v3252 = vsel %vm372, %v3210, 0
  %v3255 = vsel %vm372, %v3212, 0
  %v3258 = vsel %vm372, %v3214, 0
  %v3261 = vsel %vm372, %v3216, 0
  %v3264 = vsel %vm372, %v3218, 0
  %v3267 = vsel %vm372, %v3220, 0
  %v3270 = vsel %vm372, %v1875, 0
  %3272 = vmatprep.subr.mxu0 0.0
  %3273 = vmatpush1.xpose.msra.mxu0 0.0
  %3274 = vmatprep.subr.mxu0 0.0
  %3275 = vmatpush1.xpose.msra.mxu0 0.0
  %3276 = vmatprep.subr.mxu0 0.0
  %3277 = vmatpush1.xpose.msra.mxu0 0.0
  %3278 = vmatprep.subr.mxu0 0.0
  %3279 = vmatpush1.xpose.msra.mxu0 0.0
  %3280 = vmatprep.subr.mxu0 0.0
  %3281 = vmatpush1.xpose.msra.mxu0 0.0
  %3282 = vmatprep.subr.mxu0 0.0
  %3283 = vmatpush1.xpose.msra.mxu0 0.0
  %3284 = vmatprep.subr.mxu0 0.0
  %3285 = vmatpush1.xpose.msra.mxu0 0.0
  %3286 = vmatprep.subr.mxu0 0.0
  %3287 = vmatpush1.xpose.msra.mxu0 0.0
  %3288 = vmatprep.subr.mxu0 0.0
  %3289 = vmatpush1.xpose.msra.mxu0 0.0
  %3290 = vmatprep.subr.mxu0 0.0
  %3291 = vmatpush1.xpose.msra.mxu0 0.0
  %3292 = vmatprep.subr.mxu0 0.0
  %3293 = vmatpush1.xpose.msra.mxu0 0.0
  %3294 = vmatprep.subr.mxu0 0.0
  %3295 = vmatpush1.xpose.msra.mxu0 0.0
  %3296 = vmatprep.subr.mxu0 0.0
  %3297 = vmatpush1.xpose.msra.mxu0 0.0
  %3298 = vmatprep.subr.mxu0 0.0
  %3299 = vmatpush1.xpose.msra.mxu0 0.0
  %3300 = vmatprep.subr.mxu0 0.0
  %3301 = vmatpush1.xpose.msra.mxu0 0.0
  %3302 = vmatprep.subr.mxu0 0.0
  %3303 = vmatpush1.xpose.msra.mxu0 %v3270
  %3304 = vmatprep.subr.mxu0 0.0
  %3305 = vmatpush2.xpose.msra.mxu0 0.0
  %3306 = vmatprep.subr.mxu0 0.0
  %3307 = vmatpush2.xpose.msra.mxu0 0.0
  %3308 = vmatprep.subr.mxu0 0.0
  %3309 = vmatpush2.xpose.msra.mxu0 0.0
  %3310 = vmatprep.subr.mxu0 0.0
  %3311 = vmatpush2.xpose.msra.mxu0 0.0
  %3312 = vmatprep.subr.mxu0 0.0
  %3313 = vmatpush2.xpose.msra.mxu0 0.0
  %3314 = vmatprep.subr.mxu0 0.0
  %3315 = vmatpush2.xpose.msra.mxu0 0.0
  %3316 = vmatprep.subr.mxu0 0.0
  %3317 = vmatpush2.xpose.msra.mxu0 0.0
  %3318 = vmatprep.subr.mxu0 0.0
  %3319 = vmatpush2.xpose.msra.mxu0 0.0
  %3320 = vmatprep.subr.mxu0 0.0
  %3321 = vmatpush2.xpose.msra.mxu0 0.0
  %3322 = vmatprep.subr.mxu0 0.0
  %3323 = vmatpush2.xpose.msra.mxu0 0.0
  %3324 = vmatprep.subr.mxu0 0.0
  %3325 = vmatpush2.xpose.msra.mxu0 0.0
  %3326 = vmatprep.subr.mxu0 0.0
  %3327 = vmatpush2.xpose.msra.mxu0 0.0
  %3328 = vmatprep.subr.mxu0 0.0
  %3329 = vmatpush2.xpose.msra.mxu0 0.0
  %3330 = vmatprep.subr.mxu0 0.0
  %3331 = vmatpush2.xpose.msra.mxu0 0.0
  %3332 = vmatprep.subr.mxu0 0.0
  %3333 = vmatpush2.xpose.msra.mxu0 0.0
  %3334 = vmatprep.subr.mxu0 0.0
  %3335 = vmatpush2.xpose.msra.mxu0 0.0
  %3336 = vmatprep.mubr.f32.mxu0 0.0
  %3337 = vmatmul.mubr.f32.gmra.mxu0 %v3246
  %v3338 = vpop.f32.mrf.mxu0
  %v3339 = vadd.f32 0.0, %v3338
  %v3340 = vpop.f32.mrf.mxu0
  %3341 = vmatprep.mubr.f32.mxu0 0.0
  %3342 = vmatmul.mubr.f32.gmra.mxu0 %v3249
  %v3343 = vpop.f32.mrf.mxu0
  %v3344 = vadd.f32 0.0, %v3343
  %v3345 = vpop.f32.mrf.mxu0
  %3346 = vmatprep.mubr.f32.mxu0 0.0
  %3347 = vmatmul.mubr.f32.gmra.mxu0 %v3252
  %v3348 = vpop.f32.mrf.mxu0
  %v3349 = vadd.f32 0.0, %v3348
  %v3350 = vpop.f32.mrf.mxu0
  %3351 = vmatprep.mubr.f32.mxu0 0.0
  %3352 = vmatmul.mubr.f32.gmra.mxu0 %v3255
  %v3353 = vpop.f32.mrf.mxu0
  %v3354 = vadd.f32 0.0, %v3353
  %v3355 = vpop.f32.mrf.mxu0
  %3356 = vmatprep.mubr.f32.mxu0 0.0
  %3357 = vmatmul.mubr.f32.gmra.mxu0 %v3258
  %v3358 = vpop.f32.mrf.mxu0
  %v3359 = vadd.f32 0.0, %v3358
  %v3360 = vpop.f32.mrf.mxu0
  %3361 = vmatprep.mubr.f32.mxu0 0.0
  %3362 = vmatmul.mubr.f32.gmra.mxu0 %v3261
  %v3363 = vpop.f32.mrf.mxu0
  %v3364 = vadd.f32 0.0, %v3363
  %v3365 = vpop.f32.mrf.mxu0
  %3366 = vmatprep.mubr.f32.mxu0 0.0
  %3367 = vmatmul.mubr.f32.gmra.mxu0 %v3264
  %v3368 = vpop.f32.mrf.mxu0
  %v3369 = vadd.f32 0.0, %v3368
  %v3370 = vpop.f32.mrf.mxu0
  %3371 = vmatprep.mubr.f32.mxu0 0.0
  %3372 = vmatmul.mubr.f32.gmra.mxu0 %v3267
  %v3373 = vpop.f32.mrf.mxu0
  %v3374 = vadd.f32 0.0, %v3373
  %v3375 = vpop.f32.mrf.mxu0
  %3376 = vdwg.mxu0
  %v3377 = vrcp.pop %v3223
  %v3378 = vrcp.pop %v3226
  %v3379 = vrcp.pop %v3229
  %v3380 = vrcp.pop %v3232
  %v3381 = vrcp.pop %v3235
  %v3382 = vrcp.pop %v3238
  %v3383 = vrcp.pop %v3241
  %v3384 = vrcp.pop %v3244
  %v3385 = vmul.f32 %v3339, %v3377
  %v3386 = vmul.f32 %v3344, %v3378
  %v3387 = vmul.f32 %v3349, %v3379
  %v3388 = vmul.f32 %v3354, %v3380
  %v3389 = vmul.f32 %v3359, %v3381
  %v3390 = vmul.f32 %v3364, %v3382
  %v3391 = vmul.f32 %v3369, %v3383
  %v3392 = vmul.f32 %v3374, %v3384
  %v3393 = vadd.f32 %v3385, %v1729
  %v3394 = vadd.f32 %v3386, %v1729
  %v3395 = vadd.f32 %v3387, %v1729
  %v3396 = vadd.f32 %v3388, %v1729
  %v3397 = vadd.f32 %v3389, %v1729
  %v3398 = vadd.f32 %v3390, %v1729
  %v3399 = vadd.f32 %v3391, %v1729
  %v3400 = vadd.f32 %v3392, %v1729
  %s3401 = scalar_lea.vmem %s4, 448
  %3402 = vst.msk [vmem:[%s3401] sm:$0xff] %vm242, %v3393
  %3403 = vst.msk [vmem:[%s3401 + $0x8] sm:$0xff] %vm242, %v3394
  %3404 = vst.msk [vmem:[%s3401 + $0x10] sm:$0xff] %vm242, %v3395
  %3405 = vst.msk [vmem:[%s3401 + $0x18] sm:$0xff] %vm242, %v3396
  %3406 = vst.msk [vmem:[%s3401 + $0x20] sm:$0xff] %vm242, %v3397
  %3407 = vst.msk [vmem:[%s3401 + $0x28] sm:$0xff] %vm242, %v3398
  %3408 = vst.msk [vmem:[%s3401 + $0x30] sm:$0xff] %vm242, %v3399
  %3409 = vst.msk [vmem:[%s3401 + $0x38] sm:$0xff] %vm242, %v3400
  // Predicated region
  $region18: #{tpu_custom_call.1} parent=0 // pred_check
    _
  $region19: #{tpu_custom_call.1} parent=0 // pred_check_branch
    %3411 = sbr.rel (0) target = $region21
  $region20: #{tpu_custom_call.1} parent=0 // pred_region
    _
  $region21: #{tpu_custom_call.1} parent=0 // pred_fallthru
    _
  // Predicated region
  $region22: #{tpu_custom_call.1} parent=0 // pred_check
    _
  $region23: #{tpu_custom_call.1} parent=0 // pred_check_branch
    %3413 = sbr.rel (0) target = $region25
  $region24: #{tpu_custom_call.1} parent=0 // pred_region
    _
  $region25: #{tpu_custom_call.1} parent=0 // pred_fallthru
    _

</llo_original>
